<compile_context>
chip_gen: v7x
topology: tpu7x:2x2x1
jax: 0.10.0
libtpu: 0.0.40
codegen_flags: <defaults>
</compile_context>

<pallas_src>
import functools

import jax
import jax.numpy as jnp
from jax.experimental import pallas as pl
from jax.experimental.pallas import tpu as pltpu

BN_EPS = 1e-5
EXPANSION = 4     # Bottleneck expansion
LANE = 128        # pad conv output channels (lane dim) to multiples of this


def _round_up(x, m):
    return ((x + m - 1) // m) * m


def _largest_divisor_leq(n, limit):
    for d in range(min(n, limit), 0, -1):
        if n % d == 0:
            return d
    return 1


def _pick_tm(m, limit=512):
    """Largest divisor of m that is a multiple of 8 and <= limit (None if none)."""
    for t in range(min(limit, m), 7, -1):
        if m % t == 0 and t % 8 == 0:
            return t
    return None


# --------------------------- Kernel A: conv1 + conv2 --------------------------

def _shift_rows_up(t, k):
    """result[i] = t[i + k]; the last k rows become zeros (never read)."""
    if k == 0:
        return t
    pad = jnp.zeros((k, t.shape[1]), t.dtype)
    return jnp.concatenate([t[k:], pad], axis=0)


def _conv12_kernel(xpp_ref, mask_ref, w1_ref, b1_ref, w2_ref, b2_ref, o_ref,
                   *, s, tr, wo, wq):
    """Fused conv1(1x1)+BN1+ReLU -> conv2(3x3, stride s)+BN2+ReLU for one row tile."""
    hi = pl.program_id(1)
    cw = w1_ref.shape[1]
    e = 2 // s                       # extra phase rows needed beyond tr
    rows_p = tr + e
    r0 = pl.multiple_of(hi * (tr * wq), wq)   # flat (row*wq) start, 8-aligned

    # conv1 (1x1 + folded BN + ReLU) on exactly the rows this tile needs, per phase.
    h1 = []
    for p in range(s * s):
        xp = xpp_ref[p, 0, pl.ds(r0, rows_p * wq)]            # (rows_p*wq, cin) bf16
        z = jnp.dot(xp, w1_ref[...], preferred_element_type=jnp.float32)
        z = jnp.maximum(z + b1_ref[...], 0.0)
        z = z * mask_ref[p, pl.ds(r0, rows_p * wq)]            # zero spatial padding
        h1.append(z.astype(jnp.bfloat16))

    # conv2: 9 MXU taps.  Row offset ky -> contiguous aligned slice of h1[phase];
    # column offset kx -> shift of the f32 tap result; accumulate in registers.
    acc = None
    for ky in range(3):
        for kx in range(3):
            p = (ky % s) * s + (kx % s)
            hk = h1[p][(ky // s) * wq:(ky // s + tr) * wq]     # (tr*wq, cw), aligned
            t = jnp.dot(hk, w2_ref[3 * ky + kx],
                        preferred_element_type=jnp.float32)
            t = _shift_rows_up(t, kx // s)
            acc = t if acc is None else acc + t

    out = acc.reshape(tr, wq, cw)[:, :wo, :]                   # keep valid columns
    out = jnp.maximum(out + b2_ref[...], 0.0)
    o_ref[0] = out.astype(o_ref.dtype)


def _pad_and_phase(xb, s, hq, wq):
    """Zero-pad (1 px conv padding + rounding) and split into s*s spatial phases.

    Returns (s*s, N, hq*wq, C) with phases[dy*s+dx, n, u*wq+v, :] = xpad[n, u*s+dy, v*s+dx, :].
    For s==1 this is just the padded input (no transpose pass)."""
    N, H, W, C = xb.shape
    xp = jnp.pad(xb, ((0, 0), (1, s * hq - H - 1), (1, s * wq - W - 1), (0, 0)))
    if s == 1:
        return xp.reshape(1, N, hq * wq, C)
    x6 = xp.reshape(N, hq, s, wq, s, C)
    ph = jnp.transpose(x6, (2, 4, 0, 1, 3, 5))
    return ph.reshape(s * s, N, hq * wq, C)


def _make_mask(s, hq, wq, H, W):
    """(s*s, hq*wq, 1) f32 mask: 1 where the phase position maps to a real pixel."""
    u = jnp.arange(hq)[:, None]
    v = jnp.arange(wq)[None, :]
    ms = []
    for dy in range(s):
        for dx in range(s):
            a = u * s + dy          # padded row index (0 / >H are padding)
            b = v * s + dx          # padded col index
            ms.append((a >= 1) & (a <= H) & (b >= 1) & (b <= W))
    m = jnp.stack(ms, 0).astype(jnp.float32)
    return m.reshape(s * s, hq * wq, 1)


def conv12_fused(xb, p, Ho, Wo):
    """conv1(1x1)+BN1+ReLU fused with conv2(3x3, stride s, pad 1)+BN2+ReLU.

    xb: (N, H, W, Cin) bf16 NHWC.  Returns (N, Ho, Wo, cp_w) bf16."""
    s = p['stride']
    N, H, W, Cin = xb.shape
    cw = p['cp_w']
    e = 2 // s
    hq = Ho + e
    wq = _round_up(Wo + e, 8)        # multiple of 8 so in-kernel reshapes are free

    xpp = _pad_and_phase(xb, s, hq, wq)           # (s*s, N, hq*wq, Cin)
    mask = _make_mask(s, hq, wq, H, W)            # (s*s, hq*wq, 1)

    tr = _largest_divisor_leq(Ho, 8)              # output-row tile
    if N * (Ho // tr) < 2 and Ho > 1:             # keep both TensorCores busy (v7x)
        tr = _largest_divisor_leq(Ho, max(1, Ho // 2))
    n_h = Ho // tr

    kern = functools.partial(_conv12_kernel, s=s, tr=tr, wo=Wo, wq=wq)
    return pl.pallas_call(
        kern,
        out_shape=jax.ShapeDtypeStruct((N, Ho, Wo, cw), jnp.bfloat16),
        grid=(N, n_h),
        in_specs=[
            # whole (padded/phased) image per batch index -> DMA'd once per n
            pl.BlockSpec((s * s, 1, hq * wq, Cin), lambda n, h: (0, n, 0, 0)),
            pl.BlockSpec((s * s, hq * wq, 1), lambda n, h: (0, 0, 0)),
            pl.BlockSpec((xpp.shape[-1], cw), lambda n, h: (0, 0)),
            pl.BlockSpec((1, cw), lambda n, h: (0, 0)),
            pl.BlockSpec((9, cw, cw), lambda n, h: (0, 0, 0)),
            pl.BlockSpec((1, cw), lambda n, h: (0, 0)),
        ],
        out_specs=pl.BlockSpec((1, tr, Wo, cw), lambda n, h: (n, h, 0, 0)),
        compiler_params=pltpu.CompilerParams(
            dimension_semantics=("parallel", "parallel")),
    )(xpp, mask, p['w1'], p['b1'], p['w2'], p['b2'])


# ---------------- Kernel B: conv3 + bn3 (+ downsample) + residual + ReLU -------

def _mm_fused_kernel(*refs, use_res, use_ds, use_relu):
    """acc = x@w + b [+ res] [+ x2@w2 + b2]; optional ReLU. bf16 in / f32 acc."""
    x_ref, w_ref, b_ref = refs[0], refs[1], refs[2]
    o_ref = refs[-1]
    acc = jnp.dot(x_ref[...], w_ref[...], preferred_element_type=jnp.float32)
    acc = acc + b_ref[...]
    k = 3
    if use_res:
        acc = acc + refs[k][...].astype(jnp.float32)
        k += 1
    if use_ds:
        x2_ref, w2_ref, b2_ref = refs[k], refs[k + 1], refs[k + 2]
        acc = acc + jnp.dot(x2_ref[...], w2_ref[...],
                            preferred_element_type=jnp.float32)
        acc = acc + b2_ref[...]
    if use_relu:
        acc = jnp.maximum(acc, 0.0)
    o_ref[...] = acc.astype(o_ref.dtype)


def matmul_fused(x2d, w, b, residual=None, ds=None, relu=True,
                 out_dtype=jnp.float32):
    """(M,K)@(K,Cp) + bias [+ residual] [+ fused second matmul ds=(x2,w2,b2)] + ReLU."""
    M, K = x2d.shape
    Cp = w.shape[1]

    TM = _pick_tm(M)
    Mp = M
    if TM is None:                      # ragged M (rare): pad to a multiple of 8
        Mp = _round_up(M, 8)
        pad = Mp - M
        x2d = jnp.pad(x2d, ((0, pad), (0, 0)))
        if residual is not None:
            residual = jnp.pad(residual, ((0, pad), (0, 0)))
        if ds is not None:
            ds = (jnp.pad(ds[0], ((0, pad), (0, 0))), ds[1], ds[2])
        TM = _pick_tm(Mp)

    if Cp <= 512:
        TN = Cp
    else:
        TN = max(t for t in (512, 384, 256, 128) if Cp % t == 0)

    # >= 2 grid programs so both TensorCores get work on v7x.
    if (Mp // TM) * (Cp // TN) < 2 and TM > 8:
        smaller = _pick_tm(Mp, limit=max(8, TM // 2))
        if smaller:
            TM = smaller

    args = [x2d, w, b]
    in_specs = [
        pl.BlockSpec((TM, K), lambda i, j: (i, 0)),
        pl.BlockSpec((K, TN), lambda i, j: (0, j)),
        pl.BlockSpec((1, TN), lambda i, j: (0, j)),
    ]
    if residual is not None:
        args.append(residual)
        in_specs.append(pl.BlockSpec((TM, residual.shape[1]), lambda i, j: (i, 0)))
    if ds is not None:
        x2, w2, b2 = ds
        K2 = x2.shape[1]
        args += [x2, w2, b2]
        in_specs += [
            pl.BlockSpec((TM, K2), lambda i, j: (i, 0)),
            pl.BlockSpec((K2, TN), lambda i, j: (0, j)),
            pl.BlockSpec((1, TN), lambda i, j: (0, j)),
        ]
    kernel = functools.partial(_mm_fused_kernel, use_res=residual is not None,
                               use_ds=ds is not None, use_relu=relu)
    out = pl.pallas_call(
        kernel,
        out_shape=jax.ShapeDtypeStruct((Mp, Cp), out_dtype),
        grid=(Mp // TM, Cp // TN),
        in_specs=in_specs,
        out_specs=pl.BlockSpec((TM, TN), lambda i, j: (i, j)),
        compiler_params=pltpu.CompilerParams(
            dimension_semantics=("parallel", "parallel")),
    )(*args)
    return out[:M] if Mp != M else out


# ------------------------- parameters & preparation --------------------------

def init_bottleneck_params(key, inplanes, planes, stride):
    """PyTorch-equivalent raw params (conv weights HWIO, BN gamma/beta/mean/var)."""
    width = planes  # groups=1, base_width=64
    out_ch = planes * EXPANSION
    ks = jax.random.split(key, 8)

    def kaiming(k, kh, kw, cin, cout):
        fan_out = cout * kh * kw
        return jax.random.normal(k, (kh, kw, cin, cout), jnp.float32) * \
            (2.0 / fan_out) ** 0.5

    def bn(k, c):
        k1, k2, k3, k4 = jax.random.split(k, 4)
        gamma = 1.0 + 0.1 * jax.random.normal(k1, (c,), jnp.float32)
        beta = 0.1 * jax.random.normal(k2, (c,), jnp.float32)
        mean = 0.1 * jax.random.normal(k3, (c,), jnp.float32)
        var = jax.random.uniform(k4, (c,), jnp.float32, minval=0.5, maxval=1.5)
        return (gamma, beta, mean, var)

    raw = {
        'stride': stride,
        'conv1_w': kaiming(ks[0], 1, 1, inplanes, width), 'bn1': bn(ks[1], width),
        'conv2_w': kaiming(ks[2], 3, 3, width, width),    'bn2': bn(ks[3], width),
        'conv3_w': kaiming(ks[4], 1, 1, width, out_ch),   'bn3': bn(ks[5], out_ch),
    }
    if stride != 1 or inplanes != out_ch:
        raw['ds_w'] = kaiming(ks[6], 1, 1, inplanes, out_ch)
        raw['ds_bn'] = bn(ks[7], out_ch)
    return raw


def _fold_bn(bn):
    # TODO(synk): training-mode BatchNorm (batch statistics) not implemented;
    # eval-mode running statistics are folded into scale/bias.
    gamma, beta, mean, var = bn
    scale = gamma * jax.lax.rsqrt(var + BN_EPS)
    bias = beta - mean * scale
    return scale, bias


def prepare_bottleneck(raw):
    """Fold BN into weights, zero-pad channels to LANE multiples, cast to bf16."""
    stride = raw['stride']
    w1, w2, w3 = raw['conv1_w'], raw['conv2_w'], raw['conv3_w']
    inplanes, width = w1.shape[2], w1.shape[3]
    out_ch = w3.shape[3]
    cp_w = _round_up(width, LANE)
    cp_out = _round_up(out_ch, LANE)
    has_ds = 'ds_w' in raw

    cin_pad = 0
    if not has_ds:
        assert stride == 1 and inplanes == out_ch, "identity shortcut needs matching shapes"
        cin_pad = cp_out - out_ch      # only in toy configs; 0 for real ResNet
    cin_eff = inplanes + cin_pad

    s1, b1 = _fold_bn(raw['bn1'])
    s2, b2 = _fold_bn(raw['bn2'])
    s3, b3 = _fold_bn(raw['bn3'])

    def fold_1x1(w, scale, bias, k_pad, cout_pad):
        cin, cout = w.shape[2], w.shape[3]
        wf = w.reshape(cin, cout) * scale[None, :]
        wf = jnp.pad(wf, ((0, k_pad - cin), (0, cout_pad - cout)))
        bf = jnp.pad(bias, (0, cout_pad - cout))
        return wf.astype(jnp.bfloat16), bf.reshape(1, -1).astype(jnp.float32)

    p = dict(stride=stride, out_ch=out_ch, cp_w=cp_w, cp_out=cp_out,
             has_ds=has_ds, cin_pad=cin_pad)
    p['w1'], p['b1'] = fold_1x1(w1, s1, b1, cin_eff, cp_w)

    w2f = w2 * s2[None, None, None, :]
    w2f = jnp.pad(w2f, ((0, 0), (0, 0), (0, cp_w - width), (0, cp_w - width)))
    p['w2'] = w2f.reshape(9, cp_w, cp_w).astype(jnp.bfloat16)
    p['b2'] = jnp.pad(b2, (0, cp_w - width)).reshape(1, cp_w).astype(jnp.float32)

    p['w3'], p['b3'] = fold_1x1(w3, s3, b3, cp_w, cp_out)
    if has_ds:
        sd, bd = _fold_bn(raw['ds_bn'])
        p['wd'], p['bd'] = fold_1x1(raw['ds_w'], sd, bd, inplanes, cp_out)
    return p


# --------------------------------- forward -----------------------------------

def bottleneck_forward(p, x_nchw):
    """Bottleneck forward (eval-mode BN). x: NCHW f32 -> NCHW f32."""
    s = p['stride']
    N, Cin, H, W = x_nchw.shape
    # NCHW->NHWC + bf16 cast in one fused XLA pass (no standalone cast pass).
    xb = jnp.transpose(x_nchw, (0, 2, 3, 1)).astype(jnp.bfloat16)
    if p['cin_pad']:
        xb = jnp.pad(xb, ((0, 0), (0, 0), (0, 0), (0, p['cin_pad'])))
    Ho = (H - 1) // s + 1
    Wo = (W - 1) // s + 1

    # conv1 + bn1 + relu + conv2 + bn2 + relu, fused in one kernel.
    h2 = conv12_fused(xb, p, Ho, Wo)                  # (N, Ho, Wo, cp_w) bf16
    M = N * Ho * Wo
    h2d = h2.reshape(M, p['cp_w'])

    # conv3 + bn3 (+ downsample conv1x1 + bn) + residual add + relu: one kernel.
    if p['has_ds']:
        xs = xb[:, ::s, ::s, :][:, :Ho, :Wo, :].reshape(M, xb.shape[-1])
        out2d = matmul_fused(h2d, p['w3'], p['b3'],
                             ds=(xs, p['wd'], p['bd']), relu=True)
    else:
        out2d = matmul_fused(h2d, p['w3'], p['b3'],
                             residual=xb.reshape(M, xb.shape[-1]), relu=True)

    out = out2d.reshape(N, Ho, Wo, p['cp_out'])[..., :p['out_ch']]
    # Final NCHW f32 to match the PyTorch module (keeping NHWC/bf16 would save a
    # pass if the consumer tolerated it).
    return jnp.transpose(out, (0, 3, 1, 2))


# ------------------------------ pure-JAX reference ---------------------------

def _bn_ref(x, bn):
    gamma, beta, mean, var = bn
    return (x - mean) * (gamma / jnp.sqrt(var + BN_EPS)) + beta


def bottleneck_ref(raw, x_nchw):
    x = jnp.transpose(x_nchw, (0, 2, 3, 1))

    def conv(h, w, s, pad):
        return jax.lax.conv_general_dilated(
            h, w, (s, s), [(pad, pad), (pad, pad)],
            dimension_numbers=('NHWC', 'HWIO', 'NHWC'),
            precision=jax.lax.Precision.HIGHEST)

    s = raw['stride']
    out = jax.nn.relu(_bn_ref(conv(x, raw['conv1_w'], 1, 0), raw['bn1']))
    out = jax.nn.relu(_bn_ref(conv(out, raw['conv2_w'], s, 1), raw['bn2']))
    out = _bn_ref(conv(out, raw['conv3_w'], 1, 0), raw['bn3'])
    if 'ds_w' in raw:
        identity = _bn_ref(conv(x, raw['ds_w'], s, 0), raw['ds_bn'])
    else:
        identity = x
    out = jax.nn.relu(out + identity)
    return jnp.transpose(out, (0, 3, 1, 2))


# ----------------------------------- main -------------------------------------

if __name__ == "__main__":
    key = jax.random.PRNGKey(0)
    # (inplanes, planes, stride): downsample block (stride 2) and identity block (stride 1)
    configs = [(64, 64, 2), (256, 64, 1)]
    H = W = 16
    for idx, (inplanes, planes, stride) in enumerate(configs):
        kp = jax.random.fold_in(key, idx)
        raw = init_bottleneck_params(jax.random.fold_in(kp, 1),
                                     inplanes, planes, stride)
        x = jax.random.normal(jax.random.fold_in(kp, 2),
                              (2, inplanes, H, W), jnp.float32)

        prep = prepare_bottleneck(raw)
        fwd = jax.jit(functools.partial(bottleneck_forward, prep))
        out = jax.block_until_ready(fwd(x))

        ref = bottleneck_ref(raw, x)
        Ho = (H - 1) // stride + 1
        assert out.shape == (2, planes * EXPANSION, Ho, Ho), out.shape
        assert bool(jnp.isfinite(out).all())
        err = float(jnp.max(jnp.abs(out - ref)))
        scale = float(jnp.max(jnp.abs(ref)))
        assert err <= 0.02 * scale + 0.05, (idx, err, scale)  # bf16-matmul tolerance
    print("KERNEL_OK")
</pallas_src>

<mosaic_0001>
module attributes {stable_mosaic.version = 11 : i64} {
  func.func @_mm_fused_kernel(%arg0: i32, %arg1: i32, %arg2: memref<64x128xbf16, #tpu.memory_space<vmem>>, %arg3: memref<128x256xbf16, #tpu.memory_space<vmem>>, %arg4: memref<1x256xf32, #tpu.memory_space<vmem>>, %arg5: memref<64x64xbf16, #tpu.memory_space<vmem>>, %arg6: memref<64x256xbf16, #tpu.memory_space<vmem>>, %arg7: memref<1x256xf32, #tpu.memory_space<vmem>>, %arg8: memref<64x256xf32, #tpu.memory_space<vmem>>) attributes {dimension_semantics = [#tpu.dimension_semantics<parallel>, #tpu.dimension_semantics<parallel>], iteration_bounds = array<i64: 2, 1>, scalar_prefetch = 0 : i64, scratch_operands = 0 : i64, tpu.core_type = #tpu.core_type<tc>, window_params = [{transform_indices = @transform_0, window_bounds = array<i64: 64, 128>}, {transform_indices = @transform_1, window_bounds = array<i64: 128, 256>}, {transform_indices = @transform_2, window_bounds = array<i64: 1, 256>}, {transform_indices = @transform_3, window_bounds = array<i64: 64, 64>}, {transform_indices = @transform_4, window_bounds = array<i64: 64, 256>}, {transform_indices = @transform_5, window_bounds = array<i64: 1, 256>}, {transform_indices = @transform_6, window_bounds = array<i64: 64, 256>}]} {
    %c0 = arith.constant 0 : index
    %c0_0 = arith.constant 0 : index
    %0 = vector.load %arg2[%c0, %c0_0] : memref<64x128xbf16, #tpu.memory_space<vmem>>, vector<64x128xbf16>
    %c0_1 = arith.constant 0 : index
    %c0_2 = arith.constant 0 : index
    %1 = vector.load %arg3[%c0_1, %c0_2] : memref<128x256xbf16, #tpu.memory_space<vmem>>, vector<128x256xbf16>
    %cst = arith.constant dense<0.000000e+00> : vector<64x256xf32>
    %2 = tpu.matmul %0, %1, %cst {dimension_numbers = #tpu.dot_dimension_numbers<[1], [0], [0], [1], [0, 0, 1, 1], [], []>} : vector<64x128xbf16>, vector<128x256xbf16>, vector<64x256xf32> -> vector<64x256xf32>
    %c0_3 = arith.constant 0 : index
    %c0_4 = arith.constant 0 : index
    %3 = vector.load %arg4[%c0_3, %c0_4] : memref<1x256xf32, #tpu.memory_space<vmem>>, vector<1x256xf32>
    %4 = vector.broadcast %3 : vector<1x256xf32> to vector<64x256xf32>
    %5 = arith.addf %2, %4 : vector<64x256xf32>
    %c0_5 = arith.constant 0 : index
    %c0_6 = arith.constant 0 : index
    %6 = vector.load %arg5[%c0_5, %c0_6] : memref<64x64xbf16, #tpu.memory_space<vmem>>, vector<64x64xbf16>
    %c0_7 = arith.constant 0 : index
    %c0_8 = arith.constant 0 : index
    %7 = vector.load %arg6[%c0_7, %c0_8] : memref<64x256xbf16, #tpu.memory_space<vmem>>, vector<64x256xbf16>
    %cst_9 = arith.constant dense<0.000000e+00> : vector<64x256xf32>
    %8 = tpu.matmul %6, %7, %cst_9 {dimension_numbers = #tpu.dot_dimension_numbers<[1], [0], [0], [1], [0, 0, 1, 1], [], []>} : vector<64x64xbf16>, vector<64x256xbf16>, vector<64x256xf32> -> vector<64x256xf32>
    %9 = arith.addf %5, %8 : vector<64x256xf32>
    %c0_10 = arith.constant 0 : index
    %c0_11 = arith.constant 0 : index
    %10 = vector.load %arg7[%c0_10, %c0_11] : memref<1x256xf32, #tpu.memory_space<vmem>>, vector<1x256xf32>
    %11 = vector.broadcast %10 : vector<1x256xf32> to vector<64x256xf32>
    %12 = arith.addf %9, %11 : vector<64x256xf32>
    %cst_12 = arith.constant 0.000000e+00 : f32
    %13 = vector.broadcast %cst_12 : f32 to vector<64x256xf32>
    %14 = arith.maximumf %12, %13 : vector<64x256xf32>
    %c0_13 = arith.constant 0 : index
    %c0_14 = arith.constant 0 : index
    %15 = vector.load %arg8[%c0_13, %c0_14] : memref<64x256xf32, #tpu.memory_space<vmem>>, vector<64x256xf32>
    tpu.vector_store %arg8[%c0_13, %c0_14], %14 {strides = array<i32>} : memref<64x256xf32, #tpu.memory_space<vmem>>, vector<64x256xf32>,
    return
  }
  func.func @transform_0(%arg0: i32, %arg1: i32) -> (i32, i32) {
    %c0_i32 = arith.constant 0 : i32
    %c0_i32_0 = arith.constant 0 : i32
    return %arg0, %c0_i32 : i32, i32
  }
  func.func @transform_1(%arg0: i32, %arg1: i32) -> (i32, i32) {
    %c0_i32 = arith.constant 0 : i32
    %c0_i32_0 = arith.constant 0 : i32
    return %c0_i32, %arg1 : i32, i32
  }
  func.func @transform_2(%arg0: i32, %arg1: i32) -> (i32, i32) {
    %c0_i32 = arith.constant 0 : i32
    %c0_i32_0 = arith.constant 0 : i32
    return %c0_i32, %arg1 : i32, i32
  }
  func.func @transform_3(%arg0: i32, %arg1: i32) -> (i32, i32) {
    %c0_i32 = arith.constant 0 : i32
    %c0_i32_0 = arith.constant 0 : i32
    return %arg0, %c0_i32 : i32, i32
  }
  func.func @transform_4(%arg0: i32, %arg1: i32) -> (i32, i32) {
    %c0_i32 = arith.constant 0 : i32
    %c0_i32_0 = arith.constant 0 : i32
    return %c0_i32, %arg1 : i32, i32
  }
  func.func @transform_5(%arg0: i32, %arg1: i32) -> (i32, i32) {
    %c0_i32 = arith.constant 0 : i32
    %c0_i32_0 = arith.constant 0 : i32
    return %c0_i32, %arg1 : i32, i32
  }
  func.func @transform_6(%arg0: i32, %arg1: i32) -> (i32, i32) {
    %c0_i32 = arith.constant 0 : i32
    return %arg0, %arg1 : i32, i32
  }
}

module attributes {stable_mosaic.version = 11 : i64} {
  func.func @_conv12_kernel(%arg0: i32, %arg1: i32, %arg2: memref<4x1x144x64xbf16, #tpu.memory_space<vmem>>, %arg3: memref<4x144x1xf32, #tpu.memory_space<vmem>>, %arg4: memref<64x128xbf16, #tpu.memory_space<vmem>>, %arg5: memref<1x128xf32, #tpu.memory_space<vmem>>, %arg6: memref<9x128x128xbf16, #tpu.memory_space<vmem>>, %arg7: memref<1x128xf32, #tpu.memory_space<vmem>>, %arg8: memref<1x8x8x128xbf16, #tpu.memory_space<vmem>>) attributes {dimension_semantics = [#tpu.dimension_semantics<parallel>, #tpu.dimension_semantics<parallel>], iteration_bounds = array<i64: 2, 1>, scalar_prefetch = 0 : i64, scratch_operands = 0 : i64, tpu.core_type = #tpu.core_type<tc>, window_params = [{transform_indices = @transform_0, window_bounds = array<i64: 4, 1, 144, 64>}, {pipeline_mode = #tpu.pipeline_mode<synchronous>, transform_indices = @transform_1, window_bounds = array<i64: 4, 144, 1>}, {pipeline_mode = #tpu.pipeline_mode<synchronous>, transform_indices = @transform_2, window_bounds = array<i64: 64, 128>}, {pipeline_mode = #tpu.pipeline_mode<synchronous>, transform_indices = @transform_3, window_bounds = array<i64: 1, 128>}, {pipeline_mode = #tpu.pipeline_mode<synchronous>, transform_indices = @transform_4, window_bounds = array<i64: 9, 128, 128>}, {pipeline_mode = #tpu.pipeline_mode<synchronous>, transform_indices = @transform_5, window_bounds = array<i64: 1, 128>}, {transform_indices = @transform_6, window_bounds = array<i64: 1, 8, 8, 128>}]} {
    %c128_i32 = arith.constant 128 : i32
    %0 = arith.muli %arg1, %c128_i32 : i32
    %1 = tpu.assume_multiple %0, 16 : i32
    %c0 = arith.constant 0 : index
    %c0_0 = arith.constant 0 : index
    %2 = arith.index_cast %1 : i32 to index
    %c0_1 = arith.constant 0 : index
    %3 = vector.load %arg2[%c0, %c0_0, %2, %c0_1] : memref<4x1x144x64xbf16, #tpu.memory_space<vmem>>, vector<1x1x144x64xbf16>
    %4 = vector.shape_cast %3 : vector<1x1x144x64xbf16> to vector<144x64xbf16>
    %c0_2 = arith.constant 0 : index
    %c0_3 = arith.constant 0 : index
    %5 = vector.load %arg4[%c0_2, %c0_3] : memref<64x128xbf16, #tpu.memory_space<vmem>>, vector<64x128xbf16>
    %cst = arith.constant dense<0.000000e+00> : vector<144x128xf32>
    %6 = tpu.matmul %4, %5, %cst {dimension_numbers = #tpu.dot_dimension_numbers<[1], [0], [0], [1], [0, 0, 1, 1], [], []>} : vector<144x64xbf16>, vector<64x128xbf16>, vector<144x128xf32> -> vector<144x128xf32>
    %c0_4 = arith.constant 0 : index
    %c0_5 = arith.constant 0 : index
    %7 = vector.load %arg5[%c0_4, %c0_5] : memref<1x128xf32, #tpu.memory_space<vmem>>, vector<1x128xf32>
    %8 = vector.broadcast %7 : vector<1x128xf32> to vector<144x128xf32>
    %9 = arith.addf %6, %8 : vector<144x128xf32>
    %cst_6 = arith.constant 0.000000e+00 : f32
    %10 = vector.broadcast %cst_6 : f32 to vector<144x128xf32>
    %11 = arith.maximumf %9, %10 : vector<144x128xf32>
    %c0_7 = arith.constant 0 : index
    %12 = arith.index_cast %1 : i32 to index
    %c0_8 = arith.constant 0 : index
    %13 = vector.load %arg3[%c0_7, %12, %c0_8] : memref<4x144x1xf32, #tpu.memory_space<vmem>>, vector<1x144x1xf32>
    %14 = vector.shape_cast %13 : vector<1x144x1xf32> to vector<144x1xf32>
    %15 = vector.broadcast %14 : vector<144x1xf32> to vector<144x128xf32>
    %16 = arith.mulf %11, %15 : vector<144x128xf32>
    %17 = arith.truncf %16 : vector<144x128xf32> to vector<144x128xbf16>
    %c1 = arith.constant 1 : index
    %c0_9 = arith.constant 0 : index
    %18 = arith.index_cast %1 : i32 to index
    %c0_10 = arith.constant 0 : index
    %19 = vector.load %arg2[%c1, %c0_9, %18, %c0_10] : memref<4x1x144x64xbf16, #tpu.memory_space<vmem>>, vector<1x1x144x64xbf16>
    %20 = vector.shape_cast %19 : vector<1x1x144x64xbf16> to vector<144x64xbf16>
    %c0_11 = arith.constant 0 : index
    %c0_12 = arith.constant 0 : index
    %21 = vector.load %arg4[%c0_11, %c0_12] : memref<64x128xbf16, #tpu.memory_space<vmem>>, vector<64x128xbf16>
    %cst_13 = arith.constant dense<0.000000e+00> : vector<144x128xf32>
    %22 = tpu.matmul %20, %21, %cst_13 {dimension_numbers = #tpu.dot_dimension_numbers<[1], [0], [0], [1], [0, 0, 1, 1], [], []>} : vector<144x64xbf16>, vector<64x128xbf16>, vector<144x128xf32> -> vector<144x128xf32>
    %c0_14 = arith.constant 0 : index
    %c0_15 = arith.constant 0 : index
    %23 = vector.load %arg5[%c0_14, %c0_15] : memref<1x128xf32, #tpu.memory_space<vmem>>, vector<1x128xf32>
    %24 = vector.broadcast %23 : vector<1x128xf32> to vector<144x128xf32>
    %25 = arith.addf %22, %24 : vector<144x128xf32>
    %cst_16 = arith.constant 0.000000e+00 : f32
    %26 = vector.broadcast %cst_16 : f32 to vector<144x128xf32>
    %27 = arith.maximumf %25, %26 : vector<144x128xf32>
    %c1_17 = arith.constant 1 : index
    %28 = arith.index_cast %1 : i32 to index
    %c0_18 = arith.constant 0 : index
    %29 = vector.load %arg3[%c1_17, %28, %c0_18] : memref<4x144x1xf32, #tpu.memory_space<vmem>>, vector<1x144x1xf32>
    %30 = vector.shape_cast %29 : vector<1x144x1xf32> to vector<144x1xf32>
    %31 = vector.broadcast %30 : vector<144x1xf32> to vector<144x128xf32>
    %32 = arith.mulf %27, %31 : vector<144x128xf32>
    %33 = arith.truncf %32 : vector<144x128xf32> to vector<144x128xbf16>
    %c2 = arith.constant 2 : index
    %c0_19 = arith.constant 0 : index
    %34 = arith.index_cast %1 : i32 to index
    %c0_20 = arith.constant 0 : index
    %35 = vector.load %arg2[%c2, %c0_19, %34, %c0_20] : memref<4x1x144x64xbf16, #tpu.memory_space<vmem>>, vector<1x1x144x64xbf16>
    %36 = vector.shape_cast %35 : vector<1x1x144x64xbf16> to vector<144x64xbf16>
    %c0_21 = arith.constant 0 : index
    %c0_22 = arith.constant 0 : index
    %37 = vector.load %arg4[%c0_21, %c0_22] : memref<64x128xbf16, #tpu.memory_space<vmem>>, vector<64x128xbf16>
    %cst_23 = arith.constant dense<0.000000e+00> : vector<144x128xf32>
    %38 = tpu.matmul %36, %37, %cst_23 {dimension_numbers = #tpu.dot_dimension_numbers<[1], [0], [0], [1], [0, 0, 1, 1], [], []>} : vector<144x64xbf16>, vector<64x128xbf16>, vector<144x128xf32> -> vector<144x128xf32>
    %c0_24 = arith.constant 0 : index
    %c0_25 = arith.constant 0 : index
    %39 = vector.load %arg5[%c0_24, %c0_25] : memref<1x128xf32, #tpu.memory_space<vmem>>, vector<1x128xf32>
    %40 = vector.broadcast %39 : vector<1x128xf32> to vector<144x128xf32>
    %41 = arith.addf %38, %40 : vector<144x128xf32>
    %cst_26 = arith.constant 0.000000e+00 : f32
    %42 = vector.broadcast %cst_26 : f32 to vector<144x128xf32>
    %43 = arith.maximumf %41, %42 : vector<144x128xf32>
    %c2_27 = arith.constant 2 : index
    %44 = arith.index_cast %1 : i32 to index
    %c0_28 = arith.constant 0 : index
    %45 = vector.load %arg3[%c2_27, %44, %c0_28] : memref<4x144x1xf32, #tpu.memory_space<vmem>>, vector<1x144x1xf32>
    %46 = vector.shape_cast %45 : vector<1x144x1xf32> to vector<144x1xf32>
    %47 = vector.broadcast %46 : vector<144x1xf32> to vector<144x128xf32>
    %48 = arith.mulf %43, %47 : vector<144x128xf32>
    %49 = arith.truncf %48 : vector<144x128xf32> to vector<144x128xbf16>
    %c3 = arith.constant 3 : index
    %c0_29 = arith.constant 0 : index
    %50 = arith.index_cast %1 : i32 to index
    %c0_30 = arith.constant 0 : index
    %51 = vector.load %arg2[%c3, %c0_29, %50, %c0_30] : memref<4x1x144x64xbf16, #tpu.memory_space<vmem>>, vector<1x1x144x64xbf16>
    %52 = vector.shape_cast %51 : vector<1x1x144x64xbf16> to vector<144x64xbf16>
    %c0_31 = arith.constant 0 : index
    %c0_32 = arith.constant 0 : index
    %53 = vector.load %arg4[%c0_31, %c0_32] : memref<64x128xbf16, #tpu.memory_space<vmem>>, vector<64x128xbf16>
    %cst_33 = arith.constant dense<0.000000e+00> : vector<144x128xf32>
    %54 = tpu.matmul %52, %53, %cst_33 {dimension_numbers = #tpu.dot_dimension_numbers<[1], [0], [0], [1], [0, 0, 1, 1], [], []>} : vector<144x64xbf16>, vector<64x128xbf16>, vector<144x128xf32> -> vector<144x128xf32>
    %c0_34 = arith.constant 0 : index
    %c0_35 = arith.constant 0 : index
    %55 = vector.load %arg5[%c0_34, %c0_35] : memref<1x128xf32, #tpu.memory_space<vmem>>, vector<1x128xf32>
    %56 = vector.broadcast %55 : vector<1x128xf32> to vector<144x128xf32>
    %57 = arith.addf %54, %56 : vector<144x128xf32>
    %cst_36 = arith.constant 0.000000e+00 : f32
    %58 = vector.broadcast %cst_36 : f32 to vector<144x128xf32>
    %59 = arith.maximumf %57, %58 : vector<144x128xf32>
    %c3_37 = arith.constant 3 : index
    %60 = arith.index_cast %1 : i32 to index
    %c0_38 = arith.constant 0 : index
    %61 = vector.load %arg3[%c3_37, %60, %c0_38] : memref<4x144x1xf32, #tpu.memory_space<vmem>>, vector<1x144x1xf32>
    %62 = vector.shape_cast %61 : vector<1x144x1xf32> to vector<144x1xf32>
    %63 = vector.broadcast %62 : vector<144x1xf32> to vector<144x128xf32>
    %64 = arith.mulf %59, %63 : vector<144x128xf32>
    %65 = arith.truncf %64 : vector<144x128xf32> to vector<144x128xbf16>
    %66 = vector.extract_strided_slice %17 {offsets = [0, 0], sizes = [128, 128], strides = [1, 1]} : vector<144x128xbf16> to vector<128x128xbf16>
    %c0_39 = arith.constant 0 : index
    %c0_40 = arith.constant 0 : index
    %c0_41 = arith.constant 0 : index
    %67 = vector.load %arg6[%c0_39, %c0_40, %c0_41] : memref<9x128x128xbf16, #tpu.memory_space<vmem>>, vector<1x128x128xbf16>
    %68 = vector.shape_cast %67 : vector<1x128x128xbf16> to vector<128x128xbf16>
    %cst_42 = arith.constant dense<0.000000e+00> : vector<128x128xf32>
    %69 = tpu.matmul %66, %68, %cst_42 {dimension_numbers = #tpu.dot_dimension_numbers<[1], [0], [0], [1], [0, 0, 1, 1], [], []>} : vector<128x128xbf16>, vector<128x128xbf16>, vector<128x128xf32> -> vector<128x128xf32>
    %70 = vector.extract_strided_slice %33 {offsets = [0, 0], sizes = [128, 128], strides = [1, 1]} : vector<144x128xbf16> to vector<128x128xbf16>
    %c1_43 = arith.constant 1 : index
    %c0_44 = arith.constant 0 : index
    %c0_45 = arith.constant 0 : index
    %71 = vector.load %arg6[%c1_43, %c0_44, %c0_45] : memref<9x128x128xbf16, #tpu.memory_space<vmem>>, vector<1x128x128xbf16>
    %72 = vector.shape_cast %71 : vector<1x128x128xbf16> to vector<128x128xbf16>
    %cst_46 = arith.constant dense<0.000000e+00> : vector<128x128xf32>
    %73 = tpu.matmul %70, %72, %cst_46 {dimension_numbers = #tpu.dot_dimension_numbers<[1], [0], [0], [1], [0, 0, 1, 1], [], []>} : vector<128x128xbf16>, vector<128x128xbf16>, vector<128x128xf32> -> vector<128x128xf32>
    %74 = arith.addf %69, %73 : vector<128x128xf32>
    %75 = vector.extract_strided_slice %17 {offsets = [0, 0], sizes = [128, 128], strides = [1, 1]} : vector<144x128xbf16> to vector<128x128xbf16>
    %c2_47 = arith.constant 2 : index
    %c0_48 = arith.constant 0 : index
    %c0_49 = arith.constant 0 : index
    %76 = vector.load %arg6[%c2_47, %c0_48, %c0_49] : memref<9x128x128xbf16, #tpu.memory_space<vmem>>, vector<1x128x128xbf16>
    %77 = vector.shape_cast %76 : vector<1x128x128xbf16> to vector<128x128xbf16>
    %cst_50 = arith.constant dense<0.000000e+00> : vector<128x128xf32>
    %78 = tpu.matmul %75, %77, %cst_50 {dimension_numbers = #tpu.dot_dimension_numbers<[1], [0], [0], [1], [0, 0, 1, 1], [], []>} : vector<128x128xbf16>, vector<128x128xbf16>, vector<128x128xf32> -> vector<128x128xf32>
    %cst_51 = arith.constant 0.000000e+00 : f32
    %79 = vector.broadcast %cst_51 : f32 to vector<1x128xf32>
    %80 = vector.extract_strided_slice %78 {offsets = [1, 0], sizes = [127, 128], strides = [1, 1]} : vector<128x128xf32> to vector<127x128xf32>
    %81 = tpu.concatenate %80, %79 in 0 : vector<127x128xf32>, vector<1x128xf32> -> vector<128x128xf32>
    %82 = arith.addf %74, %81 : vector<128x128xf32>
    %83 = vector.extract_strided_slice %49 {offsets = [0, 0], sizes = [128, 128], strides = [1, 1]} : vector<144x128xbf16> to vector<128x128xbf16>
    %c3_52 = arith.constant 3 : index
    %c0_53 = arith.constant 0 : index
    %c0_54 = arith.constant 0 : index
    %84 = vector.load %arg6[%c3_52, %c0_53, %c0_54] : memref<9x128x128xbf16, #tpu.memory_space<vmem>>, vector<1x128x128xbf16>
    %85 = vector.shape_cast %84 : vector<1x128x128xbf16> to vector<128x128xbf16>
    %cst_55 = arith.constant dense<0.000000e+00> : vector<128x128xf32>
    %86 = tpu.matmul %83, %85, %cst_55 {dimension_numbers = #tpu.dot_dimension_numbers<[1], [0], [0], [1], [0, 0, 1, 1], [], []>} : vector<128x128xbf16>, vector<128x128xbf16>, vector<128x128xf32> -> vector<128x128xf32>
    %87 = arith.addf %82, %86 : vector<128x128xf32>
    %88 = vector.extract_strided_slice %65 {offsets = [0, 0], sizes = [128, 128], strides = [1, 1]} : vector<144x128xbf16> to vector<128x128xbf16>
    %c4 = arith.constant 4 : index
    %c0_56 = arith.constant 0 : index
    %c0_57 = arith.constant 0 : index
    %89 = vector.load %arg6[%c4, %c0_56, %c0_57] : memref<9x128x128xbf16, #tpu.memory_space<vmem>>, vector<1x128x128xbf16>
    %90 = vector.shape_cast %89 : vector<1x128x128xbf16> to vector<128x128xbf16>
    %cst_58 = arith.constant dense<0.000000e+00> : vector<128x128xf32>
    %91 = tpu.matmul %88, %90, %cst_58 {dimension_numbers = #tpu.dot_dimension_numbers<[1], [0], [0], [1], [0, 0, 1, 1], [], []>} : vector<128x128xbf16>, vector<128x128xbf16>, vector<128x128xf32> -> vector<128x128xf32>
    %92 = arith.addf %87, %91 : vector<128x128xf32>
    %93 = vector.extract_strided_slice %49 {offsets = [0, 0], sizes = [128, 128], strides = [1, 1]} : vector<144x128xbf16> to vector<128x128xbf16>
    %c5 = arith.constant 5 : index
    %c0_59 = arith.constant 0 : index
    %c0_60 = arith.constant 0 : index
    %94 = vector.load %arg6[%c5, %c0_59, %c0_60] : memref<9x128x128xbf16, #tpu.memory_space<vmem>>, vector<1x128x128xbf16>
    %95 = vector.shape_cast %94 : vector<1x128x128xbf16> to vector<128x128xbf16>
    %cst_61 = arith.constant dense<0.000000e+00> : vector<128x128xf32>
    %96 = tpu.matmul %93, %95, %cst_61 {dimension_numbers = #tpu.dot_dimension_numbers<[1], [0], [0], [1], [0, 0, 1, 1], [], []>} : vector<128x128xbf16>, vector<128x128xbf16>, vector<128x128xf32> -> vector<128x128xf32>
    %cst_62 = arith.constant 0.000000e+00 : f32
    %97 = vector.broadcast %cst_62 : f32 to vector<1x128xf32>
    %98 = vector.extract_strided_slice %96 {offsets = [1, 0], sizes = [127, 128], strides = [1, 1]} : vector<128x128xf32> to vector<127x128xf32>
    %99 = tpu.concatenate %98, %97 in 0 : vector<127x128xf32>, vector<1x128xf32> -> vector<128x128xf32>
    %100 = arith.addf %92, %99 : vector<128x128xf32>
    %101 = vector.extract_strided_slice %17 {offsets = [16, 0], sizes = [128, 128], strides = [1, 1]} : vector<144x128xbf16> to vector<128x128xbf16>
    %c6 = arith.constant 6 : index
    %c0_63 = arith.constant 0 : index
    %c0_64 = arith.constant 0 : index
    %102 = vector.load %arg6[%c6, %c0_63, %c0_64] : memref<9x128x128xbf16, #tpu.memory_space<vmem>>, vector<1x128x128xbf16>
    %103 = vector.shape_cast %102 : vector<1x128x128xbf16> to vector<128x128xbf16>
    %cst_65 = arith.constant dense<0.000000e+00> : vector<128x128xf32>
    %104 = tpu.matmul %101, %103, %cst_65 {dimension_numbers = #tpu.dot_dimension_numbers<[1], [0], [0], [1], [0, 0, 1, 1], [], []>} : vector<128x128xbf16>, vector<128x128xbf16>, vector<128x128xf32> -> vector<128x128xf32>
    %105 = arith.addf %100, %104 : vector<128x128xf32>
    %106 = vector.extract_strided_slice %33 {offsets = [16, 0], sizes = [128, 128], strides = [1, 1]} : vector<144x128xbf16> to vector<128x128xbf16>
    %c7 = arith.constant 7 : index
    %c0_66 = arith.constant 0 : index
    %c0_67 = arith.constant 0 : index
    %107 = vector.load %arg6[%c7, %c0_66, %c0_67] : memref<9x128x128xbf16, #tpu.memory_space<vmem>>, vector<1x128x128xbf16>
    %108 = vector.shape_cast %107 : vector<1x128x128xbf16> to vector<128x128xbf16>
    %cst_68 = arith.constant dense<0.000000e+00> : vector<128x128xf32>
    %109 = tpu.matmul %106, %108, %cst_68 {dimension_numbers = #tpu.dot_dimension_numbers<[1], [0], [0], [1], [0, 0, 1, 1], [], []>} : vector<128x128xbf16>, vector<128x128xbf16>, vector<128x128xf32> -> vector<128x128xf32>
    %110 = arith.addf %105, %109 : vector<128x128xf32>
    %111 = vector.extract_strided_slice %17 {offsets = [16, 0], sizes = [128, 128], strides = [1, 1]} : vector<144x128xbf16> to vector<128x128xbf16>
    %c8 = arith.constant 8 : index
    %c0_69 = arith.constant 0 : index
    %c0_70 = arith.constant 0 : index
    %112 = vector.load %arg6[%c8, %c0_69, %c0_70] : memref<9x128x128xbf16, #tpu.memory_space<vmem>>, vector<1x128x128xbf16>
    %113 = vector.shape_cast %112 : vector<1x128x128xbf16> to vector<128x128xbf16>
    %cst_71 = arith.constant dense<0.000000e+00> : vector<128x128xf32>
    %114 = tpu.matmul %111, %113, %cst_71 {dimension_numbers = #tpu.dot_dimension_numbers<[1], [0], [0], [1], [0, 0, 1, 1], [], []>} : vector<128x128xbf16>, vector<128x128xbf16>, vector<128x128xf32> -> vector<128x128xf32>
    %cst_72 = arith.constant 0.000000e+00 : f32
    %115 = vector.broadcast %cst_72 : f32 to vector<1x128xf32>
    %116 = vector.extract_strided_slice %114 {offsets = [1, 0], sizes = [127, 128], strides = [1, 1]} : vector<128x128xf32> to vector<127x128xf32>
    %117 = tpu.concatenate %116, %115 in 0 : vector<127x128xf32>, vector<1x128xf32> -> vector<128x128xf32>
    %118 = arith.addf %110, %117 : vector<128x128xf32>
    %119 = vector.shape_cast %118 : vector<128x128xf32> to vector<8x16x128xf32>
    %120 = vector.extract_strided_slice %119 {offsets = [0, 0, 0], sizes = [8, 8, 128], strides = [1, 1, 1]} : vector<8x16x128xf32> to vector<8x8x128xf32>
    %c0_73 = arith.constant 0 : index
    %c0_74 = arith.constant 0 : index
    %121 = vector.load %arg7[%c0_73, %c0_74] : memref<1x128xf32, #tpu.memory_space<vmem>>, vector<1x128xf32>
    %122 = vector.shape_cast %121 : vector<1x128xf32> to vector<1x1x128xf32>
    %123 = vector.broadcast %122 : vector<1x1x128xf32> to vector<8x8x128xf32>
    %124 = arith.addf %120, %123 : vector<8x8x128xf32>
    %cst_75 = arith.constant 0.000000e+00 : f32
    %125 = vector.broadcast %cst_75 : f32 to vector<8x8x128xf32>
    %126 = arith.maximumf %124, %125 : vector<8x8x128xf32>
    %127 = arith.truncf %126 : vector<8x8x128xf32> to vector<8x8x128xbf16>
    %c0_76 = arith.constant 0 : index
    %c0_77 = arith.constant 0 : index
    %c0_78 = arith.constant 0 : index
    %c0_79 = arith.constant 0 : index
    %128 = vector.load %arg8[%c0_76, %c0_77, %c0_78, %c0_79] : memref<1x8x8x128xbf16, #tpu.memory_space<vmem>>, vector<1x8x8x128xbf16>
    %129 = vector.shape_cast %128 : vector<1x8x8x128xbf16> to vector<8x8x128xbf16>
    %130 = vector.shape_cast %127 : vector<8x8x128xbf16> to vector<1x8x8x128xbf16>
    tpu.vector_store %arg8[%c0_76, %c0_77, %c0_78, %c0_79], %130 {strides = array<i32>} : memref<1x8x8x128xbf16, #tpu.memory_space<vmem>>, vector<1x8x8x128xbf16>,
    return
  }
  func.func @transform_0(%arg0: i32, %arg1: i32) -> (i32, i32, i32, i32) {
    %c0_i32 = arith.constant 0 : i32
    %c0_i32_0 = arith.constant 0 : i32
    %c0_i32_1 = arith.constant 0 : i32
    %c0_i32_2 = arith.constant 0 : i32
    return %c0_i32, %arg0, %c0_i32_0, %c0_i32_1 : i32, i32, i32, i32
  }
  func.func @transform_1(%arg0: i32, %arg1: i32) -> (i32, i32, i32) {
    %c0_i32 = arith.constant 0 : i32
    %c0_i32_0 = arith.constant 0 : i32
    %c0_i32_1 = arith.constant 0 : i32
    %c0_i32_2 = arith.constant 0 : i32
    return %c0_i32, %c0_i32_0, %c0_i32_1 : i32, i32, i32
  }
  func.func @transform_2(%arg0: i32, %arg1: i32) -> (i32, i32) {
    %c0_i32 = arith.constant 0 : i32
    %c0_i32_0 = arith.constant 0 : i32
    %c0_i32_1 = arith.constant 0 : i32
    return %c0_i32, %c0_i32_0 : i32, i32
  }
  func.func @transform_3(%arg0: i32, %arg1: i32) -> (i32, i32) {
    %c0_i32 = arith.constant 0 : i32
    %c0_i32_0 = arith.constant 0 : i32
    %c0_i32_1 = arith.constant 0 : i32
    return %c0_i32, %c0_i32_0 : i32, i32
  }
  func.func @transform_4(%arg0: i32, %arg1: i32) -> (i32, i32, i32) {
    %c0_i32 = arith.constant 0 : i32
    %c0_i32_0 = arith.constant 0 : i32
    %c0_i32_1 = arith.constant 0 : i32
    %c0_i32_2 = arith.constant 0 : i32
    return %c0_i32, %c0_i32_0, %c0_i32_1 : i32, i32, i32
  }
  func.func @transform_5(%arg0: i32, %arg1: i32) -> (i32, i32) {
    %c0_i32 = arith.constant 0 : i32
    %c0_i32_0 = arith.constant 0 : i32
    %c0_i32_1 = arith.constant 0 : i32
    return %c0_i32, %c0_i32_0 : i32, i32
  }
  func.func @transform_6(%arg0: i32, %arg1: i32) -> (i32, i32, i32, i32) {
    %c0_i32 = arith.constant 0 : i32
    %c0_i32_0 = arith.constant 0 : i32
    %c0_i32_1 = arith.constant 0 : i32
    return %arg0, %arg1, %c0_i32, %c0_i32_0 : i32, i32, i32, i32
  }
}

</mosaic_0001>

<llo_original>
// kernel: bottleneck_forward.3
$region0: #{bottleneck_forward.3}
  #allocation0 [shape = 'u32[]', space=smem, size = 0x4, offset = 0x4, fixed_abs, tag = 'smem constant byte address 0x4 - core index']
  #allocation1 [shape = 'u32[144,128]{1,0:T(1,128)}', space=vmem, size = 0x12000, scoped, tag = 'internal scratch']
  %s0 = inlined_call_operand.vmem [shape: bf16[128,128], index: 0, kind: input, shape index: {}]
  %s1 = inlined_call_operand.vmem [shape: bf16[128,256], index: 1, kind: input, shape index: {}]
  %s2 = inlined_call_operand.vmem [shape: f32[1,256], index: 2, kind: input, shape index: {}]
  %s3 = inlined_call_operand.vmem [shape: bf16[128,64], index: 3, kind: input, shape index: {}]
  %s4 = inlined_call_operand.vmem [shape: bf16[64,256], index: 4, kind: input, shape index: {}]
  %s5 = inlined_call_operand.vmem [shape: f32[1,256], index: 5, kind: input, shape index: {}]
  %s6 = inlined_call_operand.hbm [shape: f32[128,256], index: 6, kind: output, shape index: {}]
  %s7 = sld [smem:[#allocation0]]
  $region57: #{bottleneck_forward.3} parent=0
    _
  %s9 = ssub.s32 1, %s7
  %s10 = scalar_select 0, %s9, %s7
  $region1: #{bottleneck_forward.3} parent=0
    #allocation2 [shape = 'u8[131072]{0}', space=vmem, size = 0x20000, scoped, tag = 'output window, operand 0']
    #allocation3 [shape = 's32[2]{0}', space=sflag, size = 0x8, scoped, tag = 'scoped memory for bottleneck_forward.3']
    %11 = vsyncpa [#allocation3], 0
    %s12 = scalar_lea.sflag [#allocation3], 1
    %13 = vsyncpa %s12, 0
    loop: start=0, step=1, limit=4
    $region2: #{bottleneck_forward.3} parent=1 // loop_pre_header
      _
    $region3: #{bottleneck_forward.3} parent=1 // loop_header
      %s15 = sphi 0, %s19
      %p16 = scmp.ge.s32.totalorder %s15, 4
      %s22 = sphi 0, %s34
      %s23 = sphi 0, %s30
      %s24 = sphi 0, %s22
      %s25 = sphi 0, %s23
      %s26 = sphi 0, %s24
      %s27 = sphi 0, %s25
      %s37 = sphi 0, %s39
      %s40 = sphi 0, %s37
      %s41 = sphi 0, %s40
      %s57 = sphi 0, %s41
      %s63 = sphi 0, %s65
      %s66 = sphi 0, %s63
      %s67 = sphi 0, %s66
      %s83 = sphi 0, %s67
      %s89 = sphi 0, %s91
      %s92 = sphi 0, %s89
      %s93 = sphi 0, %s92
      %s109 = sphi 0, %s93
      %s115 = sphi 0, %s117
      %s118 = sphi 0, %s115
      %s119 = sphi 0, %s118
      %s135 = sphi 0, %s119
      %s141 = sphi 0, %s143
      %s144 = sphi 0, %s141
      %s145 = sphi 0, %s144
      %s161 = sphi 0, %s145
      %s167 = sphi 0, %s169
      %s170 = sphi 0, %s167
      %s171 = sphi 0, %s170
      %s187 = sphi 0, %s171
      %s195 = sphi 0, %s197
      %s198 = sphi 0, %s195
      %s199 = sphi 0, %s198
      %s215 = sphi 0, %s199
    $region4: #{bottleneck_forward.3} parent=1 // loop_header_branch
      %18 = sbr.rel (%p16) target = $region8
    $region5: #{bottleneck_forward.3} parent=1 // loop_body
      %s20 = ssub.s32 %s15, 1
      %s21 = ssub.s32 %s15, 2
      %s28 = sadd.s32 1, %s23
      %p29 = scmp.ge.s32.totalorder %s28, 1
      %s30 = scalar_select %p29, 0, %s28
      %s31 = sadd.s32 1, %s22
      %s32 = scalar_select %p29, %s31, %s22
      %p33 = scmp.ge.s32.totalorder %s32, 2
      %s34 = scalar_select %p33, 0, %s32
      %s35 = ssub.s32 %s22, %s34
      %p36 = scmp.eq.s32.totalorder %s35, 0
      %s38 = sadd.s32 %s37, 1
      %s39 = scalar_select %p36, %s37, %s38
      %p42 = pneg %p36
      %p43 = scmp.eq.s32.totalorder %s15, 1
      %p44 = por %p42, %p43
      %p45 = scmp.ne.s32.totalorder %s37, %s40
      %p46 = scmp.eq.s32.totalorder %s15, 0
      %p47 = por %p45, %p46
      %p48 = scmp.ne.s32.totalorder %s37, %s40
      %p49 = scmp.eq.s32.totalorder %s20, 1
      %p50 = por %p48, %p49
      %p51 = scmp.ne.s32.totalorder %s40, %s41
      %p52 = scmp.eq.s32.totalorder %s20, 0
      %p53 = por %p51, %p52
      %p54 = scmp.ne.s32.totalorder %s40, %s41
      %p55 = scmp.eq.s32.totalorder %s21, 1
      %p56 = por %p54, %p55
      %p58 = scmp.ne.s32.totalorder %s41, %s57
      %p59 = scmp.eq.s32.totalorder %s21, 0
      %p60 = por %p58, %p59
      %s61 = ssub.s32 %s23, %s30
      %p62 = scmp.eq.s32.totalorder %s61, 0
      %s64 = sadd.s32 %s63, 1
      %s65 = scalar_select %p62, %s63, %s64
      %p68 = pneg %p62
      %p69 = scmp.eq.s32.totalorder %s15, 1
      %p70 = por %p68, %p69
      %p71 = scmp.ne.s32.totalorder %s63, %s66
      %p72 = scmp.eq.s32.totalorder %s15, 0
      %p73 = por %p71, %p72
      %p74 = scmp.ne.s32.totalorder %s63, %s66
      %p75 = scmp.eq.s32.totalorder %s20, 1
      %p76 = por %p74, %p75
      %p77 = scmp.ne.s32.totalorder %s66, %s67
      %p78 = scmp.eq.s32.totalorder %s20, 0
      %p79 = por %p77, %p78
      %p80 = scmp.ne.s32.totalorder %s66, %s67
      %p81 = scmp.eq.s32.totalorder %s21, 1
      %p82 = por %p80, %p81
      %p84 = scmp.ne.s32.totalorder %s67, %s83
      %p85 = scmp.eq.s32.totalorder %s21, 0
      %p86 = por %p84, %p85
      %s87 = ssub.s32 %s23, %s30
      %p88 = scmp.eq.s32.totalorder %s87, 0
      %s90 = sadd.s32 %s89, 1
      %s91 = scalar_select %p88, %s89, %s90
      %p94 = pneg %p88
      %p95 = scmp.eq.s32.totalorder %s15, 1
      %p96 = por %p94, %p95
      %p97 = scmp.ne.s32.totalorder %s89, %s92
      %p98 = scmp.eq.s32.totalorder %s15, 0
      %p99 = por %p97, %p98
      %p100 = scmp.ne.s32.totalorder %s89, %s92
      %p101 = scmp.eq.s32.totalorder %s20, 1
      %p102 = por %p100, %p101
      %p103 = scmp.ne.s32.totalorder %s92, %s93
      %p104 = scmp.eq.s32.totalorder %s20, 0
      %p105 = por %p103, %p104
      %p106 = scmp.ne.s32.totalorder %s92, %s93
      %p107 = scmp.eq.s32.totalorder %s21, 1
      %p108 = por %p106, %p107
      %p110 = scmp.ne.s32.totalorder %s93, %s109
      %p111 = scmp.eq.s32.totalorder %s21, 0
      %p112 = por %p110, %p111
      %s113 = ssub.s32 %s22, %s34
      %p114 = scmp.eq.s32.totalorder %s113, 0
      %s116 = sadd.s32 %s115, 1
      %s117 = scalar_select %p114, %s115, %s116
      %p120 = pneg %p114
      %p121 = scmp.eq.s32.totalorder %s15, 1
      %p122 = por %p120, %p121
      %p123 = scmp.ne.s32.totalorder %s115, %s118
      %p124 = scmp.eq.s32.totalorder %s15, 0
      %p125 = por %p123, %p124
      %p126 = scmp.ne.s32.totalorder %s115, %s118
      %p127 = scmp.eq.s32.totalorder %s20, 1
      %p128 = por %p126, %p127
      %p129 = scmp.ne.s32.totalorder %s118, %s119
      %p130 = scmp.eq.s32.totalorder %s20, 0
      %p131 = por %p129, %p130
      %p132 = scmp.ne.s32.totalorder %s118, %s119
      %p133 = scmp.eq.s32.totalorder %s21, 1
      %p134 = por %p132, %p133
      %p136 = scmp.ne.s32.totalorder %s119, %s135
      %p137 = scmp.eq.s32.totalorder %s21, 0
      %p138 = por %p136, %p137
      %s139 = ssub.s32 %s23, %s30
      %p140 = scmp.eq.s32.totalorder %s139, 0
      %s142 = sadd.s32 %s141, 1
      %s143 = scalar_select %p140, %s141, %s142
      %p146 = pneg %p140
      %p147 = scmp.eq.s32.totalorder %s15, 1
      %p148 = por %p146, %p147
      %p149 = scmp.ne.s32.totalorder %s141, %s144
      %p150 = scmp.eq.s32.totalorder %s15, 0
      %p151 = por %p149, %p150
      %p152 = scmp.ne.s32.totalorder %s141, %s144
      %p153 = scmp.eq.s32.totalorder %s20, 1
      %p154 = por %p152, %p153
      %p155 = scmp.ne.s32.totalorder %s144, %s145
      %p156 = scmp.eq.s32.totalorder %s20, 0
      %p157 = por %p155, %p156
      %p158 = scmp.ne.s32.totalorder %s144, %s145
      %p159 = scmp.eq.s32.totalorder %s21, 1
      %p160 = por %p158, %p159
      %p162 = scmp.ne.s32.totalorder %s145, %s161
      %p163 = scmp.eq.s32.totalorder %s21, 0
      %p164 = por %p162, %p163
      %s165 = ssub.s32 %s23, %s30
      %p166 = scmp.eq.s32.totalorder %s165, 0
      %s168 = sadd.s32 %s167, 1
      %s169 = scalar_select %p166, %s167, %s168
      %p172 = pneg %p166
      %p173 = scmp.eq.s32.totalorder %s15, 1
      %p174 = por %p172, %p173
      %p175 = scmp.ne.s32.totalorder %s167, %s170
      %p176 = scmp.eq.s32.totalorder %s15, 0
      %p177 = por %p175, %p176
      %p178 = scmp.ne.s32.totalorder %s167, %s170
      %p179 = scmp.eq.s32.totalorder %s20, 1
      %p180 = por %p178, %p179
      %p181 = scmp.ne.s32.totalorder %s170, %s171
      %p182 = scmp.eq.s32.totalorder %s20, 0
      %p183 = por %p181, %p182
      %p184 = scmp.ne.s32.totalorder %s170, %s171
      %p185 = scmp.eq.s32.totalorder %s21, 1
      %p186 = por %p184, %p185
      %p188 = scmp.ne.s32.totalorder %s171, %s187
      %p189 = scmp.eq.s32.totalorder %s21, 0
      %p190 = por %p188, %p189
      %s191 = ssub.s32 %s22, %s34
      %s192 = ssub.s32 %s23, %s30
      %s193 = sor.u32 %s191, %s192
      %p194 = scmp.eq.s32.totalorder %s193, 0
      %s196 = sadd.s32 %s195, 1
      %s197 = scalar_select %p194, %s195, %s196
      %p200 = pneg %p194
      %p201 = scmp.eq.s32.totalorder %s15, 1
      %p202 = por %p200, %p201
      %p203 = scmp.ne.s32.totalorder %s195, %s198
      %p204 = scmp.eq.s32.totalorder %s15, 0
      %p205 = por %p203, %p204
      %p206 = scmp.ne.s32.totalorder %s195, %s198
      %p207 = scmp.eq.s32.totalorder %s20, 1
      %p208 = por %p206, %p207
      %p209 = scmp.ne.s32.totalorder %s198, %s199
      %p210 = scmp.eq.s32.totalorder %s20, 0
      %p211 = por %p209, %p210
      %p212 = scmp.ne.s32.totalorder %s198, %s199
      %p213 = scmp.eq.s32.totalorder %s21, 1
      %p214 = por %p212, %p213
      %p216 = scmp.ne.s32.totalorder %s199, %s215
      %p217 = scmp.eq.s32.totalorder %s21, 0
      %p218 = por %p216, %p217
      %p219 = scmp.le.s32.totalorder 1, %s15
      %p220 = scmp.lt.s32.totalorder %s15, 3
      %p221 = pnand %p219, %p220
      %p222 = pneg %p221
      // Predicated region
      $region9: #{bottleneck_forward.3} parent=5 // pred_check
        _
      $region10: #{bottleneck_forward.3} parent=5 // pred_check_branch
        %224 = sbr.rel (%p221) target = $region12
      $region11: #{bottleneck_forward.3} parent=5 // pred_region
        %s225 = ssub.s32 %s15, 1
        // Predicated region
        $region13: #{bottleneck_forward.3} parent=11 // pred_check
          %p226 = pneg %p79
        $region14: #{bottleneck_forward.3} parent=11 // pred_check_branch
          %228 = sbr.rel (%p226) target = $region16
        $region15: #{bottleneck_forward.3} parent=11 // pred_region
          %s229 = smul.u32 2, %s25
          %p230 = scmp.lt.s32.totalorder %s229, 1
          %s231 = scalar_select %p230, %s229, 1
          %s232 = smul.addr %s231, 4
          %s233 = scalar_lea.vmem %s1, %s232
          %s234 = smul.u32 2, %s25
        $region16: #{bottleneck_forward.3} parent=11 // pred_fallthru
          _
        // Predicated region
        $region17: #{bottleneck_forward.3} parent=11 // pred_check
          %p235 = pneg %p105
        $region18: #{bottleneck_forward.3} parent=11 // pred_check_branch
          %237 = sbr.rel (%p235) target = $region20
        $region19: #{bottleneck_forward.3} parent=11 // pred_region
          %s238 = smul.u32 2, %s25
          %p239 = scmp.lt.s32.totalorder %s238, 1
          %s240 = scalar_select %p239, %s238, 1
          %s241 = scalar_lea.vmem %s2, %s240
          %s242 = smul.u32 2, %s25
        $region20: #{bottleneck_forward.3} parent=11 // pred_fallthru
          _
        // Predicated region
        $region21: #{bottleneck_forward.3} parent=11 // pred_check
          %p243 = pneg %p157
        $region22: #{bottleneck_forward.3} parent=11 // pred_check_branch
          %245 = sbr.rel (%p243) target = $region24
        $region23: #{bottleneck_forward.3} parent=11 // pred_region
          %s246 = smul.u32 2, %s25
          %p247 = scmp.lt.s32.totalorder %s246, 1
          %s248 = scalar_select %p247, %s246, 1
          %s249 = smul.addr %s248, 4
          %s250 = scalar_lea.vmem %s4, %s249
          %s251 = smul.u32 2, %s25
        $region24: #{bottleneck_forward.3} parent=11 // pred_fallthru
          _
        // Predicated region
        $region25: #{bottleneck_forward.3} parent=11 // pred_check
          %p252 = pneg %p183
        $region26: #{bottleneck_forward.3} parent=11 // pred_check_branch
          %254 = sbr.rel (%p252) target = $region28
        $region27: #{bottleneck_forward.3} parent=11 // pred_region
          %s255 = smul.u32 2, %s25
          %p256 = scmp.lt.s32.totalorder %s255, 1
          %s257 = scalar_select %p256, %s255, 1
          %s258 = scalar_lea.vmem %s5, %s257
          %s259 = smul.u32 2, %s25
        $region28: #{bottleneck_forward.3} parent=11 // pred_fallthru
          _
      $region12: #{bottleneck_forward.3} parent=5 // pred_fallthru
        _
      %p260 = scmp.lt.s32.totalorder %s15, 2
      // Predicated region
      $region29: #{bottleneck_forward.3} parent=5 // pred_check
        %p261 = pneg %p260
      $region30: #{bottleneck_forward.3} parent=5 // pred_check_branch
        %263 = sbr.rel (%p261) target = $region32
      $region31: #{bottleneck_forward.3} parent=5 // pred_region
        // Predicated region
        $region33: #{bottleneck_forward.3} parent=31 // pred_check
          %p264 = pneg %p47
        $region34: #{bottleneck_forward.3} parent=31 // pred_check_branch
          %266 = sbr.rel (%p264) target = $region36
        $region35: #{bottleneck_forward.3} parent=31 // pred_region
          %s267 = smul.u32 8, %s22
          %p268 = scmp.lt.s32.totalorder %s267, 15
          %s269 = scalar_select %p268, %s267, 15
          %s270 = smul.addr %s269, 4
          %s271 = scalar_lea.vmem %s0, %s270
          %s272 = smul.u32 8, %s22
        $region36: #{bottleneck_forward.3} parent=31 // pred_fallthru
          _
        // Predicated region
        $region37: #{bottleneck_forward.3} parent=31 // pred_check
          %p273 = pneg %p125
        $region38: #{bottleneck_forward.3} parent=31 // pred_check_branch
          %275 = sbr.rel (%p273) target = $region40
        $region39: #{bottleneck_forward.3} parent=31 // pred_region
          %s276 = smul.u32 8, %s22
          %p277 = scmp.lt.s32.totalorder %s276, 15
          %s278 = scalar_select %p277, %s276, 15
          %s279 = smul.addr %s278, 4
          %s280 = scalar_lea.vmem %s3, %s279
          %s281 = smul.u32 8, %s22
        $region40: #{bottleneck_forward.3} parent=31 // pred_fallthru
          _
      $region32: #{bottleneck_forward.3} parent=5 // pred_fallthru
        _
      %p282 = scmp.le.s32.totalorder 1, %s15
      %p283 = scmp.lt.s32.totalorder %s15, 3
      %p284 = pnand %p282, %p283
      %p285 = pneg %p284
      // Predicated region
      $region41: #{bottleneck_forward.3} parent=5 // pred_check
        _
      $region42: #{bottleneck_forward.3} parent=5 // pred_check_branch
        %287 = sbr.rel (%p284) target = $region44
      $region43: #{bottleneck_forward.3} parent=5 // pred_region
        %s288 = ssub.s32 %s15, 1
        %s289 = smul.u32 8, %s24
        %p290 = scmp.lt.s32.totalorder %s289, 15
        %s291 = scalar_select %p290, %s289, 15
        %s292 = smul.addr %s291, 4
        %s293 = scalar_lea.vmem %s0, %s292
        %p294 = pneg %p53
        %p295 = pneg %p50
        %s296 = smul.u32 2, %s25
        %p297 = scmp.lt.s32.totalorder %s296, 1
        %s298 = scalar_select %p297, %s296, 1
        %s299 = smul.addr %s298, 4
        %s300 = scalar_lea.vmem %s1, %s299
        %p301 = pneg %p79
        %p302 = pneg %p76
        %s303 = smul.u32 2, %s25
        %p304 = scmp.lt.s32.totalorder %s303, 1
        %s305 = scalar_select %p304, %s303, 1
        %s306 = scalar_lea.vmem %s2, %s305
        %p307 = pneg %p105
        %p308 = pneg %p102
        %s309 = smul.u32 8, %s24
        %p310 = scmp.lt.s32.totalorder %s309, 15
        %s311 = scalar_select %p310, %s309, 15
        %s312 = smul.addr %s311, 4
        %s313 = scalar_lea.vmem %s3, %s312
        %p314 = pneg %p131
        %p315 = pneg %p128
        %s316 = smul.u32 2, %s25
        %p317 = scmp.lt.s32.totalorder %s316, 1
        %s318 = scalar_select %p317, %s316, 1
        %s319 = smul.addr %s318, 4
        %s320 = scalar_lea.vmem %s4, %s319
        %p321 = pneg %p157
        %p322 = pneg %p154
        %s323 = smul.u32 2, %s25
        %p324 = scmp.lt.s32.totalorder %s323, 1
        %s325 = scalar_select %p324, %s323, 1
        %s326 = scalar_lea.vmem %s5, %s325
        %p327 = pneg %p183
        %p328 = pneg %p180
        %p329 = pneg %p211
        %p330 = pneg %p208
        %s331 = sand.u32 %s198, 1
        %s332 = scalar_lea.sflag [#allocation3], %s331
        %s333 = sand.u32 %s198, 1
        %s334 = smul.addr %s333, 128
        %s335 = scalar_lea.vmem [#allocation2], %s334
        %s336 = smul.u32 8, %s24
        %p337 = scmp.lt.s32.totalorder %s336, 15
        %s338 = scalar_select %p337, %s336, 15
        %s339 = smul.addr %s338, 4
        %s340 = scalar_lea.vmem %s0, %s339
        %s341 = smul.u32 8, %s24
        %s342 = smul.u32 2, %s25
        %p343 = scmp.lt.s32.totalorder %s342, 1
        %s344 = scalar_select %p343, %s342, 1
        %s345 = smul.addr %s344, 4
        %s346 = scalar_lea.vmem %s1, %s345
        %s347 = smul.u32 2, %s25
        %s348 = smul.u32 2, %s25
        %p349 = scmp.lt.s32.totalorder %s348, 1
        %s350 = scalar_select %p349, %s348, 1
        %s351 = scalar_lea.vmem %s2, %s350
        %s352 = smul.u32 2, %s25
        %s353 = smul.u32 8, %s24
        %p354 = scmp.lt.s32.totalorder %s353, 15
        %s355 = scalar_select %p354, %s353, 15
        %s356 = smul.addr %s355, 4
        %s357 = scalar_lea.vmem %s3, %s356
        %s358 = smul.u32 8, %s24
        %s359 = smul.u32 2, %s25
        %p360 = scmp.lt.s32.totalorder %s359, 1
        %s361 = scalar_select %p360, %s359, 1
        %s362 = smul.addr %s361, 4
        %s363 = scalar_lea.vmem %s4, %s362
        %s364 = smul.u32 2, %s25
        %s365 = smul.u32 2, %s25
        %p366 = scmp.lt.s32.totalorder %s365, 1
        %s367 = scalar_select %p366, %s365, 1
        %s368 = scalar_lea.vmem %s5, %s367
        %s369 = smul.u32 2, %s25
        %s370 = smul.u32 8, %s24
        %s371 = smul.u32 2, %s25
        %v373 = vld [vmem:[%s340] sm:$0xf]
        %v374 = vld [vmem:[%s340 + $0x4] sm:$0xf]
        %v375 = vld [vmem:[%s340 + $0x8] sm:$0xf]
        %v376 = vld [vmem:[%s340 + $0xc] sm:$0xf]
        %v377 = vld [vmem:[%s340 + $0x10] sm:$0xf]
        %v378 = vld [vmem:[%s340 + $0x14] sm:$0xf]
        %v379 = vld [vmem:[%s340 + $0x18] sm:$0xf]
        %v380 = vld [vmem:[%s340 + $0x1c] sm:$0xf]
        %v381 = vld [vmem:[%s346] sm:$0xff]
        %v382 = vld [vmem:[%s346 + $0x8] sm:$0xff]
        %v383 = vld [vmem:[%s346 + $0x10] sm:$0xff]
        %v384 = vld [vmem:[%s346 + $0x18] sm:$0xff]
        %v385 = vld [vmem:[%s346 + $0x20] sm:$0xff]
        %v386 = vld [vmem:[%s346 + $0x28] sm:$0xff]
        %v387 = vld [vmem:[%s346 + $0x30] sm:$0xff]
        %v388 = vld [vmem:[%s346 + $0x38] sm:$0xff]
        %v389 = vld [vmem:[%s346 + $0x40] sm:$0xff]
        %v390 = vld [vmem:[%s346 + $0x48] sm:$0xff]
        %v391 = vld [vmem:[%s346 + $0x50] sm:$0xff]
        %v392 = vld [vmem:[%s346 + $0x58] sm:$0xff]
        %v393 = vld [vmem:[%s346 + $0x60] sm:$0xff]
        %v394 = vld [vmem:[%s346 + $0x68] sm:$0xff]
        %v395 = vld [vmem:[%s346 + $0x70] sm:$0xff]
        %v396 = vld [vmem:[%s346 + $0x78] sm:$0xff]
        %v397 = vld [vmem:[%s351] sm:$0x3]
        %v399 = vlaneseq
        %v400 = vshrl.u32 %v399, 7
        %v401 = vsub.s32 0, %v400
        %v402 = vrot.slane %v397, %v401
        %v403 = vlaneseq
        %v404 = vshrl.u32 %v403, 7
        %v405 = vsub.s32 1, %v404
        %v406 = vrot.slane %v397, %v405
        %v417 = vunpack.c.l.b16 %v373
        %v418 = vunpack.c.l.b16 %v374
        %v419 = vunpack.c.l.b16 %v375
        %v420 = vunpack.c.l.b16 %v376
        %v421 = vunpack.c.l.b16 %v377
        %v422 = vunpack.c.l.b16 %v378
        %v423 = vunpack.c.l.b16 %v379
        %v424 = vunpack.c.l.b16 %v380
        %v425 = vpack.c.b16 %v418, %v417
        %v426 = vpack.c.b16 %v420, %v419
        %v427 = vpack.c.b16 %v422, %v421
        %v428 = vpack.c.b16 %v424, %v423
        %v449 = vunpack.c.l.b16 %v381
        %v450 = vunpack.c.h.b16 %v381
        %v451 = vunpack.c.l.b16 %v382
        %v452 = vunpack.c.h.b16 %v382
        %v453 = vunpack.c.l.b16 %v383
        %v454 = vunpack.c.h.b16 %v383
        %v455 = vunpack.c.l.b16 %v384
        %v456 = vunpack.c.h.b16 %v384
        %v457 = vunpack.c.l.b16 %v385
        %v458 = vunpack.c.h.b16 %v385
        %v459 = vunpack.c.l.b16 %v386
        %v460 = vunpack.c.h.b16 %v386
        %v461 = vunpack.c.l.b16 %v387
        %v462 = vunpack.c.h.b16 %v387
        %v463 = vunpack.c.l.b16 %v388
        %v464 = vunpack.c.h.b16 %v388
        %v465 = vunpack.c.l.b16 %v389
        %v466 = vunpack.c.h.b16 %v389
        %v467 = vunpack.c.l.b16 %v390
        %v468 = vunpack.c.h.b16 %v390
        %v469 = vunpack.c.l.b16 %v391
        %v470 = vunpack.c.h.b16 %v391
        %v471 = vunpack.c.l.b16 %v392
        %v472 = vunpack.c.h.b16 %v392
        %v473 = vunpack.c.l.b16 %v393
        %v474 = vunpack.c.h.b16 %v393
        %v475 = vunpack.c.l.b16 %v394
        %v476 = vunpack.c.h.b16 %v394
        %v477 = vunpack.c.l.b16 %v395
        %v478 = vunpack.c.h.b16 %v395
        %v479 = vunpack.c.l.b16 %v396
        %v480 = vunpack.c.h.b16 %v396
        %v481 = vpack.c.b16 %v451, %v449
        %v482 = vpack.c.b16 %v452, %v450
        %v483 = vpack.c.b16 %v455, %v453
        %v484 = vpack.c.b16 %v456, %v454
        %v485 = vpack.c.b16 %v459, %v457
        %v486 = vpack.c.b16 %v460, %v458
        %v487 = vpack.c.b16 %v463, %v461
        %v488 = vpack.c.b16 %v464, %v462
        %v489 = vpack.c.b16 %v467, %v465
        %v490 = vpack.c.b16 %v468, %v466
        %v491 = vpack.c.b16 %v471, %v469
        %v492 = vpack.c.b16 %v472, %v470
        %v493 = vpack.c.b16 %v475, %v473
        %v494 = vpack.c.b16 %v476, %v474
        %v495 = vpack.c.b16 %v479, %v477
        %v496 = vpack.c.b16 %v480, %v478
        %513 = vmatprep.subr.bf16.mxu0 %v482
        %514 = vmatpush1.bf16.msra.mxu0 %v481
        %515 = vmatprep.subr.bf16.mxu0 %v484
        %516 = vmatpush1.bf16.msra.mxu0 %v483
        %517 = vmatprep.subr.bf16.mxu0 %v486
        %518 = vmatpush1.bf16.msra.mxu0 %v485
        %519 = vmatprep.subr.bf16.mxu0 %v488
        %520 = vmatpush1.bf16.msra.mxu0 %v487
        %521 = vmatprep.subr.bf16.mxu0 %v490
        %522 = vmatpush1.bf16.msra.mxu0 %v489
        %523 = vmatprep.subr.bf16.mxu0 %v492
        %524 = vmatpush1.bf16.msra.mxu0 %v491
        %525 = vmatprep.subr.bf16.mxu0 %v494
        %526 = vmatpush1.bf16.msra.mxu0 %v493
        %527 = vmatprep.subr.bf16.mxu0 %v496
        %528 = vmatpush1.bf16.msra.mxu0 %v495
        %529 = vmatprep.subr.bf16.mxu0 0
        %530 = vmatpush1.bf16.msra.mxu0 0
        %531 = vmatprep.subr.bf16.mxu0 0
        %532 = vmatpush1.bf16.msra.mxu0 0
        %533 = vmatprep.subr.bf16.mxu0 0
        %534 = vmatpush1.bf16.msra.mxu0 0
        %535 = vmatprep.subr.bf16.mxu0 0
        %536 = vmatpush1.bf16.msra.mxu0 0
        %537 = vmatprep.subr.bf16.mxu0 0
        %538 = vmatpush1.bf16.msra.mxu0 0
        %539 = vmatprep.subr.bf16.mxu0 0
        %540 = vmatpush1.bf16.msra.mxu0 0
        %541 = vmatprep.subr.bf16.mxu0 0
        %542 = vmatpush1.bf16.msra.mxu0 0
        %543 = vmatprep.subr.bf16.mxu0 0
        %544 = vmatpush1.bf16.msra.mxu0 0
        %545 = vmatprep.mubr.bf16.mxu0 0
        %546 = vmatmul.mubr.bf16.gmra.mrb[0].mxu0 %v425
        %v547 = vpop.f32.mrb[0].mxu0
        %v548 = vadd.f32 %v402, %v547
        %v549 = vpop.f32.mrb[0].mxu0
        %v550 = vadd.f32 %v406, %v549
        %v551 = vpop.f32.mrb[0].mxu0
        %v552 = vadd.f32 %v402, %v551
        %v553 = vpop.f32.mrb[0].mxu0
        %v554 = vadd.f32 %v406, %v553
        %555 = vmatprep.mubr.bf16.mxu0 0
        %556 = vmatmul.mubr.bf16.gmra.mrb[0].mxu0 %v426
        %v557 = vpop.f32.mrb[0].mxu0
        %v558 = vadd.f32 %v402, %v557
        %v559 = vpop.f32.mrb[0].mxu0
        %v560 = vadd.f32 %v406, %v559
        %v561 = vpop.f32.mrb[0].mxu0
        %v562 = vadd.f32 %v402, %v561
        %v563 = vpop.f32.mrb[0].mxu0
        %v564 = vadd.f32 %v406, %v563
        %565 = vmatprep.mubr.bf16.mxu0 0
        %566 = vmatmul.mubr.bf16.gmra.mrb[0].mxu0 %v427
        %v567 = vpop.f32.mrb[0].mxu0
        %v568 = vadd.f32 %v402, %v567
        %v569 = vpop.f32.mrb[0].mxu0
        %v570 = vadd.f32 %v406, %v569
        %v571 = vpop.f32.mrb[0].mxu0
        %v572 = vadd.f32 %v402, %v571
        %v573 = vpop.f32.mrb[0].mxu0
        %v574 = vadd.f32 %v406, %v573
        %575 = vmatprep.mubr.bf16.mxu0 0
        %576 = vmatmul.mubr.bf16.gmra.mrb[0].mxu0 %v428
        %v577 = vpop.f32.mrb[0].mxu0
        %v578 = vadd.f32 %v402, %v577
        %v579 = vpop.f32.mrb[0].mxu0
        %v580 = vadd.f32 %v406, %v579
        %v581 = vpop.f32.mrb[0].mxu0
        %v582 = vadd.f32 %v402, %v581
        %v583 = vpop.f32.mrb[0].mxu0
        %v584 = vadd.f32 %v406, %v583
        %585 = vdwg.mxu0
        %v586 = vld [vmem:[%s357] sm:$0xf]
        %v587 = vld [vmem:[%s357 + $0x4] sm:$0xf]
        %v588 = vld [vmem:[%s357 + $0x8] sm:$0xf]
        %v589 = vld [vmem:[%s357 + $0xc] sm:$0xf]
        %v590 = vld [vmem:[%s357 + $0x10] sm:$0xf]
        %v591 = vld [vmem:[%s357 + $0x14] sm:$0xf]
        %v592 = vld [vmem:[%s357 + $0x18] sm:$0xf]
        %v593 = vld [vmem:[%s357 + $0x1c] sm:$0xf]
        %v594 = vld [vmem:[%s363] sm:$0xff]
        %v595 = vld [vmem:[%s363 + $0x8] sm:$0xff]
        %v596 = vld [vmem:[%s363 + $0x10] sm:$0xff]
        %v597 = vld [vmem:[%s363 + $0x18] sm:$0xff]
        %v598 = vld [vmem:[%s363 + $0x20] sm:$0xff]
        %v599 = vld [vmem:[%s363 + $0x28] sm:$0xff]
        %v600 = vld [vmem:[%s363 + $0x30] sm:$0xff]
        %v601 = vld [vmem:[%s363 + $0x38] sm:$0xff]
        %v610 = vunpack.c.l.b16 %v586
        %v611 = vunpack.c.l.b16 %v587
        %v612 = vunpack.c.l.b16 %v588
        %v613 = vunpack.c.l.b16 %v589
        %v614 = vunpack.c.l.b16 %v590
        %v615 = vunpack.c.l.b16 %v591
        %v616 = vunpack.c.l.b16 %v592
        %v617 = vunpack.c.l.b16 %v593
        %v618 = vpack.c.b16 %v611, %v610
        %v619 = vpack.c.b16 %v613, %v612
        %v620 = vpack.c.b16 %v615, %v614
        %v621 = vpack.c.b16 %v617, %v616
        %v630 = vunpack.c.l.b16 %v594
        %v631 = vunpack.c.h.b16 %v594
        %v632 = vunpack.c.l.b16 %v595
        %v633 = vunpack.c.h.b16 %v595
        %v634 = vunpack.c.l.b16 %v596
        %v635 = vunpack.c.h.b16 %v596
        %v636 = vunpack.c.l.b16 %v597
        %v637 = vunpack.c.h.b16 %v597
        %v638 = vunpack.c.l.b16 %v598
        %v639 = vunpack.c.h.b16 %v598
        %v640 = vunpack.c.l.b16 %v599
        %v641 = vunpack.c.h.b16 %v599
        %v642 = vunpack.c.l.b16 %v600
        %v643 = vunpack.c.h.b16 %v600
        %v644 = vunpack.c.l.b16 %v601
        %v645 = vunpack.c.h.b16 %v601
        %v646 = vpack.c.b16 %v632, %v630
        %v647 = vpack.c.b16 %v633, %v631
        %v648 = vpack.c.b16 %v636, %v634
        %v649 = vpack.c.b16 %v637, %v635
        %v650 = vpack.c.b16 %v640, %v638
        %v651 = vpack.c.b16 %v641, %v639
        %v652 = vpack.c.b16 %v644, %v642
        %v653 = vpack.c.b16 %v645, %v643
        %vm662 = vcmask 523264
        %v664 = vsel %vm662, %v618, 0
        %v667 = vsel %vm662, %v619, 0
        %v670 = vsel %vm662, %v620, 0
        %v673 = vsel %vm662, %v621, 0
        %675 = vmatprep.subr.bf16.mxu0 %v647
        %676 = vmatpush1.bf16.msra.mxu0 %v646
        %677 = vmatprep.subr.bf16.mxu0 %v649
        %678 = vmatpush1.bf16.msra.mxu0 %v648
        %679 = vmatprep.subr.bf16.mxu0 %v651
        %680 = vmatpush1.bf16.msra.mxu0 %v650
        %681 = vmatprep.subr.bf16.mxu0 %v653
        %682 = vmatpush1.bf16.msra.mxu0 %v652
        %683 = vmatprep.subr.bf16.mxu0 0
        %684 = vmatpush1.bf16.msra.mxu0 0
        %685 = vmatprep.subr.bf16.mxu0 0
        %686 = vmatpush1.bf16.msra.mxu0 0
        %687 = vmatprep.subr.bf16.mxu0 0
        %688 = vmatpush1.bf16.msra.mxu0 0
        %689 = vmatprep.subr.bf16.mxu0 0
        %690 = vmatpush1.bf16.msra.mxu0 0
        %691 = vmatprep.subr.bf16.mxu0 0
        %692 = vmatpush1.bf16.msra.mxu0 0
        %693 = vmatprep.subr.bf16.mxu0 0
        %694 = vmatpush1.bf16.msra.mxu0 0
        %695 = vmatprep.subr.bf16.mxu0 0
        %696 = vmatpush1.bf16.msra.mxu0 0
        %697 = vmatprep.subr.bf16.mxu0 0
        %698 = vmatpush1.bf16.msra.mxu0 0
        %699 = vmatprep.subr.bf16.mxu0 0
        %700 = vmatpush1.bf16.msra.mxu0 0
        %701 = vmatprep.subr.bf16.mxu0 0
        %702 = vmatpush1.bf16.msra.mxu0 0
        %703 = vmatprep.subr.bf16.mxu0 0
        %704 = vmatpush1.bf16.msra.mxu0 0
        %705 = vmatprep.subr.bf16.mxu0 0
        %706 = vmatpush1.bf16.msra.mxu0 0
        %707 = vmatprep.mubr.bf16.mxu0 0
        %708 = vmatmul.mubr.bf16.gmra.mrb[0].mxu0 %v664
        %v709 = vpop.f32.mrb[0].mxu0
        %v710 = vadd.f32 0.0, %v709
        %v711 = vpop.f32.mrb[0].mxu0
        %v712 = vadd.f32 0.0, %v711
        %v713 = vpop.f32.mrb[0].mxu0
        %v714 = vadd.f32 0.0, %v713
        %v715 = vpop.f32.mrb[0].mxu0
        %v716 = vadd.f32 0.0, %v715
        %717 = vmatprep.mubr.bf16.mxu0 0
        %718 = vmatmul.mubr.bf16.gmra.mrb[0].mxu0 %v667
        %v719 = vpop.f32.mrb[0].mxu0
        %v720 = vadd.f32 0.0, %v719
        %v721 = vpop.f32.mrb[0].mxu0
        %v722 = vadd.f32 0.0, %v721
        %v723 = vpop.f32.mrb[0].mxu0
        %v724 = vadd.f32 0.0, %v723
        %v725 = vpop.f32.mrb[0].mxu0
        %v726 = vadd.f32 0.0, %v725
        %727 = vmatprep.mubr.bf16.mxu0 0
        %728 = vmatmul.mubr.bf16.gmra.mrb[0].mxu0 %v670
        %v729 = vpop.f32.mrb[0].mxu0
        %v730 = vadd.f32 0.0, %v729
        %v731 = vpop.f32.mrb[0].mxu0
        %v732 = vadd.f32 0.0, %v731
        %v733 = vpop.f32.mrb[0].mxu0
        %v734 = vadd.f32 0.0, %v733
        %v735 = vpop.f32.mrb[0].mxu0
        %v736 = vadd.f32 0.0, %v735
        %737 = vmatprep.mubr.bf16.mxu0 0
        %738 = vmatmul.mubr.bf16.gmra.mrb[0].mxu0 %v673
        %v739 = vpop.f32.mrb[0].mxu0
        %v740 = vadd.f32 0.0, %v739
        %v741 = vpop.f32.mrb[0].mxu0
        %v742 = vadd.f32 0.0, %v741
        %v743 = vpop.f32.mrb[0].mxu0
        %v744 = vadd.f32 0.0, %v743
        %v745 = vpop.f32.mrb[0].mxu0
        %v746 = vadd.f32 0.0, %v745
        %747 = vdwg.mxu0
        %v748 = vadd.f32 %v548, %v710
        %v749 = vadd.f32 %v550, %v712
        %v750 = vadd.f32 %v552, %v714
        %v751 = vadd.f32 %v554, %v716
        %v752 = vadd.f32 %v558, %v720
        %v753 = vadd.f32 %v560, %v722
        %v754 = vadd.f32 %v562, %v724
        %v755 = vadd.f32 %v564, %v726
        %v756 = vadd.f32 %v568, %v730
        %v757 = vadd.f32 %v570, %v732
        %v758 = vadd.f32 %v572, %v734
        %v759 = vadd.f32 %v574, %v736
        %v760 = vadd.f32 %v578, %v740
        %v761 = vadd.f32 %v580, %v742
        %v762 = vadd.f32 %v582, %v744
        %v763 = vadd.f32 %v584, %v746
        %v764 = vld [vmem:[%s368] sm:$0x3]
        %v766 = vlaneseq
        %v767 = vshrl.u32 %v766, 7
        %v768 = vsub.s32 0, %v767
        %v769 = vrot.slane %v764, %v768
        %v770 = vlaneseq
        %v771 = vshrl.u32 %v770, 7
        %v772 = vsub.s32 1, %v771
        %v773 = vrot.slane %v764, %v772
        %v776 = vadd.f32 %v748, %v769
        %v777 = vadd.f32 %v749, %v773
        %v778 = vadd.f32 %v750, %v769
        %v779 = vadd.f32 %v751, %v773
        %v780 = vadd.f32 %v752, %v769
        %v781 = vadd.f32 %v753, %v773
        %v782 = vadd.f32 %v754, %v769
        %v783 = vadd.f32 %v755, %v773
        %v784 = vadd.f32 %v756, %v769
        %v785 = vadd.f32 %v757, %v773
        %v786 = vadd.f32 %v758, %v769
        %v787 = vadd.f32 %v759, %v773
        %v788 = vadd.f32 %v760, %v769
        %v789 = vadd.f32 %v761, %v773
        %v790 = vadd.f32 %v762, %v769
        %v791 = vadd.f32 %v763, %v773
        %v792 = vmax.f32 %v776, 0.0
        %v793 = vmax.f32 %v777, 0.0
        %v794 = vmax.f32 %v778, 0.0
        %v795 = vmax.f32 %v779, 0.0
        %v796 = vmax.f32 %v780, 0.0
        %v797 = vmax.f32 %v781, 0.0
        %v798 = vmax.f32 %v782, 0.0
        %v799 = vmax.f32 %v783, 0.0
        %v800 = vmax.f32 %v784, 0.0
        %v801 = vmax.f32 %v785, 0.0
        %v802 = vmax.f32 %v786, 0.0
        %v803 = vmax.f32 %v787, 0.0
        %v804 = vmax.f32 %v788, 0.0
        %v805 = vmax.f32 %v789, 0.0
        %v806 = vmax.f32 %v790, 0.0
        %v807 = vmax.f32 %v791, 0.0
        %808 = vst [vmem:[%s335] sm:$0xff] %v792
        %809 = vst [vmem:[%s335 + $0x8] sm:$0xff] %v793
        %810 = vst [vmem:[%s335 + $0x10] sm:$0xff] %v794
        %811 = vst [vmem:[%s335 + $0x18] sm:$0xff] %v795
        %812 = vst [vmem:[%s335 + $0x20] sm:$0xff] %v796
        %813 = vst [vmem:[%s335 + $0x28] sm:$0xff] %v797
        %814 = vst [vmem:[%s335 + $0x30] sm:$0xff] %v798
        %815 = vst [vmem:[%s335 + $0x38] sm:$0xff] %v799
        %816 = vst [vmem:[%s335 + $0x40] sm:$0xff] %v800
        %817 = vst [vmem:[%s335 + $0x48] sm:$0xff] %v801
        %818 = vst [vmem:[%s335 + $0x50] sm:$0xff] %v802
        %819 = vst [vmem:[%s335 + $0x58] sm:$0xff] %v803
        %820 = vst [vmem:[%s335 + $0x60] sm:$0xff] %v804
        %821 = vst [vmem:[%s335 + $0x68] sm:$0xff] %v805
        %822 = vst [vmem:[%s335 + $0x70] sm:$0xff] %v806
        %823 = vst [vmem:[%s335 + $0x78] sm:$0xff] %v807
        %s824 = sand.u32 %s198, 1
        %s825 = scalar_lea.sflag [#allocation3], %s824
        %s826 = sand.u32 %s198, 1
        %s827 = smul.addr %s826, 128
        %s828 = scalar_lea.vmem [#allocation2], %s827
        // Predicated region
        $region45: #{bottleneck_forward.3} parent=43 // pred_check
          %p829 = pneg %p208
        $region46: #{bottleneck_forward.3} parent=43 // pred_check_branch
          %831 = sbr.rel (%p829) target = $region48
        $region47: #{bottleneck_forward.3} parent=43 // pred_region
          %s832 = smul.u32 8, %s24
          %s833 = smul.u32 2, %s25
          %s835 = ssub.s32 2048, 2048
          %836 = vsyncadd %s825, %s835
          %s837 = smul.addr %s832, 2
          %s838 = sadd.s32 %s833, %s837
          %s839 = smul.addr %s838, 128
          %s840 = scalar_lea.hbm %s6, %s839
          %s841 = sshll.u32 %s828, 4
          %s842 = int_to_ptr.vmem [resolvable:$true] %s841
          %847 = dma.vmem_to_hbm [thread:$0]  %s842, 2048, %s840, %s825, 256, 256, 16
        $region48: #{bottleneck_forward.3} parent=43 // pred_fallthru
          _
      $region44: #{bottleneck_forward.3} parent=5 // pred_fallthru
        _
      %p848 = scmp.le.s32.totalorder 2, %s15
      // Predicated region
      $region49: #{bottleneck_forward.3} parent=5 // pred_check
        %p849 = pneg %p848
      $region50: #{bottleneck_forward.3} parent=5 // pred_check_branch
        %851 = sbr.rel (%p849) target = $region52
      $region51: #{bottleneck_forward.3} parent=5 // pred_region
        %s852 = ssub.s32 %s15, 2
        // Predicated region
        $region53: #{bottleneck_forward.3} parent=51 // pred_check
          %p853 = pneg %p214
        $region54: #{bottleneck_forward.3} parent=51 // pred_check_branch
          %855 = sbr.rel (%p853) target = $region56
        $region55: #{bottleneck_forward.3} parent=51 // pred_region
          %s856 = sand.u32 %s199, 1
          %s857 = scalar_lea.sflag [#allocation3], %s856
          %s858 = sand.u32 %s199, 1
          %s859 = smul.addr %s858, 128
          %s860 = scalar_lea.vmem [#allocation2], %s859
          %861 = dma.done %s857, 2048
        $region56: #{bottleneck_forward.3} parent=51 // pred_fallthru
          _
      $region52: #{bottleneck_forward.3} parent=5 // pred_fallthru
        _
    $region6: #{bottleneck_forward.3} parent=1 // loop_footer
      %s19 = sadd.s32 1, %s15
    $region7: #{bottleneck_forward.3} parent=1 // loop_footer_branch
      %14 = sbr.rel target = $region3
    $region8: #{bottleneck_forward.3} parent=1 // loop_exit
      _
    %862 = vsyncpa [#allocation3], 1
    %s863 = scalar_lea.sflag [#allocation3], 1
    %864 = vsyncpa %s863, 1

// kernel: bottleneck_forward.2
$region0: #{bottleneck_forward.2}
  #allocation0 [shape = 'u32[]', space=smem, size = 0x4, offset = 0x4, fixed_abs, tag = 'smem constant byte address 0x4 - core index']
  #allocation1 [shape = 'u32[144,128]{1,0:T(1,128)}', space=vmem, size = 0x12000, scoped, tag = 'internal scratch']
  %s0 = inlined_call_operand.vmem [shape: bf16[4,2,144,64], index: 0, kind: input, shape index: {}]
  %s1 = inlined_call_operand.vmem [shape: f32[4,144,1], index: 1, kind: input, shape index: {}]
  %s2 = inlined_call_operand.vmem [shape: bf16[64,128], index: 2, kind: input, shape index: {}]
  %s3 = inlined_call_operand.vmem [shape: f32[1,128], index: 3, kind: input, shape index: {}]
  %s4 = inlined_call_operand.vmem [shape: bf16[9,128,128], index: 4, kind: input, shape index: {}]
  %s5 = inlined_call_operand.vmem [shape: f32[1,128], index: 5, kind: input, shape index: {}]
  %s6 = inlined_call_operand.vmem [shape: bf16[2,8,8,128], index: 6, kind: output, shape index: {}]
  %s7 = sld [smem:[#allocation0]]
  $region98: #{bottleneck_forward.2} parent=0
    _
  %s9 = ssub.s32 1, %s7
  %s10 = scalar_select 0, %s9, %s7
  $region1: #{bottleneck_forward.2} parent=0
    #allocation2 [shape = 'u8[294912]{0}', space=vmem, size = 0x48000, scoped, tag = 'input window, operand 0']
    loop: start=0, step=1, limit=4
    $region2: #{bottleneck_forward.2} parent=1 // loop_pre_header
      _
    $region3: #{bottleneck_forward.2} parent=1 // loop_header
      %s12 = sphi 0, %s16
      %p13 = scmp.ge.s32.totalorder %s12, 4
      %s19 = sphi 0, %s31
      %s20 = sphi 0, %s27
      %s21 = sphi 0, %s19
      %s22 = sphi 0, %s20
      %s23 = sphi 0, %s21
      %s24 = sphi 0, %s22
      %s34 = sphi 0, %s36
      %s37 = sphi 0, %s34
      %s38 = sphi 0, %s37
      %s54 = sphi 0, %s38
      %s58 = sphi 0, %s58
      %s60 = sphi 0, %s58
      %s61 = sphi 0, %s60
      %s75 = sphi 0, %s61
      %s79 = sphi 0, %s79
      %s81 = sphi 0, %s79
      %s82 = sphi 0, %s81
      %s96 = sphi 0, %s82
      %s100 = sphi 0, %s100
      %s102 = sphi 0, %s100
      %s103 = sphi 0, %s102
      %s117 = sphi 0, %s103
      %s121 = sphi 0, %s121
      %s123 = sphi 0, %s121
      %s124 = sphi 0, %s123
      %s138 = sphi 0, %s124
      %s142 = sphi 0, %s142
      %s144 = sphi 0, %s142
      %s145 = sphi 0, %s144
      %s159 = sphi 0, %s145
      %s167 = sphi 0, %s169
      %s170 = sphi 0, %s167
      %s171 = sphi 0, %s170
      %s187 = sphi 0, %s171
    $region4: #{bottleneck_forward.2} parent=1 // loop_header_branch
      %15 = sbr.rel (%p13) target = $region8
    $region5: #{bottleneck_forward.2} parent=1 // loop_body
      %s17 = ssub.s32 %s12, 1
      %s18 = ssub.s32 %s12, 2
      %s25 = sadd.s32 1, %s20
      %p26 = scmp.ge.s32.totalorder %s25, 1
      %s27 = scalar_select %p26, 0, %s25
      %s28 = sadd.s32 1, %s19
      %s29 = scalar_select %p26, %s28, %s19
      %p30 = scmp.ge.s32.totalorder %s29, 2
      %s31 = scalar_select %p30, 0, %s29
      %s32 = ssub.s32 %s19, %s31
      %p33 = scmp.eq.s32.totalorder %s32, 0
      %s35 = sadd.s32 %s34, 1
      %s36 = scalar_select %p33, %s34, %s35
      %p39 = pneg %p33
      %p40 = scmp.eq.s32.totalorder %s12, 1
      %p41 = por %p39, %p40
      %p42 = scmp.ne.s32.totalorder %s34, %s37
      %p43 = scmp.eq.s32.totalorder %s12, 0
      %p44 = por %p42, %p43
      %p45 = scmp.ne.s32.totalorder %s34, %s37
      %p46 = scmp.eq.s32.totalorder %s17, 1
      %p47 = por %p45, %p46
      %p48 = scmp.ne.s32.totalorder %s37, %s38
      %p49 = scmp.eq.s32.totalorder %s17, 0
      %p50 = por %p48, %p49
      %p51 = scmp.ne.s32.totalorder %s37, %s38
      %p52 = scmp.eq.s32.totalorder %s18, 1
      %p53 = por %p51, %p52
      %p55 = scmp.ne.s32.totalorder %s38, %s54
      %p56 = scmp.eq.s32.totalorder %s18, 0
      %p57 = por %p55, %p56
      %s59 = sadd.s32 %s58, 1
      %p62 = scmp.eq.s32.totalorder %s12, 1
      %p63 = scmp.ne.s32.totalorder %s58, %s60
      %p64 = scmp.eq.s32.totalorder %s12, 0
      %p65 = por %p63, %p64
      %p66 = scmp.ne.s32.totalorder %s58, %s60
      %p67 = scmp.eq.s32.totalorder %s17, 1
      %p68 = por %p66, %p67
      %p69 = scmp.ne.s32.totalorder %s60, %s61
      %p70 = scmp.eq.s32.totalorder %s17, 0
      %p71 = por %p69, %p70
      %p72 = scmp.ne.s32.totalorder %s60, %s61
      %p73 = scmp.eq.s32.totalorder %s18, 1
      %p74 = por %p72, %p73
      %p76 = scmp.ne.s32.totalorder %s61, %s75
      %p77 = scmp.eq.s32.totalorder %s18, 0
      %p78 = por %p76, %p77
      %s80 = sadd.s32 %s79, 1
      %p83 = scmp.eq.s32.totalorder %s12, 1
      %p84 = scmp.ne.s32.totalorder %s79, %s81
      %p85 = scmp.eq.s32.totalorder %s12, 0
      %p86 = por %p84, %p85
      %p87 = scmp.ne.s32.totalorder %s79, %s81
      %p88 = scmp.eq.s32.totalorder %s17, 1
      %p89 = por %p87, %p88
      %p90 = scmp.ne.s32.totalorder %s81, %s82
      %p91 = scmp.eq.s32.totalorder %s17, 0
      %p92 = por %p90, %p91
      %p93 = scmp.ne.s32.totalorder %s81, %s82
      %p94 = scmp.eq.s32.totalorder %s18, 1
      %p95 = por %p93, %p94
      %p97 = scmp.ne.s32.totalorder %s82, %s96
      %p98 = scmp.eq.s32.totalorder %s18, 0
      %p99 = por %p97, %p98
      %s101 = sadd.s32 %s100, 1
      %p104 = scmp.eq.s32.totalorder %s12, 1
      %p105 = scmp.ne.s32.totalorder %s100, %s102
      %p106 = scmp.eq.s32.totalorder %s12, 0
      %p107 = por %p105, %p106
      %p108 = scmp.ne.s32.totalorder %s100, %s102
      %p109 = scmp.eq.s32.totalorder %s17, 1
      %p110 = por %p108, %p109
      %p111 = scmp.ne.s32.totalorder %s102, %s103
      %p112 = scmp.eq.s32.totalorder %s17, 0
      %p113 = por %p111, %p112
      %p114 = scmp.ne.s32.totalorder %s102, %s103
      %p115 = scmp.eq.s32.totalorder %s18, 1
      %p116 = por %p114, %p115
      %p118 = scmp.ne.s32.totalorder %s103, %s117
      %p119 = scmp.eq.s32.totalorder %s18, 0
      %p120 = por %p118, %p119
      %s122 = sadd.s32 %s121, 1
      %p125 = scmp.eq.s32.totalorder %s12, 1
      %p126 = scmp.ne.s32.totalorder %s121, %s123
      %p127 = scmp.eq.s32.totalorder %s12, 0
      %p128 = por %p126, %p127
      %p129 = scmp.ne.s32.totalorder %s121, %s123
      %p130 = scmp.eq.s32.totalorder %s17, 1
      %p131 = por %p129, %p130
      %p132 = scmp.ne.s32.totalorder %s123, %s124
      %p133 = scmp.eq.s32.totalorder %s17, 0
      %p134 = por %p132, %p133
      %p135 = scmp.ne.s32.totalorder %s123, %s124
      %p136 = scmp.eq.s32.totalorder %s18, 1
      %p137 = por %p135, %p136
      %p139 = scmp.ne.s32.totalorder %s124, %s138
      %p140 = scmp.eq.s32.totalorder %s18, 0
      %p141 = por %p139, %p140
      %s143 = sadd.s32 %s142, 1
      %p146 = scmp.eq.s32.totalorder %s12, 1
      %p147 = scmp.ne.s32.totalorder %s142, %s144
      %p148 = scmp.eq.s32.totalorder %s12, 0
      %p149 = por %p147, %p148
      %p150 = scmp.ne.s32.totalorder %s142, %s144
      %p151 = scmp.eq.s32.totalorder %s17, 1
      %p152 = por %p150, %p151
      %p153 = scmp.ne.s32.totalorder %s144, %s145
      %p154 = scmp.eq.s32.totalorder %s17, 0
      %p155 = por %p153, %p154
      %p156 = scmp.ne.s32.totalorder %s144, %s145
      %p157 = scmp.eq.s32.totalorder %s18, 1
      %p158 = por %p156, %p157
      %p160 = scmp.ne.s32.totalorder %s145, %s159
      %p161 = scmp.eq.s32.totalorder %s18, 0
      %p162 = por %p160, %p161
      %s163 = ssub.s32 %s19, %s31
      %s164 = ssub.s32 %s20, %s27
      %s165 = sor.u32 %s163, %s164
      %p166 = scmp.eq.s32.totalorder %s165, 0
      %s168 = sadd.s32 %s167, 1
      %s169 = scalar_select %p166, %s167, %s168
      %p172 = pneg %p166
      %p173 = scmp.eq.s32.totalorder %s12, 1
      %p174 = por %p172, %p173
      %p175 = scmp.ne.s32.totalorder %s167, %s170
      %p176 = scmp.eq.s32.totalorder %s12, 0
      %p177 = por %p175, %p176
      %p178 = scmp.ne.s32.totalorder %s167, %s170
      %p179 = scmp.eq.s32.totalorder %s17, 1
      %p180 = por %p178, %p179
      %p181 = scmp.ne.s32.totalorder %s170, %s171
      %p182 = scmp.eq.s32.totalorder %s17, 0
      %p183 = por %p181, %p182
      %p184 = scmp.ne.s32.totalorder %s170, %s171
      %p185 = scmp.eq.s32.totalorder %s18, 1
      %p186 = por %p184, %p185
      %p188 = scmp.ne.s32.totalorder %s171, %s187
      %p189 = scmp.eq.s32.totalorder %s18, 0
      %p190 = por %p188, %p189
      %p191 = scmp.le.s32.totalorder 1, %s12
      %p192 = scmp.lt.s32.totalorder %s12, 3
      %p193 = pnand %p191, %p192
      %p194 = pneg %p193
      // Predicated region
      $region9: #{bottleneck_forward.2} parent=5 // pred_check
        _
      $region10: #{bottleneck_forward.2} parent=5 // pred_check_branch
        %196 = sbr.rel (%p193) target = $region12
      $region11: #{bottleneck_forward.2} parent=5 // pred_region
        %s197 = ssub.s32 %s12, 1
        // Predicated region
        $region13: #{bottleneck_forward.2} parent=11 // pred_check
          %p198 = pneg %p71
        $region14: #{bottleneck_forward.2} parent=11 // pred_check_branch
          %200 = sbr.rel (%p198) target = $region16
        $region15: #{bottleneck_forward.2} parent=11 // pred_region
          _
        $region16: #{bottleneck_forward.2} parent=11 // pred_fallthru
          _
        // Predicated region
        $region17: #{bottleneck_forward.2} parent=11 // pred_check
          %p201 = pneg %p92
        $region18: #{bottleneck_forward.2} parent=11 // pred_check_branch
          %203 = sbr.rel (%p201) target = $region20
        $region19: #{bottleneck_forward.2} parent=11 // pred_region
          _
        $region20: #{bottleneck_forward.2} parent=11 // pred_fallthru
          _
        // Predicated region
        $region21: #{bottleneck_forward.2} parent=11 // pred_check
          %p204 = pneg %p113
        $region22: #{bottleneck_forward.2} parent=11 // pred_check_branch
          %206 = sbr.rel (%p204) target = $region24
        $region23: #{bottleneck_forward.2} parent=11 // pred_region
          _
        $region24: #{bottleneck_forward.2} parent=11 // pred_fallthru
          _
        // Predicated region
        $region25: #{bottleneck_forward.2} parent=11 // pred_check
          %p207 = pneg %p134
        $region26: #{bottleneck_forward.2} parent=11 // pred_check_branch
          %209 = sbr.rel (%p207) target = $region28
        $region27: #{bottleneck_forward.2} parent=11 // pred_region
          _
        $region28: #{bottleneck_forward.2} parent=11 // pred_fallthru
          _
        // Predicated region
        $region29: #{bottleneck_forward.2} parent=11 // pred_check
          %p210 = pneg %p155
        $region30: #{bottleneck_forward.2} parent=11 // pred_check_branch
          %212 = sbr.rel (%p210) target = $region32
        $region31: #{bottleneck_forward.2} parent=11 // pred_region
          _
        $region32: #{bottleneck_forward.2} parent=11 // pred_fallthru
          _
      $region12: #{bottleneck_forward.2} parent=5 // pred_fallthru
        _
      %p213 = scmp.lt.s32.totalorder %s12, 2
      // Predicated region
      $region33: #{bottleneck_forward.2} parent=5 // pred_check
        %p214 = pneg %p213
      $region34: #{bottleneck_forward.2} parent=5 // pred_check_branch
        %216 = sbr.rel (%p214) target = $region36
      $region35: #{bottleneck_forward.2} parent=5 // pred_region
        // Predicated region
        $region37: #{bottleneck_forward.2} parent=35 // pred_check
          %p217 = pneg %p44
        $region38: #{bottleneck_forward.2} parent=35 // pred_check_branch
          %219 = sbr.rel (%p217) target = $region40
        $region39: #{bottleneck_forward.2} parent=35 // pred_region
          %s220 = sand.u32 %s34, 1
          %s221 = sand.u32 %s34, 1
          %s222 = smul.addr %s221, 288
          %s223 = scalar_lea.vmem [#allocation2], %s222
          %s224 = smul.addr %s19, 18
          %s225 = smul.addr %s224, 4
          %s226 = scalar_lea.vmem %s0, %s225
          // Predicated region
          $region41: #{bottleneck_forward.2} parent=39 // pred_check
            _
          $region42: #{bottleneck_forward.2} parent=39 // pred_check_branch
            %228 = sbr.rel (0) target = $region44
          $region43: #{bottleneck_forward.2} parent=39 // pred_region
            // Predicated region
            $region45: #{bottleneck_forward.2} parent=43 // pred_check
              _
            $region46: #{bottleneck_forward.2} parent=43 // pred_check_branch
              %230 = sbr.rel target = $region48
            $region47: #{bottleneck_forward.2} parent=43 // pred_region
              // Predicated region
              $region60: #{bottleneck_forward.2} parent=47 // pred_check
                _
              $region61: #{bottleneck_forward.2} parent=47 // pred_check_branch
                %387 = sbr.rel (0) target = $region63
              $region62: #{bottleneck_forward.2} parent=47 // pred_region
                loop: start=0, step=1, limit=1
                $region64: #{bottleneck_forward.2} parent=62 // loop_pre_header
                  _
                $region65: #{bottleneck_forward.2} parent=62 // loop_header
                  %s389 = sphi 0, %s393
                  %p390 = scmp.ge.s32.totalorder %s389, 1
                  %s394 = sphi %s226, %s226
                  %s395 = sphi %s223, %s223
                $region66: #{bottleneck_forward.2} parent=62 // loop_header_branch
                  %392 = sbr.rel (%p390) target = $region70
                $region67: #{bottleneck_forward.2} parent=62 // loop_body
                  _
                $region68: #{bottleneck_forward.2} parent=62 // loop_footer
                  %s393 = sadd.s32 1, %s389
                $region69: #{bottleneck_forward.2} parent=62 // loop_footer_branch
                  %388 = sbr.rel target = $region65
                $region70: #{bottleneck_forward.2} parent=62 // loop_exit
                  _
                loop: start=0, step=1, limit=1
                $region71: #{bottleneck_forward.2} parent=62 // loop_pre_header
                  _
                $region72: #{bottleneck_forward.2} parent=62 // loop_header
                  %s398 = sphi 0, %s402
                  %p399 = scmp.ge.s32.totalorder %s398, 1
                  %s403 = sphi %s226, %s226
                  %s404 = sphi %s223, %s223
                $region73: #{bottleneck_forward.2} parent=62 // loop_header_branch
                  %401 = sbr.rel (%p399) target = $region77
                $region74: #{bottleneck_forward.2} parent=62 // loop_body
                  %v405 = vld [vmem:[%s403] sm:$0xf]
                  %406 = vst [vmem:[%s404] sm:$0xf] %v405
                  %v407 = vld [vmem:[%s403 + $0x4] sm:$0xf]
                  %408 = vst [vmem:[%s404 + $0x4] sm:$0xf] %v407
                  %v409 = vld [vmem:[%s403 + $0x8] sm:$0xf]
                  %410 = vst [vmem:[%s404 + $0x8] sm:$0xf] %v409
                  %v411 = vld [vmem:[%s403 + $0xc] sm:$0xf]
                  %412 = vst [vmem:[%s404 + $0xc] sm:$0xf] %v411
                  %v413 = vld [vmem:[%s403 + $0x10] sm:$0xf]
                  %414 = vst [vmem:[%s404 + $0x10] sm:$0xf] %v413
                  %v415 = vld [vmem:[%s403 + $0x14] sm:$0xf]
                  %416 = vst [vmem:[%s404 + $0x14] sm:$0xf] %v415
                  %v417 = vld [vmem:[%s403 + $0x18] sm:$0xf]
                  %418 = vst [vmem:[%s404 + $0x18] sm:$0xf] %v417
                  %v419 = vld [vmem:[%s403 + $0x1c] sm:$0xf]
                  %420 = vst [vmem:[%s404 + $0x1c] sm:$0xf] %v419
                  %v421 = vld [vmem:[%s403 + $0x20] sm:$0xf]
                  %422 = vst [vmem:[%s404 + $0x20] sm:$0xf] %v421
                  %v423 = vld [vmem:[%s403 + $0x24] sm:$0xf]
                  %424 = vst [vmem:[%s404 + $0x24] sm:$0xf] %v423
                  %v425 = vld [vmem:[%s403 + $0x28] sm:$0xf]
                  %426 = vst [vmem:[%s404 + $0x28] sm:$0xf] %v425
                  %v427 = vld [vmem:[%s403 + $0x2c] sm:$0xf]
                  %428 = vst [vmem:[%s404 + $0x2c] sm:$0xf] %v427
                  %v429 = vld [vmem:[%s403 + $0x30] sm:$0xf]
                  %430 = vst [vmem:[%s404 + $0x30] sm:$0xf] %v429
                  %v431 = vld [vmem:[%s403 + $0x34] sm:$0xf]
                  %432 = vst [vmem:[%s404 + $0x34] sm:$0xf] %v431
                  %v433 = vld [vmem:[%s403 + $0x38] sm:$0xf]
                  %434 = vst [vmem:[%s404 + $0x38] sm:$0xf] %v433
                  %v435 = vld [vmem:[%s403 + $0x3c] sm:$0xf]
                  %436 = vst [vmem:[%s404 + $0x3c] sm:$0xf] %v435
                  %v437 = vld [vmem:[%s403 + $0x40] sm:$0xf]
                  %438 = vst [vmem:[%s404 + $0x40] sm:$0xf] %v437
                  %v439 = vld [vmem:[%s403 + $0x44] sm:$0xf]
                  %440 = vst [vmem:[%s404 + $0x44] sm:$0xf] %v439
                  %v441 = vld [vmem:[%s403 + $0x90] sm:$0xf]
                  %442 = vst [vmem:[%s404 + $0x48] sm:$0xf] %v441
                  %v443 = vld [vmem:[%s403 + $0x94] sm:$0xf]
                  %444 = vst [vmem:[%s404 + $0x4c] sm:$0xf] %v443
                  %v445 = vld [vmem:[%s403 + $0x98] sm:$0xf]
                  %446 = vst [vmem:[%s404 + $0x50] sm:$0xf] %v445
                  %v447 = vld [vmem:[%s403 + $0x9c] sm:$0xf]
                  %448 = vst [vmem:[%s404 + $0x54] sm:$0xf] %v447
                  %v449 = vld [vmem:[%s403 + $0xa0] sm:$0xf]
                  %450 = vst [vmem:[%s404 + $0x58] sm:$0xf] %v449
                  %v451 = vld [vmem:[%s403 + $0xa4] sm:$0xf]
                  %452 = vst [vmem:[%s404 + $0x5c] sm:$0xf] %v451
                  %v453 = vld [vmem:[%s403 + $0xa8] sm:$0xf]
                  %454 = vst [vmem:[%s404 + $0x60] sm:$0xf] %v453
                  %v455 = vld [vmem:[%s403 + $0xac] sm:$0xf]
                  %456 = vst [vmem:[%s404 + $0x64] sm:$0xf] %v455
                  %v457 = vld [vmem:[%s403 + $0xb0] sm:$0xf]
                  %458 = vst [vmem:[%s404 + $0x68] sm:$0xf] %v457
                  %v459 = vld [vmem:[%s403 + $0xb4] sm:$0xf]
                  %460 = vst [vmem:[%s404 + $0x6c] sm:$0xf] %v459
                  %v461 = vld [vmem:[%s403 + $0xb8] sm:$0xf]
                  %462 = vst [vmem:[%s404 + $0x70] sm:$0xf] %v461
                  %v463 = vld [vmem:[%s403 + $0xbc] sm:$0xf]
                  %464 = vst [vmem:[%s404 + $0x74] sm:$0xf] %v463
                  %v465 = vld [vmem:[%s403 + $0xc0] sm:$0xf]
                  %466 = vst [vmem:[%s404 + $0x78] sm:$0xf] %v465
                  %v467 = vld [vmem:[%s403 + $0xc4] sm:$0xf]
                  %468 = vst [vmem:[%s404 + $0x7c] sm:$0xf] %v467
                  %v469 = vld [vmem:[%s403 + $0xc8] sm:$0xf]
                  %470 = vst [vmem:[%s404 + $0x80] sm:$0xf] %v469
                  %v471 = vld [vmem:[%s403 + $0xcc] sm:$0xf]
                  %472 = vst [vmem:[%s404 + $0x84] sm:$0xf] %v471
                  %v473 = vld [vmem:[%s403 + $0xd0] sm:$0xf]
                  %474 = vst [vmem:[%s404 + $0x88] sm:$0xf] %v473
                  %v475 = vld [vmem:[%s403 + $0xd4] sm:$0xf]
                  %476 = vst [vmem:[%s404 + $0x8c] sm:$0xf] %v475
                  %v477 = vld [vmem:[%s403 + $0x120] sm:$0xf]
                  %478 = vst [vmem:[%s404 + $0x90] sm:$0xf] %v477
                  %v479 = vld [vmem:[%s403 + $0x124] sm:$0xf]
                  %480 = vst [vmem:[%s404 + $0x94] sm:$0xf] %v479
                  %v481 = vld [vmem:[%s403 + $0x128] sm:$0xf]
                  %482 = vst [vmem:[%s404 + $0x98] sm:$0xf] %v481
                  %v483 = vld [vmem:[%s403 + $0x12c] sm:$0xf]
                  %484 = vst [vmem:[%s404 + $0x9c] sm:$0xf] %v483
                  %v485 = vld [vmem:[%s403 + $0x130] sm:$0xf]
                  %486 = vst [vmem:[%s404 + $0xa0] sm:$0xf] %v485
                  %v487 = vld [vmem:[%s403 + $0x134] sm:$0xf]
                  %488 = vst [vmem:[%s404 + $0xa4] sm:$0xf] %v487
                  %v489 = vld [vmem:[%s403 + $0x138] sm:$0xf]
                  %490 = vst [vmem:[%s404 + $0xa8] sm:$0xf] %v489
                  %v491 = vld [vmem:[%s403 + $0x13c] sm:$0xf]
                  %492 = vst [vmem:[%s404 + $0xac] sm:$0xf] %v491
                  %v493 = vld [vmem:[%s403 + $0x140] sm:$0xf]
                  %494 = vst [vmem:[%s404 + $0xb0] sm:$0xf] %v493
                  %v495 = vld [vmem:[%s403 + $0x144] sm:$0xf]
                  %496 = vst [vmem:[%s404 + $0xb4] sm:$0xf] %v495
                  %v497 = vld [vmem:[%s403 + $0x148] sm:$0xf]
                  %498 = vst [vmem:[%s404 + $0xb8] sm:$0xf] %v497
                  %v499 = vld [vmem:[%s403 + $0x14c] sm:$0xf]
                  %500 = vst [vmem:[%s404 + $0xbc] sm:$0xf] %v499
                  %v501 = vld [vmem:[%s403 + $0x150] sm:$0xf]
                  %502 = vst [vmem:[%s404 + $0xc0] sm:$0xf] %v501
                  %v503 = vld [vmem:[%s403 + $0x154] sm:$0xf]
                  %504 = vst [vmem:[%s404 + $0xc4] sm:$0xf] %v503
                  %v505 = vld [vmem:[%s403 + $0x158] sm:$0xf]
                  %506 = vst [vmem:[%s404 + $0xc8] sm:$0xf] %v505
                  %v507 = vld [vmem:[%s403 + $0x15c] sm:$0xf]
                  %508 = vst [vmem:[%s404 + $0xcc] sm:$0xf] %v507
                  %v509 = vld [vmem:[%s403 + $0x160] sm:$0xf]
                  %510 = vst [vmem:[%s404 + $0xd0] sm:$0xf] %v509
                  %v511 = vld [vmem:[%s403 + $0x164] sm:$0xf]
                  %512 = vst [vmem:[%s404 + $0xd4] sm:$0xf] %v511
                  %v513 = vld [vmem:[%s403 + $0x1b0] sm:$0xf]
                  %514 = vst [vmem:[%s404 + $0xd8] sm:$0xf] %v513
                  %v515 = vld [vmem:[%s403 + $0x1b4] sm:$0xf]
                  %516 = vst [vmem:[%s404 + $0xdc] sm:$0xf] %v515
                  %v517 = vld [vmem:[%s403 + $0x1b8] sm:$0xf]
                  %518 = vst [vmem:[%s404 + $0xe0] sm:$0xf] %v517
                  %v519 = vld [vmem:[%s403 + $0x1bc] sm:$0xf]
                  %520 = vst [vmem:[%s404 + $0xe4] sm:$0xf] %v519
                  %v521 = vld [vmem:[%s403 + $0x1c0] sm:$0xf]
                  %522 = vst [vmem:[%s404 + $0xe8] sm:$0xf] %v521
                  %v523 = vld [vmem:[%s403 + $0x1c4] sm:$0xf]
                  %524 = vst [vmem:[%s404 + $0xec] sm:$0xf] %v523
                  %v525 = vld [vmem:[%s403 + $0x1c8] sm:$0xf]
                  %526 = vst [vmem:[%s404 + $0xf0] sm:$0xf] %v525
                  %v527 = vld [vmem:[%s403 + $0x1cc] sm:$0xf]
                  %528 = vst [vmem:[%s404 + $0xf4] sm:$0xf] %v527
                  %v529 = vld [vmem:[%s403 + $0x1d0] sm:$0xf]
                  %530 = vst [vmem:[%s404 + $0xf8] sm:$0xf] %v529
                  %v531 = vld [vmem:[%s403 + $0x1d4] sm:$0xf]
                  %532 = vst [vmem:[%s404 + $0xfc] sm:$0xf] %v531
                  %v533 = vld [vmem:[%s403 + $0x1d8] sm:$0xf]
                  %534 = vst [vmem:[%s404 + $0x100] sm:$0xf] %v533
                  %v535 = vld [vmem:[%s403 + $0x1dc] sm:$0xf]
                  %536 = vst [vmem:[%s404 + $0x104] sm:$0xf] %v535
                  %v537 = vld [vmem:[%s403 + $0x1e0] sm:$0xf]
                  %538 = vst [vmem:[%s404 + $0x108] sm:$0xf] %v537
                  %v539 = vld [vmem:[%s403 + $0x1e4] sm:$0xf]
                  %540 = vst [vmem:[%s404 + $0x10c] sm:$0xf] %v539
                  %v541 = vld [vmem:[%s403 + $0x1e8] sm:$0xf]
                  %542 = vst [vmem:[%s404 + $0x110] sm:$0xf] %v541
                  %v543 = vld [vmem:[%s403 + $0x1ec] sm:$0xf]
                  %544 = vst [vmem:[%s404 + $0x114] sm:$0xf] %v543
                  %v545 = vld [vmem:[%s403 + $0x1f0] sm:$0xf]
                  %546 = vst [vmem:[%s404 + $0x118] sm:$0xf] %v545
                  %v547 = vld [vmem:[%s403 + $0x1f4] sm:$0xf]
                  %548 = vst [vmem:[%s404 + $0x11c] sm:$0xf] %v547
                $region75: #{bottleneck_forward.2} parent=62 // loop_footer
                  %s402 = sadd.s32 1, %s398
                $region76: #{bottleneck_forward.2} parent=62 // loop_footer_branch
                  %397 = sbr.rel target = $region72
                $region77: #{bottleneck_forward.2} parent=62 // loop_exit
                  _
              $region63: #{bottleneck_forward.2} parent=47 // pred_fallthru
                _
            $region48: #{bottleneck_forward.2} parent=43 // pred_fallthru
              _
            // Predicated region
            $region49: #{bottleneck_forward.2} parent=43 // pred_check
              _
            $region50: #{bottleneck_forward.2} parent=43 // pred_check_branch
              %232 = sbr.rel (0) target = $region52
            $region51: #{bottleneck_forward.2} parent=43 // pred_region
              loop: start=0, step=1, limit=1
              $region53: #{bottleneck_forward.2} parent=51 // loop_pre_header
                _
              $region54: #{bottleneck_forward.2} parent=51 // loop_header
                %s235 = sphi 0, %s239
                %p236 = scmp.ge.s32.totalorder %s235, 1
                %s240 = sphi %s226, %s226
                %s241 = sphi %s223, %s223
              $region55: #{bottleneck_forward.2} parent=51 // loop_header_branch
                %238 = sbr.rel (%p236) target = $region59
              $region56: #{bottleneck_forward.2} parent=51 // loop_body
                %v242 = vld [vmem:[%s240] sm:$0xf]
                %243 = vst [vmem:[%s241] sm:$0xf] %v242
                %v244 = vld [vmem:[%s240 + $0x4] sm:$0xf]
                %245 = vst [vmem:[%s241 + $0x4] sm:$0xf] %v244
                %v246 = vld [vmem:[%s240 + $0x8] sm:$0xf]
                %247 = vst [vmem:[%s241 + $0x8] sm:$0xf] %v246
                %v248 = vld [vmem:[%s240 + $0xc] sm:$0xf]
                %249 = vst [vmem:[%s241 + $0xc] sm:$0xf] %v248
                %v250 = vld [vmem:[%s240 + $0x10] sm:$0xf]
                %251 = vst [vmem:[%s241 + $0x10] sm:$0xf] %v250
                %v252 = vld [vmem:[%s240 + $0x14] sm:$0xf]
                %253 = vst [vmem:[%s241 + $0x14] sm:$0xf] %v252
                %v254 = vld [vmem:[%s240 + $0x18] sm:$0xf]
                %255 = vst [vmem:[%s241 + $0x18] sm:$0xf] %v254
                %v256 = vld [vmem:[%s240 + $0x1c] sm:$0xf]
                %257 = vst [vmem:[%s241 + $0x1c] sm:$0xf] %v256
                %v258 = vld [vmem:[%s240 + $0x20] sm:$0xf]
                %259 = vst [vmem:[%s241 + $0x20] sm:$0xf] %v258
                %v260 = vld [vmem:[%s240 + $0x24] sm:$0xf]
                %261 = vst [vmem:[%s241 + $0x24] sm:$0xf] %v260
                %v262 = vld [vmem:[%s240 + $0x28] sm:$0xf]
                %263 = vst [vmem:[%s241 + $0x28] sm:$0xf] %v262
                %v264 = vld [vmem:[%s240 + $0x2c] sm:$0xf]
                %265 = vst [vmem:[%s241 + $0x2c] sm:$0xf] %v264
                %v266 = vld [vmem:[%s240 + $0x30] sm:$0xf]
                %267 = vst [vmem:[%s241 + $0x30] sm:$0xf] %v266
                %v268 = vld [vmem:[%s240 + $0x34] sm:$0xf]
                %269 = vst [vmem:[%s241 + $0x34] sm:$0xf] %v268
                %v270 = vld [vmem:[%s240 + $0x38] sm:$0xf]
                %271 = vst [vmem:[%s241 + $0x38] sm:$0xf] %v270
                %v272 = vld [vmem:[%s240 + $0x3c] sm:$0xf]
                %273 = vst [vmem:[%s241 + $0x3c] sm:$0xf] %v272
                %v274 = vld [vmem:[%s240 + $0x40] sm:$0xf]
                %275 = vst [vmem:[%s241 + $0x40] sm:$0xf] %v274
                %v276 = vld [vmem:[%s240 + $0x44] sm:$0xf]
                %277 = vst [vmem:[%s241 + $0x44] sm:$0xf] %v276
                %v278 = vld [vmem:[%s240 + $0x90] sm:$0xf]
                %279 = vst [vmem:[%s241 + $0x48] sm:$0xf] %v278
                %v280 = vld [vmem:[%s240 + $0x94] sm:$0xf]
                %281 = vst [vmem:[%s241 + $0x4c] sm:$0xf] %v280
                %v282 = vld [vmem:[%s240 + $0x98] sm:$0xf]
                %283 = vst [vmem:[%s241 + $0x50] sm:$0xf] %v282
                %v284 = vld [vmem:[%s240 + $0x9c] sm:$0xf]
                %285 = vst [vmem:[%s241 + $0x54] sm:$0xf] %v284
                %v286 = vld [vmem:[%s240 + $0xa0] sm:$0xf]
                %287 = vst [vmem:[%s241 + $0x58] sm:$0xf] %v286
                %v288 = vld [vmem:[%s240 + $0xa4] sm:$0xf]
                %289 = vst [vmem:[%s241 + $0x5c] sm:$0xf] %v288
                %v290 = vld [vmem:[%s240 + $0xa8] sm:$0xf]
                %291 = vst [vmem:[%s241 + $0x60] sm:$0xf] %v290
                %v292 = vld [vmem:[%s240 + $0xac] sm:$0xf]
                %293 = vst [vmem:[%s241 + $0x64] sm:$0xf] %v292
                %v294 = vld [vmem:[%s240 + $0xb0] sm:$0xf]
                %295 = vst [vmem:[%s241 + $0x68] sm:$0xf] %v294
                %v296 = vld [vmem:[%s240 + $0xb4] sm:$0xf]
                %297 = vst [vmem:[%s241 + $0x6c] sm:$0xf] %v296
                %v298 = vld [vmem:[%s240 + $0xb8] sm:$0xf]
                %299 = vst [vmem:[%s241 + $0x70] sm:$0xf] %v298
                %v300 = vld [vmem:[%s240 + $0xbc] sm:$0xf]
                %301 = vst [vmem:[%s241 + $0x74] sm:$0xf] %v300
                %v302 = vld [vmem:[%s240 + $0xc0] sm:$0xf]
                %303 = vst [vmem:[%s241 + $0x78] sm:$0xf] %v302
                %v304 = vld [vmem:[%s240 + $0xc4] sm:$0xf]
                %305 = vst [vmem:[%s241 + $0x7c] sm:$0xf] %v304
                %v306 = vld [vmem:[%s240 + $0xc8] sm:$0xf]
                %307 = vst [vmem:[%s241 + $0x80] sm:$0xf] %v306
                %v308 = vld [vmem:[%s240 + $0xcc] sm:$0xf]
                %309 = vst [vmem:[%s241 + $0x84] sm:$0xf] %v308
                %v310 = vld [vmem:[%s240 + $0xd0] sm:$0xf]
                %311 = vst [vmem:[%s241 + $0x88] sm:$0xf] %v310
                %v312 = vld [vmem:[%s240 + $0xd4] sm:$0xf]
                %313 = vst [vmem:[%s241 + $0x8c] sm:$0xf] %v312
                %v314 = vld [vmem:[%s240 + $0x120] sm:$0xf]
                %315 = vst [vmem:[%s241 + $0x90] sm:$0xf] %v314
                %v316 = vld [vmem:[%s240 + $0x124] sm:$0xf]
                %317 = vst [vmem:[%s241 + $0x94] sm:$0xf] %v316
                %v318 = vld [vmem:[%s240 + $0x128] sm:$0xf]
                %319 = vst [vmem:[%s241 + $0x98] sm:$0xf] %v318
                %v320 = vld [vmem:[%s240 + $0x12c] sm:$0xf]
                %321 = vst [vmem:[%s241 + $0x9c] sm:$0xf] %v320
                %v322 = vld [vmem:[%s240 + $0x130] sm:$0xf]
                %323 = vst [vmem:[%s241 + $0xa0] sm:$0xf] %v322
                %v324 = vld [vmem:[%s240 + $0x134] sm:$0xf]
                %325 = vst [vmem:[%s241 + $0xa4] sm:$0xf] %v324
                %v326 = vld [vmem:[%s240 + $0x138] sm:$0xf]
                %327 = vst [vmem:[%s241 + $0xa8] sm:$0xf] %v326
                %v328 = vld [vmem:[%s240 + $0x13c] sm:$0xf]
                %329 = vst [vmem:[%s241 + $0xac] sm:$0xf] %v328
                %v330 = vld [vmem:[%s240 + $0x140] sm:$0xf]
                %331 = vst [vmem:[%s241 + $0xb0] sm:$0xf] %v330
                %v332 = vld [vmem:[%s240 + $0x144] sm:$0xf]
                %333 = vst [vmem:[%s241 + $0xb4] sm:$0xf] %v332
                %v334 = vld [vmem:[%s240 + $0x148] sm:$0xf]
                %335 = vst [vmem:[%s241 + $0xb8] sm:$0xf] %v334
                %v336 = vld [vmem:[%s240 + $0x14c] sm:$0xf]
                %337 = vst [vmem:[%s241 + $0xbc] sm:$0xf] %v336
                %v338 = vld [vmem:[%s240 + $0x150] sm:$0xf]
                %339 = vst [vmem:[%s241 + $0xc0] sm:$0xf] %v338
                %v340 = vld [vmem:[%s240 + $0x154] sm:$0xf]
                %341 = vst [vmem:[%s241 + $0xc4] sm:$0xf] %v340
                %v342 = vld [vmem:[%s240 + $0x158] sm:$0xf]
                %343 = vst [vmem:[%s241 + $0xc8] sm:$0xf] %v342
                %v344 = vld [vmem:[%s240 + $0x15c] sm:$0xf]
                %345 = vst [vmem:[%s241 + $0xcc] sm:$0xf] %v344
                %v346 = vld [vmem:[%s240 + $0x160] sm:$0xf]
                %347 = vst [vmem:[%s241 + $0xd0] sm:$0xf] %v346
                %v348 = vld [vmem:[%s240 + $0x164] sm:$0xf]
                %349 = vst [vmem:[%s241 + $0xd4] sm:$0xf] %v348
                %v350 = vld [vmem:[%s240 + $0x1b0] sm:$0xf]
                %351 = vst [vmem:[%s241 + $0xd8] sm:$0xf] %v350
                %v352 = vld [vmem:[%s240 + $0x1b4] sm:$0xf]
                %353 = vst [vmem:[%s241 + $0xdc] sm:$0xf] %v352
                %v354 = vld [vmem:[%s240 + $0x1b8] sm:$0xf]
                %355 = vst [vmem:[%s241 + $0xe0] sm:$0xf] %v354
                %v356 = vld [vmem:[%s240 + $0x1bc] sm:$0xf]
                %357 = vst [vmem:[%s241 + $0xe4] sm:$0xf] %v356
                %v358 = vld [vmem:[%s240 + $0x1c0] sm:$0xf]
                %359 = vst [vmem:[%s241 + $0xe8] sm:$0xf] %v358
                %v360 = vld [vmem:[%s240 + $0x1c4] sm:$0xf]
                %361 = vst [vmem:[%s241 + $0xec] sm:$0xf] %v360
                %v362 = vld [vmem:[%s240 + $0x1c8] sm:$0xf]
                %363 = vst [vmem:[%s241 + $0xf0] sm:$0xf] %v362
                %v364 = vld [vmem:[%s240 + $0x1cc] sm:$0xf]
                %365 = vst [vmem:[%s241 + $0xf4] sm:$0xf] %v364
                %v366 = vld [vmem:[%s240 + $0x1d0] sm:$0xf]
                %367 = vst [vmem:[%s241 + $0xf8] sm:$0xf] %v366
                %v368 = vld [vmem:[%s240 + $0x1d4] sm:$0xf]
                %369 = vst [vmem:[%s241 + $0xfc] sm:$0xf] %v368
                %v370 = vld [vmem:[%s240 + $0x1d8] sm:$0xf]
                %371 = vst [vmem:[%s241 + $0x100] sm:$0xf] %v370
                %v372 = vld [vmem:[%s240 + $0x1dc] sm:$0xf]
                %373 = vst [vmem:[%s241 + $0x104] sm:$0xf] %v372
                %v374 = vld [vmem:[%s240 + $0x1e0] sm:$0xf]
                %375 = vst [vmem:[%s241 + $0x108] sm:$0xf] %v374
                %v376 = vld [vmem:[%s240 + $0x1e4] sm:$0xf]
                %377 = vst [vmem:[%s241 + $0x10c] sm:$0xf] %v376
                %v378 = vld [vmem:[%s240 + $0x1e8] sm:$0xf]
                %379 = vst [vmem:[%s241 + $0x110] sm:$0xf] %v378
                %v380 = vld [vmem:[%s240 + $0x1ec] sm:$0xf]
                %381 = vst [vmem:[%s241 + $0x114] sm:$0xf] %v380
                %v382 = vld [vmem:[%s240 + $0x1f0] sm:$0xf]
                %383 = vst [vmem:[%s241 + $0x118] sm:$0xf] %v382
                %v384 = vld [vmem:[%s240 + $0x1f4] sm:$0xf]
                %385 = vst [vmem:[%s241 + $0x11c] sm:$0xf] %v384
              $region57: #{bottleneck_forward.2} parent=51 // loop_footer
                %s239 = sadd.s32 1, %s235
              $region58: #{bottleneck_forward.2} parent=51 // loop_footer_branch
                %234 = sbr.rel target = $region54
              $region59: #{bottleneck_forward.2} parent=51 // loop_exit
                _
            $region52: #{bottleneck_forward.2} parent=43 // pred_fallthru
              _
          $region44: #{bottleneck_forward.2} parent=39 // pred_fallthru
            _
          %549 = vnop
        $region40: #{bottleneck_forward.2} parent=35 // pred_fallthru
          _
      $region36: #{bottleneck_forward.2} parent=5 // pred_fallthru
        _
      %p550 = scmp.le.s32.totalorder 1, %s12
      %p551 = scmp.lt.s32.totalorder %s12, 3
      %p552 = pnand %p550, %p551
      %p553 = pneg %p552
      // Predicated region
      $region78: #{bottleneck_forward.2} parent=5 // pred_check
        _
      $region79: #{bottleneck_forward.2} parent=5 // pred_check_branch
        %555 = sbr.rel (%p552) target = $region81
      $region80: #{bottleneck_forward.2} parent=5 // pred_region
        %s556 = ssub.s32 %s12, 1
        %s557 = sand.u32 %s37, 1
        %s558 = sand.u32 %s37, 1
        %s559 = smul.addr %s558, 288
        %s560 = scalar_lea.vmem [#allocation2], %s559
        // Predicated region
        $region82: #{bottleneck_forward.2} parent=80 // pred_check
          %p561 = pneg %p50
        $region83: #{bottleneck_forward.2} parent=80 // pred_check_branch
          %563 = sbr.rel (%p561) target = $region85
        $region84: #{bottleneck_forward.2} parent=80 // pred_region
          _
        $region85: #{bottleneck_forward.2} parent=80 // pred_fallthru
          _
        %s564 = sand.u32 %s37, 1
        %s565 = sand.u32 %s37, 1
        %s566 = smul.addr %s565, 288
        %s567 = scalar_lea.vmem [#allocation2], %s566
        %p568 = pneg %p50
        %p569 = pneg %p47
        %p570 = pneg %p71
        %p571 = pneg %p68
        %p572 = pneg %p92
        %p573 = pneg %p89
        %p574 = pneg %p113
        %p575 = pneg %p110
        %p576 = pneg %p134
        %p577 = pneg %p131
        %p578 = pneg %p155
        %p579 = pneg %p152
        %p580 = pneg %p183
        %p581 = pneg %p180
        %s582 = smul.u32 8, %s22
        %p583 = scmp.lt.s32.totalorder %s21, 1
        %s584 = scalar_select %p583, %s21, 1
        %p585 = scmp.lt.s32.totalorder %s582, 7
        %s586 = scalar_select %p585, %s582, 7
        %s587 = smul.addr %s584, 8
        %s588 = sadd.s32 %s586, %s587
        %s589 = smul.addr %s588, 4
        %s590 = scalar_lea.vmem %s6, %s589
        %s591 = smul.u32 8, %s22
        %p592 = scmp.lt.s32.totalorder %s21, 1
        %s593 = scalar_select %p592, %s21, 1
        %p594 = scmp.lt.s32.totalorder %s591, 7
        %s595 = scalar_select %p594, %s591, 7
        %s596 = smul.addr %s593, 8
        %s597 = sadd.s32 %s595, %s596
        %s598 = smul.addr %s597, 4
        %s599 = scalar_lea.vmem %s6, %s598
        %s600 = smul.u32 8, %s22
        %s602 = smul.u32 %s22, 128
        %s603 = sshra.s32 %s602, 3
        %s604 = sand.u32 %s602, 7
        %s605 = smul.addr %s603, 4
        %s606 = scalar_lea.vmem %s560, %s605 [#allocation2]
        %v607 = vld [vmem:[%s606] sm:$0xf]
        %v608 = vld [vmem:[%s606 + $0x4] sm:$0xf]
        %v609 = vld [vmem:[%s606 + $0x8] sm:$0xf]
        %v610 = vld [vmem:[%s606 + $0xc] sm:$0xf]
        %v611 = vld [vmem:[%s606 + $0x10] sm:$0xf]
        %v612 = vld [vmem:[%s606 + $0x14] sm:$0xf]
        %v613 = vld [vmem:[%s606 + $0x18] sm:$0xf]
        %v614 = vld [vmem:[%s606 + $0x1c] sm:$0xf]
        %v615 = vld [vmem:[%s606 + $0x20] sm:$0xf]
        %v616 = vld [vmem:[%s606 + $0x24] sm:$0xf]
        %v617 = vld [vmem:[%s606 + $0x28] sm:$0xf]
        %v618 = vld [vmem:[%s606 + $0x2c] sm:$0xf]
        %v619 = vld [vmem:[%s606 + $0x30] sm:$0xf]
        %v620 = vld [vmem:[%s606 + $0x34] sm:$0xf]
        %v621 = vld [vmem:[%s606 + $0x38] sm:$0xf]
        %v622 = vld [vmem:[%s606 + $0x3c] sm:$0xf]
        %v623 = vld [vmem:[%s606 + $0x40] sm:$0xf]
        %v624 = vld [vmem:[%s606 + $0x44] sm:$0xf]
        %v625 = vld [vmem:[%s2] sm:$0xf]
        %v626 = vld [vmem:[%s2 + $0x4] sm:$0xf]
        %v627 = vld [vmem:[%s2 + $0x8] sm:$0xf]
        %v628 = vld [vmem:[%s2 + $0xc] sm:$0xf]
        %v629 = vld [vmem:[%s2 + $0x10] sm:$0xf]
        %v630 = vld [vmem:[%s2 + $0x14] sm:$0xf]
        %v631 = vld [vmem:[%s2 + $0x18] sm:$0xf]
        %v632 = vld [vmem:[%s2 + $0x1c] sm:$0xf]
        %v633 = vld [vmem:[%s3] sm:$0x1]
        %v635 = vlaneseq
        %v636 = vshrl.u32 %v635, 7
        %v637 = vsub.s32 0, %v636
        %v638 = vrot.slane %v633, %v637
        %v658 = vunpack.c.l.b16 %v607
        %v659 = vunpack.c.l.b16 %v608
        %v660 = vunpack.c.l.b16 %v609
        %v661 = vunpack.c.l.b16 %v610
        %v662 = vunpack.c.l.b16 %v611
        %v663 = vunpack.c.l.b16 %v612
        %v664 = vunpack.c.l.b16 %v613
        %v665 = vunpack.c.l.b16 %v614
        %v666 = vunpack.c.l.b16 %v615
        %v667 = vunpack.c.l.b16 %v616
        %v668 = vunpack.c.l.b16 %v617
        %v669 = vunpack.c.l.b16 %v618
        %v670 = vunpack.c.l.b16 %v619
        %v671 = vunpack.c.l.b16 %v620
        %v672 = vunpack.c.l.b16 %v621
        %v673 = vunpack.c.l.b16 %v622
        %v674 = vunpack.c.l.b16 %v623
        %v675 = vunpack.c.l.b16 %v624
        %v676 = vpack.c.b16 %v659, %v658
        %v677 = vpack.c.b16 %v661, %v660
        %v678 = vpack.c.b16 %v663, %v662
        %v679 = vpack.c.b16 %v665, %v664
        %v680 = vpack.c.b16 %v667, %v666
        %v681 = vpack.c.b16 %v669, %v668
        %v682 = vpack.c.b16 %v671, %v670
        %v683 = vpack.c.b16 %v673, %v672
        %v684 = vpack.c.b16 %v675, %v674
        %v693 = vunpack.c.l.b16 %v625
        %v694 = vunpack.c.l.b16 %v626
        %v695 = vunpack.c.l.b16 %v627
        %v696 = vunpack.c.l.b16 %v628
        %v697 = vunpack.c.l.b16 %v629
        %v698 = vunpack.c.l.b16 %v630
        %v699 = vunpack.c.l.b16 %v631
        %v700 = vunpack.c.l.b16 %v632
        %v701 = vpack.c.b16 %v694, %v693
        %v702 = vpack.c.b16 %v696, %v695
        %v703 = vpack.c.b16 %v698, %v697
        %v704 = vpack.c.b16 %v700, %v699
        %vm709 = vcmask 523264
        %v711 = vsel %vm709, %v676, 0
        %v714 = vsel %vm709, %v677, 0
        %v717 = vsel %vm709, %v678, 0
        %v720 = vsel %vm709, %v679, 0
        %v723 = vsel %vm709, %v680, 0
        %v726 = vsel %vm709, %v681, 0
        %v729 = vsel %vm709, %v682, 0
        %v732 = vsel %vm709, %v683, 0
        %v735 = vsel %vm709, %v684, 0
        %737 = vmatprep.subr.bf16.mxu0 0
        %738 = vmatpush1.bf16.msra.mxu0 %v701
        %739 = vmatprep.subr.bf16.mxu0 0
        %740 = vmatpush1.bf16.msra.mxu0 %v702
        %741 = vmatprep.subr.bf16.mxu0 0
        %742 = vmatpush1.bf16.msra.mxu0 %v703
        %743 = vmatprep.subr.bf16.mxu0 0
        %744 = vmatpush1.bf16.msra.mxu0 %v704
        %745 = vmatprep.subr.bf16.mxu0 0
        %746 = vmatpush1.bf16.msra.mxu0 0
        %747 = vmatprep.subr.bf16.mxu0 0
        %748 = vmatpush1.bf16.msra.mxu0 0
        %749 = vmatprep.subr.bf16.mxu0 0
        %750 = vmatpush1.bf16.msra.mxu0 0
        %751 = vmatprep.subr.bf16.mxu0 0
        %752 = vmatpush1.bf16.msra.mxu0 0
        %753 = vmatprep.subr.bf16.mxu0 0
        %754 = vmatpush1.bf16.msra.mxu0 0
        %755 = vmatprep.subr.bf16.mxu0 0
        %756 = vmatpush1.bf16.msra.mxu0 0
        %757 = vmatprep.subr.bf16.mxu0 0
        %758 = vmatpush1.bf16.msra.mxu0 0
        %759 = vmatprep.subr.bf16.mxu0 0
        %760 = vmatpush1.bf16.msra.mxu0 0
        %761 = vmatprep.subr.bf16.mxu0 0
        %762 = vmatpush1.bf16.msra.mxu0 0
        %763 = vmatprep.subr.bf16.mxu0 0
        %764 = vmatpush1.bf16.msra.mxu0 0
        %765 = vmatprep.subr.bf16.mxu0 0
        %766 = vmatpush1.bf16.msra.mxu0 0
        %767 = vmatprep.subr.bf16.mxu0 0
        %768 = vmatpush1.bf16.msra.mxu0 0
        %769 = vmatprep.mubr.bf16.mxu0 0
        %770 = vmatmul.mubr.bf16.gmra.mrb[0].mxu0 %v711
        %v771 = vpop.f32.mrb[0].mxu0
        %v772 = vadd.f32 %v638, %v771
        %v773 = vpop.f32.mrb[0].mxu0
        %v774 = vpop.f32.mrb[0].mxu0
        %v775 = vadd.f32 %v638, %v774
        %v776 = vpop.f32.mrb[0].mxu0
        %777 = vmatprep.mubr.bf16.mxu0 0
        %778 = vmatmul.mubr.bf16.gmra.mrb[0].mxu0 %v714
        %v779 = vpop.f32.mrb[0].mxu0
        %v780 = vadd.f32 %v638, %v779
        %v781 = vpop.f32.mrb[0].mxu0
        %v782 = vpop.f32.mrb[0].mxu0
        %v783 = vadd.f32 %v638, %v782
        %v784 = vpop.f32.mrb[0].mxu0
        %785 = vmatprep.mubr.bf16.mxu0 0
        %786 = vmatmul.mubr.bf16.gmra.mrb[0].mxu0 %v717
        %v787 = vpop.f32.mrb[0].mxu0
        %v788 = vadd.f32 %v638, %v787
        %v789 = vpop.f32.mrb[0].mxu0
        %v790 = vpop.f32.mrb[0].mxu0
        %v791 = vadd.f32 %v638, %v790
        %v792 = vpop.f32.mrb[0].mxu0
        %793 = vmatprep.mubr.bf16.mxu0 0
        %794 = vmatmul.mubr.bf16.gmra.mrb[0].mxu0 %v720
        %v795 = vpop.f32.mrb[0].mxu0
        %v796 = vadd.f32 %v638, %v795
        %v797 = vpop.f32.mrb[0].mxu0
        %v798 = vpop.f32.mrb[0].mxu0
        %v799 = vadd.f32 %v638, %v798
        %v800 = vpop.f32.mrb[0].mxu0
        %801 = vmatprep.mubr.bf16.mxu0 0
        %802 = vmatmul.mubr.bf16.gmra.mrb[0].mxu0 %v723
        %v803 = vpop.f32.mrb[0].mxu0
        %v804 = vadd.f32 %v638, %v803
        %v805 = vpop.f32.mrb[0].mxu0
        %v806 = vpop.f32.mrb[0].mxu0
        %v807 = vadd.f32 %v638, %v806
        %v808 = vpop.f32.mrb[0].mxu0
        %809 = vmatprep.mubr.bf16.mxu0 0
        %810 = vmatmul.mubr.bf16.gmra.mrb[0].mxu0 %v726
        %v811 = vpop.f32.mrb[0].mxu0
        %v812 = vadd.f32 %v638, %v811
        %v813 = vpop.f32.mrb[0].mxu0
        %v814 = vpop.f32.mrb[0].mxu0
        %v815 = vadd.f32 %v638, %v814
        %v816 = vpop.f32.mrb[0].mxu0
        %817 = vmatprep.mubr.bf16.mxu0 0
        %818 = vmatmul.mubr.bf16.gmra.mrb[0].mxu0 %v729
        %v819 = vpop.f32.mrb[0].mxu0
        %v820 = vadd.f32 %v638, %v819
        %v821 = vpop.f32.mrb[0].mxu0
        %v822 = vpop.f32.mrb[0].mxu0
        %v823 = vadd.f32 %v638, %v822
        %v824 = vpop.f32.mrb[0].mxu0
        %825 = vmatprep.mubr.bf16.mxu0 0
        %826 = vmatmul.mubr.bf16.gmra.mrb[0].mxu0 %v732
        %v827 = vpop.f32.mrb[0].mxu0
        %v828 = vadd.f32 %v638, %v827
        %v829 = vpop.f32.mrb[0].mxu0
        %v830 = vpop.f32.mrb[0].mxu0
        %v831 = vadd.f32 %v638, %v830
        %v832 = vpop.f32.mrb[0].mxu0
        %833 = vmatprep.mubr.bf16.mxu0 0
        %834 = vmatmul.mubr.bf16.gmra.mrb[0].mxu0 %v735
        %v835 = vpop.f32.mrb[0].mxu0
        %v836 = vadd.f32 %v638, %v835
        %v837 = vpop.f32.mrb[0].mxu0
        %v838 = vpop.f32.mrb[0].mxu0
        %v839 = vadd.f32 %v638, %v838
        %v840 = vpop.f32.mrb[0].mxu0
        %841 = vdwg.mxu0
        %v842 = vmax.f32 %v772, 0.0
        %v843 = vmax.f32 %v775, 0.0
        %v844 = vmax.f32 %v780, 0.0
        %v845 = vmax.f32 %v783, 0.0
        %v846 = vmax.f32 %v788, 0.0
        %v847 = vmax.f32 %v791, 0.0
        %v848 = vmax.f32 %v796, 0.0
        %v849 = vmax.f32 %v799, 0.0
        %v850 = vmax.f32 %v804, 0.0
        %v851 = vmax.f32 %v807, 0.0
        %v852 = vmax.f32 %v812, 0.0
        %v853 = vmax.f32 %v815, 0.0
        %v854 = vmax.f32 %v820, 0.0
        %v855 = vmax.f32 %v823, 0.0
        %v856 = vmax.f32 %v828, 0.0
        %v857 = vmax.f32 %v831, 0.0
        %v858 = vmax.f32 %v836, 0.0
        %v859 = vmax.f32 %v839, 0.0
        %s860 = scalar_lea.vmem %s1, %s602
        %v861 = vld [vmem:[%s860] sm:$0xff]
        %v862 = vld [vmem:[%s860 + $0x8] sm:$0xff]
        %v863 = vld [vmem:[%s860 + $0x10] sm:$0xff]
        %v864 = vld [vmem:[%s860 + $0x18] sm:$0xff]
        %v865 = vld [vmem:[%s860 + $0x20] sm:$0xff]
        %v866 = vld [vmem:[%s860 + $0x28] sm:$0xff]
        %v867 = vld [vmem:[%s860 + $0x30] sm:$0xff]
        %v868 = vld [vmem:[%s860 + $0x38] sm:$0xff]
        %v869 = vld [vmem:[%s860 + $0x40] sm:$0xff]
        %v870 = vld [vmem:[%s860 + $0x48] sm:$0xff]
        %v871 = vld [vmem:[%s860 + $0x50] sm:$0xff]
        %v872 = vld [vmem:[%s860 + $0x58] sm:$0xff]
        %v873 = vld [vmem:[%s860 + $0x60] sm:$0xff]
        %v874 = vld [vmem:[%s860 + $0x68] sm:$0xff]
        %v875 = vld [vmem:[%s860 + $0x70] sm:$0xff]
        %v876 = vld [vmem:[%s860 + $0x78] sm:$0xff]
        %v877 = vld [vmem:[%s860 + $0x80] sm:$0xff]
        %v878 = vld [vmem:[%s860 + $0x88] sm:$0xff]
        %880 = vset.pattern.permute.xlu0 0
        %881 = vperm.xlu0 %880, %v861
        %v882 = vpop.permute.xlu0 %881
        %885 = vset.pattern.permute.xlu0 0
        %886 = vperm.xlu0 %885, %v862
        %v887 = vpop.permute.xlu0 %886
        %890 = vset.pattern.permute.xlu0 0
        %891 = vperm.xlu0 %890, %v863
        %v892 = vpop.permute.xlu0 %891
        %895 = vset.pattern.permute.xlu0 0
        %896 = vperm.xlu0 %895, %v864
        %v897 = vpop.permute.xlu0 %896
        %900 = vset.pattern.permute.xlu0 0
        %901 = vperm.xlu0 %900, %v865
        %v902 = vpop.permute.xlu0 %901
        %905 = vset.pattern.permute.xlu0 0
        %906 = vperm.xlu0 %905, %v866
        %v907 = vpop.permute.xlu0 %906
        %910 = vset.pattern.permute.xlu0 0
        %911 = vperm.xlu0 %910, %v867
        %v912 = vpop.permute.xlu0 %911
        %915 = vset.pattern.permute.xlu0 0
        %916 = vperm.xlu0 %915, %v868
        %v917 = vpop.permute.xlu0 %916
        %920 = vset.pattern.permute.xlu0 0
        %921 = vperm.xlu0 %920, %v869
        %v922 = vpop.permute.xlu0 %921
        %925 = vset.pattern.permute.xlu0 0
        %926 = vperm.xlu0 %925, %v870
        %v927 = vpop.permute.xlu0 %926
        %930 = vset.pattern.permute.xlu0 0
        %931 = vperm.xlu0 %930, %v871
        %v932 = vpop.permute.xlu0 %931
        %935 = vset.pattern.permute.xlu0 0
        %936 = vperm.xlu0 %935, %v872
        %v937 = vpop.permute.xlu0 %936
        %940 = vset.pattern.permute.xlu0 0
        %941 = vperm.xlu0 %940, %v873
        %v942 = vpop.permute.xlu0 %941
        %945 = vset.pattern.permute.xlu0 0
        %946 = vperm.xlu0 %945, %v874
        %v947 = vpop.permute.xlu0 %946
        %950 = vset.pattern.permute.xlu0 0
        %951 = vperm.xlu0 %950, %v875
        %v952 = vpop.permute.xlu0 %951
        %955 = vset.pattern.permute.xlu0 0
        %956 = vperm.xlu0 %955, %v876
        %v957 = vpop.permute.xlu0 %956
        %960 = vset.pattern.permute.xlu0 0
        %961 = vperm.xlu0 %960, %v877
        %v962 = vpop.permute.xlu0 %961
        %965 = vset.pattern.permute.xlu0 0
        %966 = vperm.xlu0 %965, %v878
        %v967 = vpop.permute.xlu0 %966
        %v969 = vmul.f32 %v842, %v882
        %v970 = vmul.f32 %v843, %v887
        %v971 = vmul.f32 %v844, %v892
        %v972 = vmul.f32 %v845, %v897
        %v973 = vmul.f32 %v846, %v902
        %v974 = vmul.f32 %v847, %v907
        %v975 = vmul.f32 %v848, %v912
        %v976 = vmul.f32 %v849, %v917
        %v977 = vmul.f32 %v850, %v922
        %v978 = vmul.f32 %v851, %v927
        %v979 = vmul.f32 %v852, %v932
        %v980 = vmul.f32 %v853, %v937
        %v981 = vmul.f32 %v854, %v942
        %v982 = vmul.f32 %v855, %v947
        %v983 = vmul.f32 %v856, %v952
        %v984 = vmul.f32 %v857, %v957
        %v985 = vmul.f32 %v858, %v962
        %v986 = vmul.f32 %v859, %v967
        %v987 = vpack.c.bf16 %v970, %v969
        %v988 = vpack.c.bf16 %v972, %v971
        %v989 = vpack.c.bf16 %v974, %v973
        %v990 = vpack.c.bf16 %v976, %v975
        %v991 = vpack.c.bf16 %v978, %v977
        %v992 = vpack.c.bf16 %v980, %v979
        %v993 = vpack.c.bf16 %v982, %v981
        %v994 = vpack.c.bf16 %v984, %v983
        %v995 = vpack.c.bf16 %v986, %v985
        %s996 = sadd.s32 %s603, 18
        %s997 = smul.addr %s996, 4
        %s998 = scalar_lea.vmem %s560, %s997 [#allocation2]
        %v999 = vld [vmem:[%s998] sm:$0xf]
        %v1000 = vld [vmem:[%s998 + $0x4] sm:$0xf]
        %v1001 = vld [vmem:[%s998 + $0x8] sm:$0xf]
        %v1002 = vld [vmem:[%s998 + $0xc] sm:$0xf]
        %v1003 = vld [vmem:[%s998 + $0x10] sm:$0xf]
        %v1004 = vld [vmem:[%s998 + $0x14] sm:$0xf]
        %v1005 = vld [vmem:[%s998 + $0x18] sm:$0xf]
        %v1006 = vld [vmem:[%s998 + $0x1c] sm:$0xf]
        %v1007 = vld [vmem:[%s998 + $0x20] sm:$0xf]
        %v1008 = vld [vmem:[%s998 + $0x24] sm:$0xf]
        %v1009 = vld [vmem:[%s998 + $0x28] sm:$0xf]
        %v1010 = vld [vmem:[%s998 + $0x2c] sm:$0xf]
        %v1011 = vld [vmem:[%s998 + $0x30] sm:$0xf]
        %v1012 = vld [vmem:[%s998 + $0x34] sm:$0xf]
        %v1013 = vld [vmem:[%s998 + $0x38] sm:$0xf]
        %v1014 = vld [vmem:[%s998 + $0x3c] sm:$0xf]
        %v1015 = vld [vmem:[%s998 + $0x40] sm:$0xf]
        %v1016 = vld [vmem:[%s998 + $0x44] sm:$0xf]
        %v1035 = vunpack.c.l.b16 %v999
        %v1036 = vunpack.c.l.b16 %v1000
        %v1037 = vunpack.c.l.b16 %v1001
        %v1038 = vunpack.c.l.b16 %v1002
        %v1039 = vunpack.c.l.b16 %v1003
        %v1040 = vunpack.c.l.b16 %v1004
        %v1041 = vunpack.c.l.b16 %v1005
        %v1042 = vunpack.c.l.b16 %v1006
        %v1043 = vunpack.c.l.b16 %v1007
        %v1044 = vunpack.c.l.b16 %v1008
        %v1045 = vunpack.c.l.b16 %v1009
        %v1046 = vunpack.c.l.b16 %v1010
        %v1047 = vunpack.c.l.b16 %v1011
        %v1048 = vunpack.c.l.b16 %v1012
        %v1049 = vunpack.c.l.b16 %v1013
        %v1050 = vunpack.c.l.b16 %v1014
        %v1051 = vunpack.c.l.b16 %v1015
        %v1052 = vunpack.c.l.b16 %v1016
        %v1053 = vpack.c.b16 %v1036, %v1035
        %v1054 = vpack.c.b16 %v1038, %v1037
        %v1055 = vpack.c.b16 %v1040, %v1039
        %v1056 = vpack.c.b16 %v1042, %v1041
        %v1057 = vpack.c.b16 %v1044, %v1043
        %v1058 = vpack.c.b16 %v1046, %v1045
        %v1059 = vpack.c.b16 %v1048, %v1047
        %v1060 = vpack.c.b16 %v1050, %v1049
        %v1061 = vpack.c.b16 %v1052, %v1051
        %v1063 = vsel %vm709, %v1053, 0
        %v1066 = vsel %vm709, %v1054, 0
        %v1069 = vsel %vm709, %v1055, 0
        %v1072 = vsel %vm709, %v1056, 0
        %v1075 = vsel %vm709, %v1057, 0
        %v1078 = vsel %vm709, %v1058, 0
        %v1081 = vsel %vm709, %v1059, 0
        %v1084 = vsel %vm709, %v1060, 0
        %v1087 = vsel %vm709, %v1061, 0
        %1089 = vmatprep.subr.bf16.mxu0 0
        %1090 = vmatpush1.bf16.msra.mxu0 %v701
        %1091 = vmatprep.subr.bf16.mxu0 0
        %1092 = vmatpush1.bf16.msra.mxu0 %v702
        %1093 = vmatprep.subr.bf16.mxu0 0
        %1094 = vmatpush1.bf16.msra.mxu0 %v703
        %1095 = vmatprep.subr.bf16.mxu0 0
        %1096 = vmatpush1.bf16.msra.mxu0 %v704
        %1097 = vmatprep.subr.bf16.mxu0 0
        %1098 = vmatpush1.bf16.msra.mxu0 0
        %1099 = vmatprep.subr.bf16.mxu0 0
        %1100 = vmatpush1.bf16.msra.mxu0 0
        %1101 = vmatprep.subr.bf16.mxu0 0
        %1102 = vmatpush1.bf16.msra.mxu0 0
        %1103 = vmatprep.subr.bf16.mxu0 0
        %1104 = vmatpush1.bf16.msra.mxu0 0
        %1105 = vmatprep.subr.bf16.mxu0 0
        %1106 = vmatpush1.bf16.msra.mxu0 0
        %1107 = vmatprep.subr.bf16.mxu0 0
        %1108 = vmatpush1.bf16.msra.mxu0 0
        %1109 = vmatprep.subr.bf16.mxu0 0
        %1110 = vmatpush1.bf16.msra.mxu0 0
        %1111 = vmatprep.subr.bf16.mxu0 0
        %1112 = vmatpush1.bf16.msra.mxu0 0
        %1113 = vmatprep.subr.bf16.mxu0 0
        %1114 = vmatpush1.bf16.msra.mxu0 0
        %1115 = vmatprep.subr.bf16.mxu0 0
        %1116 = vmatpush1.bf16.msra.mxu0 0
        %1117 = vmatprep.subr.bf16.mxu0 0
        %1118 = vmatpush1.bf16.msra.mxu0 0
        %1119 = vmatprep.subr.bf16.mxu0 0
        %1120 = vmatpush1.bf16.msra.mxu0 0
        %1121 = vmatprep.mubr.bf16.mxu0 0
        %1122 = vmatmul.mubr.bf16.gmra.mrb[0].mxu0 %v1063
        %v1123 = vpop.f32.mrb[0].mxu0
        %v1124 = vadd.f32 %v638, %v1123
        %v1125 = vpop.f32.mrb[0].mxu0
        %v1126 = vpop.f32.mrb[0].mxu0
        %v1127 = vadd.f32 %v638, %v1126
        %v1128 = vpop.f32.mrb[0].mxu0
        %1129 = vmatprep.mubr.bf16.mxu0 0
        %1130 = vmatmul.mubr.bf16.gmra.mrb[0].mxu0 %v1066
        %v1131 = vpop.f32.mrb[0].mxu0
        %v1132 = vadd.f32 %v638, %v1131
        %v1133 = vpop.f32.mrb[0].mxu0
        %v1134 = vpop.f32.mrb[0].mxu0
        %v1135 = vadd.f32 %v638, %v1134
        %v1136 = vpop.f32.mrb[0].mxu0
        %1137 = vmatprep.mubr.bf16.mxu0 0
        %1138 = vmatmul.mubr.bf16.gmra.mrb[0].mxu0 %v1069
        %v1139 = vpop.f32.mrb[0].mxu0
        %v1140 = vadd.f32 %v638, %v1139
        %v1141 = vpop.f32.mrb[0].mxu0
        %v1142 = vpop.f32.mrb[0].mxu0
        %v1143 = vadd.f32 %v638, %v1142
        %v1144 = vpop.f32.mrb[0].mxu0
        %1145 = vmatprep.mubr.bf16.mxu0 0
        %1146 = vmatmul.mubr.bf16.gmra.mrb[0].mxu0 %v1072
        %v1147 = vpop.f32.mrb[0].mxu0
        %v1148 = vadd.f32 %v638, %v1147
        %v1149 = vpop.f32.mrb[0].mxu0
        %v1150 = vpop.f32.mrb[0].mxu0
        %v1151 = vadd.f32 %v638, %v1150
        %v1152 = vpop.f32.mrb[0].mxu0
        %1153 = vmatprep.mubr.bf16.mxu0 0
        %1154 = vmatmul.mubr.bf16.gmra.mrb[0].mxu0 %v1075
        %v1155 = vpop.f32.mrb[0].mxu0
        %v1156 = vadd.f32 %v638, %v1155
        %v1157 = vpop.f32.mrb[0].mxu0
        %v1158 = vpop.f32.mrb[0].mxu0
        %v1159 = vadd.f32 %v638, %v1158
        %v1160 = vpop.f32.mrb[0].mxu0
        %1161 = vmatprep.mubr.bf16.mxu0 0
        %1162 = vmatmul.mubr.bf16.gmra.mrb[0].mxu0 %v1078
        %v1163 = vpop.f32.mrb[0].mxu0
        %v1164 = vadd.f32 %v638, %v1163
        %v1165 = vpop.f32.mrb[0].mxu0
        %v1166 = vpop.f32.mrb[0].mxu0
        %v1167 = vadd.f32 %v638, %v1166
        %v1168 = vpop.f32.mrb[0].mxu0
        %1169 = vmatprep.mubr.bf16.mxu0 0
        %1170 = vmatmul.mubr.bf16.gmra.mrb[0].mxu0 %v1081
        %v1171 = vpop.f32.mrb[0].mxu0
        %v1172 = vadd.f32 %v638, %v1171
        %v1173 = vpop.f32.mrb[0].mxu0
        %v1174 = vpop.f32.mrb[0].mxu0
        %v1175 = vadd.f32 %v638, %v1174
        %v1176 = vpop.f32.mrb[0].mxu0
        %1177 = vmatprep.mubr.bf16.mxu0 0
        %1178 = vmatmul.mubr.bf16.gmra.mrb[0].mxu0 %v1084
        %v1179 = vpop.f32.mrb[0].mxu0
        %v1180 = vadd.f32 %v638, %v1179
        %v1181 = vpop.f32.mrb[0].mxu0
        %v1182 = vpop.f32.mrb[0].mxu0
        %v1183 = vadd.f32 %v638, %v1182
        %v1184 = vpop.f32.mrb[0].mxu0
        %1185 = vmatprep.mubr.bf16.mxu0 0
        %1186 = vmatmul.mubr.bf16.gmra.mrb[0].mxu0 %v1087
        %v1187 = vpop.f32.mrb[0].mxu0
        %v1188 = vadd.f32 %v638, %v1187
        %v1189 = vpop.f32.mrb[0].mxu0
        %v1190 = vpop.f32.mrb[0].mxu0
        %v1191 = vadd.f32 %v638, %v1190
        %v1192 = vpop.f32.mrb[0].mxu0
        %1193 = vdwg.mxu0
        %v1194 = vmax.f32 %v1124, 0.0
        %v1195 = vmax.f32 %v1127, 0.0
        %v1196 = vmax.f32 %v1132, 0.0
        %v1197 = vmax.f32 %v1135, 0.0
        %v1198 = vmax.f32 %v1140, 0.0
        %v1199 = vmax.f32 %v1143, 0.0
        %v1200 = vmax.f32 %v1148, 0.0
        %v1201 = vmax.f32 %v1151, 0.0
        %v1202 = vmax.f32 %v1156, 0.0
        %v1203 = vmax.f32 %v1159, 0.0
        %v1204 = vmax.f32 %v1164, 0.0
        %v1205 = vmax.f32 %v1167, 0.0
        %v1206 = vmax.f32 %v1172, 0.0
        %v1207 = vmax.f32 %v1175, 0.0
        %v1208 = vmax.f32 %v1180, 0.0
        %v1209 = vmax.f32 %v1183, 0.0
        %v1210 = vmax.f32 %v1188, 0.0
        %v1211 = vmax.f32 %v1191, 0.0
        %s1212 = sadd.s32 %s602, 144
        %s1213 = scalar_lea.vmem %s1, %s1212
        %v1214 = vld [vmem:[%s1213] sm:$0xff]
        %v1215 = vld [vmem:[%s1213 + $0x8] sm:$0xff]
        %v1216 = vld [vmem:[%s1213 + $0x10] sm:$0xff]
        %v1217 = vld [vmem:[%s1213 + $0x18] sm:$0xff]
        %v1218 = vld [vmem:[%s1213 + $0x20] sm:$0xff]
        %v1219 = vld [vmem:[%s1213 + $0x28] sm:$0xff]
        %v1220 = vld [vmem:[%s1213 + $0x30] sm:$0xff]
        %v1221 = vld [vmem:[%s1213 + $0x38] sm:$0xff]
        %v1222 = vld [vmem:[%s1213 + $0x40] sm:$0xff]
        %v1223 = vld [vmem:[%s1213 + $0x48] sm:$0xff]
        %v1224 = vld [vmem:[%s1213 + $0x50] sm:$0xff]
        %v1225 = vld [vmem:[%s1213 + $0x58] sm:$0xff]
        %v1226 = vld [vmem:[%s1213 + $0x60] sm:$0xff]
        %v1227 = vld [vmem:[%s1213 + $0x68] sm:$0xff]
        %v1228 = vld [vmem:[%s1213 + $0x70] sm:$0xff]
        %v1229 = vld [vmem:[%s1213 + $0x78] sm:$0xff]
        %v1230 = vld [vmem:[%s1213 + $0x80] sm:$0xff]
        %v1231 = vld [vmem:[%s1213 + $0x88] sm:$0xff]
        %1233 = vset.pattern.permute.xlu0 0
        %1234 = vperm.xlu0 %1233, %v1214
        %v1235 = vpop.permute.xlu0 %1234
        %1238 = vset.pattern.permute.xlu0 0
        %1239 = vperm.xlu0 %1238, %v1215
        %v1240 = vpop.permute.xlu0 %1239
        %1243 = vset.pattern.permute.xlu0 0
        %1244 = vperm.xlu0 %1243, %v1216
        %v1245 = vpop.permute.xlu0 %1244
        %1248 = vset.pattern.permute.xlu0 0
        %1249 = vperm.xlu0 %1248, %v1217
        %v1250 = vpop.permute.xlu0 %1249
        %1253 = vset.pattern.permute.xlu0 0
        %1254 = vperm.xlu0 %1253, %v1218
        %v1255 = vpop.permute.xlu0 %1254
        %1258 = vset.pattern.permute.xlu0 0
        %1259 = vperm.xlu0 %1258, %v1219
        %v1260 = vpop.permute.xlu0 %1259
        %1263 = vset.pattern.permute.xlu0 0
        %1264 = vperm.xlu0 %1263, %v1220
        %v1265 = vpop.permute.xlu0 %1264
        %1268 = vset.pattern.permute.xlu0 0
        %1269 = vperm.xlu0 %1268, %v1221
        %v1270 = vpop.permute.xlu0 %1269
        %1273 = vset.pattern.permute.xlu0 0
        %1274 = vperm.xlu0 %1273, %v1222
        %v1275 = vpop.permute.xlu0 %1274
        %1278 = vset.pattern.permute.xlu0 0
        %1279 = vperm.xlu0 %1278, %v1223
        %v1280 = vpop.permute.xlu0 %1279
        %1283 = vset.pattern.permute.xlu0 0
        %1284 = vperm.xlu0 %1283, %v1224
        %v1285 = vpop.permute.xlu0 %1284
        %1288 = vset.pattern.permute.xlu0 0
        %1289 = vperm.xlu0 %1288, %v1225
        %v1290 = vpop.permute.xlu0 %1289
        %1293 = vset.pattern.permute.xlu0 0
        %1294 = vperm.xlu0 %1293, %v1226
        %v1295 = vpop.permute.xlu0 %1294
        %1298 = vset.pattern.permute.xlu0 0
        %1299 = vperm.xlu0 %1298, %v1227
        %v1300 = vpop.permute.xlu0 %1299
        %1303 = vset.pattern.permute.xlu0 0
        %1304 = vperm.xlu0 %1303, %v1228
        %v1305 = vpop.permute.xlu0 %1304
        %1308 = vset.pattern.permute.xlu0 0
        %1309 = vperm.xlu0 %1308, %v1229
        %v1310 = vpop.permute.xlu0 %1309
        %1313 = vset.pattern.permute.xlu0 0
        %1314 = vperm.xlu0 %1313, %v1230
        %v1315 = vpop.permute.xlu0 %1314
        %1318 = vset.pattern.permute.xlu0 0
        %1319 = vperm.xlu0 %1318, %v1231
        %v1320 = vpop.permute.xlu0 %1319
        %v1322 = vmul.f32 %v1194, %v1235
        %v1323 = vmul.f32 %v1195, %v1240
        %v1324 = vmul.f32 %v1196, %v1245
        %v1325 = vmul.f32 %v1197, %v1250
        %v1326 = vmul.f32 %v1198, %v1255
        %v1327 = vmul.f32 %v1199, %v1260
        %v1328 = vmul.f32 %v1200, %v1265
        %v1329 = vmul.f32 %v1201, %v1270
        %v1330 = vmul.f32 %v1202, %v1275
        %v1331 = vmul.f32 %v1203, %v1280
        %v1332 = vmul.f32 %v1204, %v1285
        %v1333 = vmul.f32 %v1205, %v1290
        %v1334 = vmul.f32 %v1206, %v1295
        %v1335 = vmul.f32 %v1207, %v1300
        %v1336 = vmul.f32 %v1208, %v1305
        %v1337 = vmul.f32 %v1209, %v1310
        %v1338 = vmul.f32 %v1210, %v1315
        %v1339 = vmul.f32 %v1211, %v1320
        %v1340 = vpack.c.bf16 %v1323, %v1322
        %v1341 = vpack.c.bf16 %v1325, %v1324
        %v1342 = vpack.c.bf16 %v1327, %v1326
        %v1343 = vpack.c.bf16 %v1329, %v1328
        %v1344 = vpack.c.bf16 %v1331, %v1330
        %v1345 = vpack.c.bf16 %v1333, %v1332
        %v1346 = vpack.c.bf16 %v1335, %v1334
        %v1347 = vpack.c.bf16 %v1337, %v1336
        %v1348 = vpack.c.bf16 %v1339, %v1338
        %s1349 = sadd.s32 %s603, 36
        %s1350 = smul.addr %s1349, 4
        %s1351 = scalar_lea.vmem %s560, %s1350 [#allocation2]
        %v1352 = vld [vmem:[%s1351] sm:$0xf]
        %v1353 = vld [vmem:[%s1351 + $0x4] sm:$0xf]
        %v1354 = vld [vmem:[%s1351 + $0x8] sm:$0xf]
        %v1355 = vld [vmem:[%s1351 + $0xc] sm:$0xf]
        %v1356 = vld [vmem:[%s1351 + $0x10] sm:$0xf]
        %v1357 = vld [vmem:[%s1351 + $0x14] sm:$0xf]
        %v1358 = vld [vmem:[%s1351 + $0x18] sm:$0xf]
        %v1359 = vld [vmem:[%s1351 + $0x1c] sm:$0xf]
        %v1360 = vld [vmem:[%s1351 + $0x20] sm:$0xf]
        %v1361 = vld [vmem:[%s1351 + $0x24] sm:$0xf]
        %v1362 = vld [vmem:[%s1351 + $0x28] sm:$0xf]
        %v1363 = vld [vmem:[%s1351 + $0x2c] sm:$0xf]
        %v1364 = vld [vmem:[%s1351 + $0x30] sm:$0xf]
        %v1365 = vld [vmem:[%s1351 + $0x34] sm:$0xf]
        %v1366 = vld [vmem:[%s1351 + $0x38] sm:$0xf]
        %v1367 = vld [vmem:[%s1351 + $0x3c] sm:$0xf]
        %v1368 = vld [vmem:[%s1351 + $0x40] sm:$0xf]
        %v1369 = vld [vmem:[%s1351 + $0x44] sm:$0xf]
        %v1388 = vunpack.c.l.b16 %v1352
        %v1389 = vunpack.c.l.b16 %v1353
        %v1390 = vunpack.c.l.b16 %v1354
        %v1391 = vunpack.c.l.b16 %v1355
        %v1392 = vunpack.c.l.b16 %v1356
        %v1393 = vunpack.c.l.b16 %v1357
        %v1394 = vunpack.c.l.b16 %v1358
        %v1395 = vunpack.c.l.b16 %v1359
        %v1396 = vunpack.c.l.b16 %v1360
        %v1397 = vunpack.c.l.b16 %v1361
        %v1398 = vunpack.c.l.b16 %v1362
        %v1399 = vunpack.c.l.b16 %v1363
        %v1400 = vunpack.c.l.b16 %v1364
        %v1401 = vunpack.c.l.b16 %v1365
        %v1402 = vunpack.c.l.b16 %v1366
        %v1403 = vunpack.c.l.b16 %v1367
        %v1404 = vunpack.c.l.b16 %v1368
        %v1405 = vunpack.c.l.b16 %v1369
        %v1406 = vpack.c.b16 %v1389, %v1388
        %v1407 = vpack.c.b16 %v1391, %v1390
        %v1408 = vpack.c.b16 %v1393, %v1392
        %v1409 = vpack.c.b16 %v1395, %v1394
        %v1410 = vpack.c.b16 %v1397, %v1396
        %v1411 = vpack.c.b16 %v1399, %v1398
        %v1412 = vpack.c.b16 %v1401, %v1400
        %v1413 = vpack.c.b16 %v1403, %v1402
        %v1414 = vpack.c.b16 %v1405, %v1404
        %v1416 = vsel %vm709, %v1406, 0
        %v1419 = vsel %vm709, %v1407, 0
        %v1422 = vsel %vm709, %v1408, 0
        %v1425 = vsel %vm709, %v1409, 0
        %v1428 = vsel %vm709, %v1410, 0
        %v1431 = vsel %vm709, %v1411, 0
        %v1434 = vsel %vm709, %v1412, 0
        %v1437 = vsel %vm709, %v1413, 0
        %v1440 = vsel %vm709, %v1414, 0
        %1442 = vmatprep.subr.bf16.mxu0 0
        %1443 = vmatpush1.bf16.msra.mxu0 %v701
        %1444 = vmatprep.subr.bf16.mxu0 0
        %1445 = vmatpush1.bf16.msra.mxu0 %v702
        %1446 = vmatprep.subr.bf16.mxu0 0
        %1447 = vmatpush1.bf16.msra.mxu0 %v703
        %1448 = vmatprep.subr.bf16.mxu0 0
        %1449 = vmatpush1.bf16.msra.mxu0 %v704
        %1450 = vmatprep.subr.bf16.mxu0 0
        %1451 = vmatpush1.bf16.msra.mxu0 0
        %1452 = vmatprep.subr.bf16.mxu0 0
        %1453 = vmatpush1.bf16.msra.mxu0 0
        %1454 = vmatprep.subr.bf16.mxu0 0
        %1455 = vmatpush1.bf16.msra.mxu0 0
        %1456 = vmatprep.subr.bf16.mxu0 0
        %1457 = vmatpush1.bf16.msra.mxu0 0
        %1458 = vmatprep.subr.bf16.mxu0 0
        %1459 = vmatpush1.bf16.msra.mxu0 0
        %1460 = vmatprep.subr.bf16.mxu0 0
        %1461 = vmatpush1.bf16.msra.mxu0 0
        %1462 = vmatprep.subr.bf16.mxu0 0
        %1463 = vmatpush1.bf16.msra.mxu0 0
        %1464 = vmatprep.subr.bf16.mxu0 0
        %1465 = vmatpush1.bf16.msra.mxu0 0
        %1466 = vmatprep.subr.bf16.mxu0 0
        %1467 = vmatpush1.bf16.msra.mxu0 0
        %1468 = vmatprep.subr.bf16.mxu0 0
        %1469 = vmatpush1.bf16.msra.mxu0 0
        %1470 = vmatprep.subr.bf16.mxu0 0
        %1471 = vmatpush1.bf16.msra.mxu0 0
        %1472 = vmatprep.subr.bf16.mxu0 0
        %1473 = vmatpush1.bf16.msra.mxu0 0
        %1474 = vmatprep.mubr.bf16.mxu0 0
        %1475 = vmatmul.mubr.bf16.gmra.mrb[0].mxu0 %v1416
        %v1476 = vpop.f32.mrb[0].mxu0
        %v1477 = vadd.f32 %v638, %v1476
        %v1478 = vpop.f32.mrb[0].mxu0
        %v1479 = vpop.f32.mrb[0].mxu0
        %v1480 = vadd.f32 %v638, %v1479
        %v1481 = vpop.f32.mrb[0].mxu0
        %1482 = vmatprep.mubr.bf16.mxu0 0
        %1483 = vmatmul.mubr.bf16.gmra.mrb[0].mxu0 %v1419
        %v1484 = vpop.f32.mrb[0].mxu0
        %v1485 = vadd.f32 %v638, %v1484
        %v1486 = vpop.f32.mrb[0].mxu0
        %v1487 = vpop.f32.mrb[0].mxu0
        %v1488 = vadd.f32 %v638, %v1487
        %v1489 = vpop.f32.mrb[0].mxu0
        %1490 = vmatprep.mubr.bf16.mxu0 0
        %1491 = vmatmul.mubr.bf16.gmra.mrb[0].mxu0 %v1422
        %v1492 = vpop.f32.mrb[0].mxu0
        %v1493 = vadd.f32 %v638, %v1492
        %v1494 = vpop.f32.mrb[0].mxu0
        %v1495 = vpop.f32.mrb[0].mxu0
        %v1496 = vadd.f32 %v638, %v1495
        %v1497 = vpop.f32.mrb[0].mxu0
        %1498 = vmatprep.mubr.bf16.mxu0 0
        %1499 = vmatmul.mubr.bf16.gmra.mrb[0].mxu0 %v1425
        %v1500 = vpop.f32.mrb[0].mxu0
        %v1501 = vadd.f32 %v638, %v1500
        %v1502 = vpop.f32.mrb[0].mxu0
        %v1503 = vpop.f32.mrb[0].mxu0
        %v1504 = vadd.f32 %v638, %v1503
        %v1505 = vpop.f32.mrb[0].mxu0
        %1506 = vmatprep.mubr.bf16.mxu0 0
        %1507 = vmatmul.mubr.bf16.gmra.mrb[0].mxu0 %v1428
        %v1508 = vpop.f32.mrb[0].mxu0
        %v1509 = vadd.f32 %v638, %v1508
        %v1510 = vpop.f32.mrb[0].mxu0
        %v1511 = vpop.f32.mrb[0].mxu0
        %v1512 = vadd.f32 %v638, %v1511
        %v1513 = vpop.f32.mrb[0].mxu0
        %1514 = vmatprep.mubr.bf16.mxu0 0
        %1515 = vmatmul.mubr.bf16.gmra.mrb[0].mxu0 %v1431
        %v1516 = vpop.f32.mrb[0].mxu0
        %v1517 = vadd.f32 %v638, %v1516
        %v1518 = vpop.f32.mrb[0].mxu0
        %v1519 = vpop.f32.mrb[0].mxu0
        %v1520 = vadd.f32 %v638, %v1519
        %v1521 = vpop.f32.mrb[0].mxu0
        %1522 = vmatprep.mubr.bf16.mxu0 0
        %1523 = vmatmul.mubr.bf16.gmra.mrb[0].mxu0 %v1434
        %v1524 = vpop.f32.mrb[0].mxu0
        %v1525 = vadd.f32 %v638, %v1524
        %v1526 = vpop.f32.mrb[0].mxu0
        %v1527 = vpop.f32.mrb[0].mxu0
        %v1528 = vadd.f32 %v638, %v1527
        %v1529 = vpop.f32.mrb[0].mxu0
        %1530 = vmatprep.mubr.bf16.mxu0 0
        %1531 = vmatmul.mubr.bf16.gmra.mrb[0].mxu0 %v1437
        %v1532 = vpop.f32.mrb[0].mxu0
        %v1533 = vadd.f32 %v638, %v1532
        %v1534 = vpop.f32.mrb[0].mxu0
        %v1535 = vpop.f32.mrb[0].mxu0
        %v1536 = vadd.f32 %v638, %v1535
        %v1537 = vpop.f32.mrb[0].mxu0
        %1538 = vmatprep.mubr.bf16.mxu0 0
        %1539 = vmatmul.mubr.bf16.gmra.mrb[0].mxu0 %v1440
        %v1540 = vpop.f32.mrb[0].mxu0
        %v1541 = vpop.f32.mrb[0].mxu0
        %v1542 = vpop.f32.mrb[0].mxu0
        %v1543 = vpop.f32.mrb[0].mxu0
        %1544 = vdwg.mxu0
        %v1545 = vmax.f32 %v1477, 0.0
        %v1546 = vmax.f32 %v1480, 0.0
        %v1547 = vmax.f32 %v1485, 0.0
        %v1548 = vmax.f32 %v1488, 0.0
        %v1549 = vmax.f32 %v1493, 0.0
        %v1550 = vmax.f32 %v1496, 0.0
        %v1551 = vmax.f32 %v1501, 0.0
        %v1552 = vmax.f32 %v1504, 0.0
        %v1553 = vmax.f32 %v1509, 0.0
        %v1554 = vmax.f32 %v1512, 0.0
        %v1555 = vmax.f32 %v1517, 0.0
        %v1556 = vmax.f32 %v1520, 0.0
        %v1557 = vmax.f32 %v1525, 0.0
        %v1558 = vmax.f32 %v1528, 0.0
        %v1559 = vmax.f32 %v1533, 0.0
        %v1560 = vmax.f32 %v1536, 0.0
        %s1561 = sadd.s32 %s602, 288
        %s1562 = scalar_lea.vmem %s1, %s1561
        %v1563 = vld [vmem:[%s1562] sm:$0xff]
        %v1564 = vld [vmem:[%s1562 + $0x8] sm:$0xff]
        %v1565 = vld [vmem:[%s1562 + $0x10] sm:$0xff]
        %v1566 = vld [vmem:[%s1562 + $0x18] sm:$0xff]
        %v1567 = vld [vmem:[%s1562 + $0x20] sm:$0xff]
        %v1568 = vld [vmem:[%s1562 + $0x28] sm:$0xff]
        %v1569 = vld [vmem:[%s1562 + $0x30] sm:$0xff]
        %v1570 = vld [vmem:[%s1562 + $0x38] sm:$0xff]
        %v1571 = vld [vmem:[%s1562 + $0x40] sm:$0xff]
        %v1572 = vld [vmem:[%s1562 + $0x48] sm:$0xff]
        %v1573 = vld [vmem:[%s1562 + $0x50] sm:$0xff]
        %v1574 = vld [vmem:[%s1562 + $0x58] sm:$0xff]
        %v1575 = vld [vmem:[%s1562 + $0x60] sm:$0xff]
        %v1576 = vld [vmem:[%s1562 + $0x68] sm:$0xff]
        %v1577 = vld [vmem:[%s1562 + $0x70] sm:$0xff]
        %v1578 = vld [vmem:[%s1562 + $0x78] sm:$0xff]
        %1580 = vset.pattern.permute.xlu0 0
        %1581 = vperm.xlu0 %1580, %v1563
        %v1582 = vpop.permute.xlu0 %1581
        %1585 = vset.pattern.permute.xlu0 0
        %1586 = vperm.xlu0 %1585, %v1564
        %v1587 = vpop.permute.xlu0 %1586
        %1590 = vset.pattern.permute.xlu0 0
        %1591 = vperm.xlu0 %1590, %v1565
        %v1592 = vpop.permute.xlu0 %1591
        %1595 = vset.pattern.permute.xlu0 0
        %1596 = vperm.xlu0 %1595, %v1566
        %v1597 = vpop.permute.xlu0 %1596
        %1600 = vset.pattern.permute.xlu0 0
        %1601 = vperm.xlu0 %1600, %v1567
        %v1602 = vpop.permute.xlu0 %1601
        %1605 = vset.pattern.permute.xlu0 0
        %1606 = vperm.xlu0 %1605, %v1568
        %v1607 = vpop.permute.xlu0 %1606
        %1610 = vset.pattern.permute.xlu0 0
        %1611 = vperm.xlu0 %1610, %v1569
        %v1612 = vpop.permute.xlu0 %1611
        %1615 = vset.pattern.permute.xlu0 0
        %1616 = vperm.xlu0 %1615, %v1570
        %v1617 = vpop.permute.xlu0 %1616
        %1620 = vset.pattern.permute.xlu0 0
        %1621 = vperm.xlu0 %1620, %v1571
        %v1622 = vpop.permute.xlu0 %1621
        %1625 = vset.pattern.permute.xlu0 0
        %1626 = vperm.xlu0 %1625, %v1572
        %v1627 = vpop.permute.xlu0 %1626
        %1630 = vset.pattern.permute.xlu0 0
        %1631 = vperm.xlu0 %1630, %v1573
        %v1632 = vpop.permute.xlu0 %1631
        %1635 = vset.pattern.permute.xlu0 0
        %1636 = vperm.xlu0 %1635, %v1574
        %v1637 = vpop.permute.xlu0 %1636
        %1640 = vset.pattern.permute.xlu0 0
        %1641 = vperm.xlu0 %1640, %v1575
        %v1642 = vpop.permute.xlu0 %1641
        %1645 = vset.pattern.permute.xlu0 0
        %1646 = vperm.xlu0 %1645, %v1576
        %v1647 = vpop.permute.xlu0 %1646
        %1650 = vset.pattern.permute.xlu0 0
        %1651 = vperm.xlu0 %1650, %v1577
        %v1652 = vpop.permute.xlu0 %1651
        %1655 = vset.pattern.permute.xlu0 0
        %1656 = vperm.xlu0 %1655, %v1578
        %v1657 = vpop.permute.xlu0 %1656
        %v1659 = vmul.f32 %v1545, %v1582
        %v1660 = vmul.f32 %v1546, %v1587
        %v1661 = vmul.f32 %v1547, %v1592
        %v1662 = vmul.f32 %v1548, %v1597
        %v1663 = vmul.f32 %v1549, %v1602
        %v1664 = vmul.f32 %v1550, %v1607
        %v1665 = vmul.f32 %v1551, %v1612
        %v1666 = vmul.f32 %v1552, %v1617
        %v1667 = vmul.f32 %v1553, %v1622
        %v1668 = vmul.f32 %v1554, %v1627
        %v1669 = vmul.f32 %v1555, %v1632
        %v1670 = vmul.f32 %v1556, %v1637
        %v1671 = vmul.f32 %v1557, %v1642
        %v1672 = vmul.f32 %v1558, %v1647
        %v1673 = vmul.f32 %v1559, %v1652
        %v1674 = vmul.f32 %v1560, %v1657
        %v1675 = vpack.c.bf16 %v1660, %v1659
        %v1676 = vpack.c.bf16 %v1662, %v1661
        %v1677 = vpack.c.bf16 %v1664, %v1663
        %v1678 = vpack.c.bf16 %v1666, %v1665
        %v1679 = vpack.c.bf16 %v1668, %v1667
        %v1680 = vpack.c.bf16 %v1670, %v1669
        %v1681 = vpack.c.bf16 %v1672, %v1671
        %v1682 = vpack.c.bf16 %v1674, %v1673
        %s1683 = sadd.s32 %s603, 54
        %s1684 = smul.addr %s1683, 4
        %s1685 = scalar_lea.vmem %s560, %s1684 [#allocation2]
        %v1686 = vld [vmem:[%s1685] sm:$0xf]
        %v1687 = vld [vmem:[%s1685 + $0x4] sm:$0xf]
        %v1688 = vld [vmem:[%s1685 + $0x8] sm:$0xf]
        %v1689 = vld [vmem:[%s1685 + $0xc] sm:$0xf]
        %v1690 = vld [vmem:[%s1685 + $0x10] sm:$0xf]
        %v1691 = vld [vmem:[%s1685 + $0x14] sm:$0xf]
        %v1692 = vld [vmem:[%s1685 + $0x18] sm:$0xf]
        %v1693 = vld [vmem:[%s1685 + $0x1c] sm:$0xf]
        %v1694 = vld [vmem:[%s1685 + $0x20] sm:$0xf]
        %v1695 = vld [vmem:[%s1685 + $0x24] sm:$0xf]
        %v1696 = vld [vmem:[%s1685 + $0x28] sm:$0xf]
        %v1697 = vld [vmem:[%s1685 + $0x2c] sm:$0xf]
        %v1698 = vld [vmem:[%s1685 + $0x30] sm:$0xf]
        %v1699 = vld [vmem:[%s1685 + $0x34] sm:$0xf]
        %v1700 = vld [vmem:[%s1685 + $0x38] sm:$0xf]
        %v1701 = vld [vmem:[%s1685 + $0x3c] sm:$0xf]
        %v1702 = vld [vmem:[%s1685 + $0x40] sm:$0xf]
        %v1703 = vld [vmem:[%s1685 + $0x44] sm:$0xf]
        %v1722 = vunpack.c.l.b16 %v1686
        %v1723 = vunpack.c.l.b16 %v1687
        %v1724 = vunpack.c.l.b16 %v1688
        %v1725 = vunpack.c.l.b16 %v1689
        %v1726 = vunpack.c.l.b16 %v1690
        %v1727 = vunpack.c.l.b16 %v1691
        %v1728 = vunpack.c.l.b16 %v1692
        %v1729 = vunpack.c.l.b16 %v1693
        %v1730 = vunpack.c.l.b16 %v1694
        %v1731 = vunpack.c.l.b16 %v1695
        %v1732 = vunpack.c.l.b16 %v1696
        %v1733 = vunpack.c.l.b16 %v1697
        %v1734 = vunpack.c.l.b16 %v1698
        %v1735 = vunpack.c.l.b16 %v1699
        %v1736 = vunpack.c.l.b16 %v1700
        %v1737 = vunpack.c.l.b16 %v1701
        %v1738 = vunpack.c.l.b16 %v1702
        %v1739 = vunpack.c.l.b16 %v1703
        %v1740 = vpack.c.b16 %v1723, %v1722
        %v1741 = vpack.c.b16 %v1725, %v1724
        %v1742 = vpack.c.b16 %v1727, %v1726
        %v1743 = vpack.c.b16 %v1729, %v1728
        %v1744 = vpack.c.b16 %v1731, %v1730
        %v1745 = vpack.c.b16 %v1733, %v1732
        %v1746 = vpack.c.b16 %v1735, %v1734
        %v1747 = vpack.c.b16 %v1737, %v1736
        %v1748 = vpack.c.b16 %v1739, %v1738
        %v1750 = vsel %vm709, %v1740, 0
        %v1753 = vsel %vm709, %v1741, 0
        %v1756 = vsel %vm709, %v1742, 0
        %v1759 = vsel %vm709, %v1743, 0
        %v1762 = vsel %vm709, %v1744, 0
        %v1765 = vsel %vm709, %v1745, 0
        %v1768 = vsel %vm709, %v1746, 0
        %v1771 = vsel %vm709, %v1747, 0
        %v1774 = vsel %vm709, %v1748, 0
        %1776 = vmatprep.subr.bf16.mxu0 0
        %1777 = vmatpush1.bf16.msra.mxu0 %v701
        %1778 = vmatprep.subr.bf16.mxu0 0
        %1779 = vmatpush1.bf16.msra.mxu0 %v702
        %1780 = vmatprep.subr.bf16.mxu0 0
        %1781 = vmatpush1.bf16.msra.mxu0 %v703
        %1782 = vmatprep.subr.bf16.mxu0 0
        %1783 = vmatpush1.bf16.msra.mxu0 %v704
        %1784 = vmatprep.subr.bf16.mxu0 0
        %1785 = vmatpush1.bf16.msra.mxu0 0
        %1786 = vmatprep.subr.bf16.mxu0 0
        %1787 = vmatpush1.bf16.msra.mxu0 0
        %1788 = vmatprep.subr.bf16.mxu0 0
        %1789 = vmatpush1.bf16.msra.mxu0 0
        %1790 = vmatprep.subr.bf16.mxu0 0
        %1791 = vmatpush1.bf16.msra.mxu0 0
        %1792 = vmatprep.subr.bf16.mxu0 0
        %1793 = vmatpush1.bf16.msra.mxu0 0
        %1794 = vmatprep.subr.bf16.mxu0 0
        %1795 = vmatpush1.bf16.msra.mxu0 0
        %1796 = vmatprep.subr.bf16.mxu0 0
        %1797 = vmatpush1.bf16.msra.mxu0 0
        %1798 = vmatprep.subr.bf16.mxu0 0
        %1799 = vmatpush1.bf16.msra.mxu0 0
        %1800 = vmatprep.subr.bf16.mxu0 0
        %1801 = vmatpush1.bf16.msra.mxu0 0
        %1802 = vmatprep.subr.bf16.mxu0 0
        %1803 = vmatpush1.bf16.msra.mxu0 0
        %1804 = vmatprep.subr.bf16.mxu0 0
        %1805 = vmatpush1.bf16.msra.mxu0 0
        %1806 = vmatprep.subr.bf16.mxu0 0
        %1807 = vmatpush1.bf16.msra.mxu0 0
        %1808 = vmatprep.mubr.bf16.mxu0 0
        %1809 = vmatmul.mubr.bf16.gmra.mrb[0].mxu0 %v1750
        %v1810 = vpop.f32.mrb[0].mxu0
        %v1811 = vadd.f32 %v638, %v1810
        %v1812 = vpop.f32.mrb[0].mxu0
        %v1813 = vpop.f32.mrb[0].mxu0
        %v1814 = vadd.f32 %v638, %v1813
        %v1815 = vpop.f32.mrb[0].mxu0
        %1816 = vmatprep.mubr.bf16.mxu0 0
        %1817 = vmatmul.mubr.bf16.gmra.mrb[0].mxu0 %v1753
        %v1818 = vpop.f32.mrb[0].mxu0
        %v1819 = vadd.f32 %v638, %v1818
        %v1820 = vpop.f32.mrb[0].mxu0
        %v1821 = vpop.f32.mrb[0].mxu0
        %v1822 = vadd.f32 %v638, %v1821
        %v1823 = vpop.f32.mrb[0].mxu0
        %1824 = vmatprep.mubr.bf16.mxu0 0
        %1825 = vmatmul.mubr.bf16.gmra.mrb[0].mxu0 %v1756
        %v1826 = vpop.f32.mrb[0].mxu0
        %v1827 = vadd.f32 %v638, %v1826
        %v1828 = vpop.f32.mrb[0].mxu0
        %v1829 = vpop.f32.mrb[0].mxu0
        %v1830 = vadd.f32 %v638, %v1829
        %v1831 = vpop.f32.mrb[0].mxu0
        %1832 = vmatprep.mubr.bf16.mxu0 0
        %1833 = vmatmul.mubr.bf16.gmra.mrb[0].mxu0 %v1759
        %v1834 = vpop.f32.mrb[0].mxu0
        %v1835 = vadd.f32 %v638, %v1834
        %v1836 = vpop.f32.mrb[0].mxu0
        %v1837 = vpop.f32.mrb[0].mxu0
        %v1838 = vadd.f32 %v638, %v1837
        %v1839 = vpop.f32.mrb[0].mxu0
        %1840 = vmatprep.mubr.bf16.mxu0 0
        %1841 = vmatmul.mubr.bf16.gmra.mrb[0].mxu0 %v1762
        %v1842 = vpop.f32.mrb[0].mxu0
        %v1843 = vadd.f32 %v638, %v1842
        %v1844 = vpop.f32.mrb[0].mxu0
        %v1845 = vpop.f32.mrb[0].mxu0
        %v1846 = vadd.f32 %v638, %v1845
        %v1847 = vpop.f32.mrb[0].mxu0
        %1848 = vmatprep.mubr.bf16.mxu0 0
        %1849 = vmatmul.mubr.bf16.gmra.mrb[0].mxu0 %v1765
        %v1850 = vpop.f32.mrb[0].mxu0
        %v1851 = vadd.f32 %v638, %v1850
        %v1852 = vpop.f32.mrb[0].mxu0
        %v1853 = vpop.f32.mrb[0].mxu0
        %v1854 = vadd.f32 %v638, %v1853
        %v1855 = vpop.f32.mrb[0].mxu0
        %1856 = vmatprep.mubr.bf16.mxu0 0
        %1857 = vmatmul.mubr.bf16.gmra.mrb[0].mxu0 %v1768
        %v1858 = vpop.f32.mrb[0].mxu0
        %v1859 = vadd.f32 %v638, %v1858
        %v1860 = vpop.f32.mrb[0].mxu0
        %v1861 = vpop.f32.mrb[0].mxu0
        %v1862 = vadd.f32 %v638, %v1861
        %v1863 = vpop.f32.mrb[0].mxu0
        %1864 = vmatprep.mubr.bf16.mxu0 0
        %1865 = vmatmul.mubr.bf16.gmra.mrb[0].mxu0 %v1771
        %v1866 = vpop.f32.mrb[0].mxu0
        %v1867 = vadd.f32 %v638, %v1866
        %v1868 = vpop.f32.mrb[0].mxu0
        %v1869 = vpop.f32.mrb[0].mxu0
        %v1870 = vadd.f32 %v638, %v1869
        %v1871 = vpop.f32.mrb[0].mxu0
        %1872 = vmatprep.mubr.bf16.mxu0 0
        %1873 = vmatmul.mubr.bf16.gmra.mrb[0].mxu0 %v1774
        %v1874 = vpop.f32.mrb[0].mxu0
        %v1875 = vpop.f32.mrb[0].mxu0
        %v1876 = vpop.f32.mrb[0].mxu0
        %v1877 = vpop.f32.mrb[0].mxu0
        %1878 = vdwg.mxu0
        %v1879 = vmax.f32 %v1811, 0.0
        %v1880 = vmax.f32 %v1814, 0.0
        %v1881 = vmax.f32 %v1819, 0.0
        %v1882 = vmax.f32 %v1822, 0.0
        %v1883 = vmax.f32 %v1827, 0.0
        %v1884 = vmax.f32 %v1830, 0.0
        %v1885 = vmax.f32 %v1835, 0.0
        %v1886 = vmax.f32 %v1838, 0.0
        %v1887 = vmax.f32 %v1843, 0.0
        %v1888 = vmax.f32 %v1846, 0.0
        %v1889 = vmax.f32 %v1851, 0.0
        %v1890 = vmax.f32 %v1854, 0.0
        %v1891 = vmax.f32 %v1859, 0.0
        %v1892 = vmax.f32 %v1862, 0.0
        %v1893 = vmax.f32 %v1867, 0.0
        %v1894 = vmax.f32 %v1870, 0.0
        %s1895 = sadd.s32 %s602, 432
        %s1896 = scalar_lea.vmem %s1, %s1895
        %v1897 = vld [vmem:[%s1896] sm:$0xff]
        %v1898 = vld [vmem:[%s1896 + $0x8] sm:$0xff]
        %v1899 = vld [vmem:[%s1896 + $0x10] sm:$0xff]
        %v1900 = vld [vmem:[%s1896 + $0x18] sm:$0xff]
        %v1901 = vld [vmem:[%s1896 + $0x20] sm:$0xff]
        %v1902 = vld [vmem:[%s1896 + $0x28] sm:$0xff]
        %v1903 = vld [vmem:[%s1896 + $0x30] sm:$0xff]
        %v1904 = vld [vmem:[%s1896 + $0x38] sm:$0xff]
        %v1905 = vld [vmem:[%s1896 + $0x40] sm:$0xff]
        %v1906 = vld [vmem:[%s1896 + $0x48] sm:$0xff]
        %v1907 = vld [vmem:[%s1896 + $0x50] sm:$0xff]
        %v1908 = vld [vmem:[%s1896 + $0x58] sm:$0xff]
        %v1909 = vld [vmem:[%s1896 + $0x60] sm:$0xff]
        %v1910 = vld [vmem:[%s1896 + $0x68] sm:$0xff]
        %v1911 = vld [vmem:[%s1896 + $0x70] sm:$0xff]
        %v1912 = vld [vmem:[%s1896 + $0x78] sm:$0xff]
        %1914 = vset.pattern.permute.xlu0 0
        %1915 = vperm.xlu0 %1914, %v1897
        %v1916 = vpop.permute.xlu0 %1915
        %1919 = vset.pattern.permute.xlu0 0
        %1920 = vperm.xlu0 %1919, %v1898
        %v1921 = vpop.permute.xlu0 %1920
        %1924 = vset.pattern.permute.xlu0 0
        %1925 = vperm.xlu0 %1924, %v1899
        %v1926 = vpop.permute.xlu0 %1925
        %1929 = vset.pattern.permute.xlu0 0
        %1930 = vperm.xlu0 %1929, %v1900
        %v1931 = vpop.permute.xlu0 %1930
        %1934 = vset.pattern.permute.xlu0 0
        %1935 = vperm.xlu0 %1934, %v1901
        %v1936 = vpop.permute.xlu0 %1935
        %1939 = vset.pattern.permute.xlu0 0
        %1940 = vperm.xlu0 %1939, %v1902
        %v1941 = vpop.permute.xlu0 %1940
        %1944 = vset.pattern.permute.xlu0 0
        %1945 = vperm.xlu0 %1944, %v1903
        %v1946 = vpop.permute.xlu0 %1945
        %1949 = vset.pattern.permute.xlu0 0
        %1950 = vperm.xlu0 %1949, %v1904
        %v1951 = vpop.permute.xlu0 %1950
        %1954 = vset.pattern.permute.xlu0 0
        %1955 = vperm.xlu0 %1954, %v1905
        %v1956 = vpop.permute.xlu0 %1955
        %1959 = vset.pattern.permute.xlu0 0
        %1960 = vperm.xlu0 %1959, %v1906
        %v1961 = vpop.permute.xlu0 %1960
        %1964 = vset.pattern.permute.xlu0 0
        %1965 = vperm.xlu0 %1964, %v1907
        %v1966 = vpop.permute.xlu0 %1965
        %1969 = vset.pattern.permute.xlu0 0
        %1970 = vperm.xlu0 %1969, %v1908
        %v1971 = vpop.permute.xlu0 %1970
        %1974 = vset.pattern.permute.xlu0 0
        %1975 = vperm.xlu0 %1974, %v1909
        %v1976 = vpop.permute.xlu0 %1975
        %1979 = vset.pattern.permute.xlu0 0
        %1980 = vperm.xlu0 %1979, %v1910
        %v1981 = vpop.permute.xlu0 %1980
        %1984 = vset.pattern.permute.xlu0 0
        %1985 = vperm.xlu0 %1984, %v1911
        %v1986 = vpop.permute.xlu0 %1985
        %1989 = vset.pattern.permute.xlu0 0
        %1990 = vperm.xlu0 %1989, %v1912
        %v1991 = vpop.permute.xlu0 %1990
        %v1993 = vmul.f32 %v1879, %v1916
        %v1994 = vmul.f32 %v1880, %v1921
        %v1995 = vmul.f32 %v1881, %v1926
        %v1996 = vmul.f32 %v1882, %v1931
        %v1997 = vmul.f32 %v1883, %v1936
        %v1998 = vmul.f32 %v1884, %v1941
        %v1999 = vmul.f32 %v1885, %v1946
        %v2000 = vmul.f32 %v1886, %v1951
        %v2001 = vmul.f32 %v1887, %v1956
        %v2002 = vmul.f32 %v1888, %v1961
        %v2003 = vmul.f32 %v1889, %v1966
        %v2004 = vmul.f32 %v1890, %v1971
        %v2005 = vmul.f32 %v1891, %v1976
        %v2006 = vmul.f32 %v1892, %v1981
        %v2007 = vmul.f32 %v1893, %v1986
        %v2008 = vmul.f32 %v1894, %v1991
        %v2009 = vpack.c.bf16 %v1994, %v1993
        %v2010 = vpack.c.bf16 %v1996, %v1995
        %v2011 = vpack.c.bf16 %v1998, %v1997
        %v2012 = vpack.c.bf16 %v2000, %v1999
        %v2013 = vpack.c.bf16 %v2002, %v2001
        %v2014 = vpack.c.bf16 %v2004, %v2003
        %v2015 = vpack.c.bf16 %v2006, %v2005
        %v2016 = vpack.c.bf16 %v2008, %v2007
        %v2017 = vld [vmem:[%s4] sm:$0xf]
        %v2018 = vld [vmem:[%s4 + $0x4] sm:$0xf]
        %v2019 = vld [vmem:[%s4 + $0x8] sm:$0xf]
        %v2020 = vld [vmem:[%s4 + $0xc] sm:$0xf]
        %v2021 = vld [vmem:[%s4 + $0x10] sm:$0xf]
        %v2022 = vld [vmem:[%s4 + $0x14] sm:$0xf]
        %v2023 = vld [vmem:[%s4 + $0x18] sm:$0xf]
        %v2024 = vld [vmem:[%s4 + $0x1c] sm:$0xf]
        %v2025 = vld [vmem:[%s4 + $0x20] sm:$0xf]
        %v2026 = vld [vmem:[%s4 + $0x24] sm:$0xf]
        %v2027 = vld [vmem:[%s4 + $0x28] sm:$0xf]
        %v2028 = vld [vmem:[%s4 + $0x2c] sm:$0xf]
        %v2029 = vld [vmem:[%s4 + $0x30] sm:$0xf]
        %v2030 = vld [vmem:[%s4 + $0x34] sm:$0xf]
        %v2031 = vld [vmem:[%s4 + $0x38] sm:$0xf]
        %v2032 = vld [vmem:[%s4 + $0x3c] sm:$0xf]
        %s2033 = scalar_lea.vmem %s4, 64
        %v2034 = vld [vmem:[%s2033] sm:$0xf]
        %v2035 = vld [vmem:[%s2033 + $0x4] sm:$0xf]
        %v2036 = vld [vmem:[%s2033 + $0x8] sm:$0xf]
        %v2037 = vld [vmem:[%s2033 + $0xc] sm:$0xf]
        %v2038 = vld [vmem:[%s2033 + $0x10] sm:$0xf]
        %v2039 = vld [vmem:[%s2033 + $0x14] sm:$0xf]
        %v2040 = vld [vmem:[%s2033 + $0x18] sm:$0xf]
        %v2041 = vld [vmem:[%s2033 + $0x1c] sm:$0xf]
        %v2042 = vld [vmem:[%s2033 + $0x20] sm:$0xf]
        %v2043 = vld [vmem:[%s2033 + $0x24] sm:$0xf]
        %v2044 = vld [vmem:[%s2033 + $0x28] sm:$0xf]
        %v2045 = vld [vmem:[%s2033 + $0x2c] sm:$0xf]
        %v2046 = vld [vmem:[%s2033 + $0x30] sm:$0xf]
        %v2047 = vld [vmem:[%s2033 + $0x34] sm:$0xf]
        %v2048 = vld [vmem:[%s2033 + $0x38] sm:$0xf]
        %v2049 = vld [vmem:[%s2033 + $0x3c] sm:$0xf]
        %v2066 = vunpack.c.l.b16 %v2034
        %v2067 = vunpack.c.l.b16 %v2035
        %v2068 = vunpack.c.l.b16 %v2036
        %v2069 = vunpack.c.l.b16 %v2037
        %v2070 = vunpack.c.l.b16 %v2038
        %v2071 = vunpack.c.l.b16 %v2039
        %v2072 = vunpack.c.l.b16 %v2040
        %v2073 = vunpack.c.l.b16 %v2041
        %v2074 = vunpack.c.l.b16 %v2042
        %v2075 = vunpack.c.l.b16 %v2043
        %v2076 = vunpack.c.l.b16 %v2044
        %v2077 = vunpack.c.l.b16 %v2045
        %v2078 = vunpack.c.l.b16 %v2046
        %v2079 = vunpack.c.l.b16 %v2047
        %v2080 = vunpack.c.l.b16 %v2048
        %v2081 = vunpack.c.l.b16 %v2049
        %v2082 = vpack.c.b16 %v2067, %v2066
        %v2083 = vpack.c.b16 %v2069, %v2068
        %v2084 = vpack.c.b16 %v2071, %v2070
        %v2085 = vpack.c.b16 %v2073, %v2072
        %v2086 = vpack.c.b16 %v2075, %v2074
        %v2087 = vpack.c.b16 %v2077, %v2076
        %v2088 = vpack.c.b16 %v2079, %v2078
        %v2089 = vpack.c.b16 %v2081, %v2080
        %2098 = vmatprep.subr.bf16.mxu0 0
        %2099 = vmatpush1.bf16.msra.mxu0 %v2082
        %2100 = vmatprep.subr.bf16.mxu0 0
        %2101 = vmatpush1.bf16.msra.mxu0 %v2083
        %2102 = vmatprep.subr.bf16.mxu0 0
        %2103 = vmatpush1.bf16.msra.mxu0 %v2084
        %2104 = vmatprep.subr.bf16.mxu0 0
        %2105 = vmatpush1.bf16.msra.mxu0 %v2085
        %2106 = vmatprep.subr.bf16.mxu0 0
        %2107 = vmatpush1.bf16.msra.mxu0 %v2086
        %2108 = vmatprep.subr.bf16.mxu0 0
        %2109 = vmatpush1.bf16.msra.mxu0 %v2087
        %2110 = vmatprep.subr.bf16.mxu0 0
        %2111 = vmatpush1.bf16.msra.mxu0 %v2088
        %2112 = vmatprep.subr.bf16.mxu0 0
        %2113 = vmatpush1.bf16.msra.mxu0 %v2089
        %2114 = vmatprep.subr.bf16.mxu0 0
        %2115 = vmatpush1.bf16.msra.mxu0 0
        %2116 = vmatprep.subr.bf16.mxu0 0
        %2117 = vmatpush1.bf16.msra.mxu0 0
        %2118 = vmatprep.subr.bf16.mxu0 0
        %2119 = vmatpush1.bf16.msra.mxu0 0
        %2120 = vmatprep.subr.bf16.mxu0 0
        %2121 = vmatpush1.bf16.msra.mxu0 0
        %2122 = vmatprep.subr.bf16.mxu0 0
        %2123 = vmatpush1.bf16.msra.mxu0 0
        %2124 = vmatprep.subr.bf16.mxu0 0
        %2125 = vmatpush1.bf16.msra.mxu0 0
        %2126 = vmatprep.subr.bf16.mxu0 0
        %2127 = vmatpush1.bf16.msra.mxu0 0
        %2128 = vmatprep.subr.bf16.mxu0 0
        %2129 = vmatpush1.bf16.msra.mxu0 0
        %2130 = vmatprep.mubr.bf16.mxu0 0
        %2131 = vmatmul.mubr.bf16.gmra.mrb[0].mxu0 %v1340
        %v2132 = vpop.f32.mrb[0].mxu0
        %v2133 = vadd.f32 0.0, %v2132
        %v2134 = vpop.f32.mrb[0].mxu0
        %v2135 = vpop.f32.mrb[0].mxu0
        %v2136 = vpop.f32.mrb[0].mxu0
        %2137 = vmatprep.mubr.bf16.mxu0 0
        %2138 = vmatmul.mubr.bf16.gmra.mrb[0].mxu0 %v1341
        %v2139 = vpop.f32.mrb[0].mxu0
        %v2140 = vadd.f32 0.0, %v2139
        %v2141 = vpop.f32.mrb[0].mxu0
        %v2142 = vpop.f32.mrb[0].mxu0
        %v2143 = vpop.f32.mrb[0].mxu0
        %2144 = vmatprep.mubr.bf16.mxu0 0
        %2145 = vmatmul.mubr.bf16.gmra.mrb[0].mxu0 %v1342
        %v2146 = vpop.f32.mrb[0].mxu0
        %v2147 = vadd.f32 0.0, %v2146
        %v2148 = vpop.f32.mrb[0].mxu0
        %v2149 = vpop.f32.mrb[0].mxu0
        %v2150 = vpop.f32.mrb[0].mxu0
        %2151 = vmatprep.mubr.bf16.mxu0 0
        %2152 = vmatmul.mubr.bf16.gmra.mrb[0].mxu0 %v1343
        %v2153 = vpop.f32.mrb[0].mxu0
        %v2154 = vadd.f32 0.0, %v2153
        %v2155 = vpop.f32.mrb[0].mxu0
        %v2156 = vpop.f32.mrb[0].mxu0
        %v2157 = vpop.f32.mrb[0].mxu0
        %2158 = vmatprep.mubr.bf16.mxu0 0
        %2159 = vmatmul.mubr.bf16.gmra.mrb[0].mxu0 %v1344
        %v2160 = vpop.f32.mrb[0].mxu0
        %v2161 = vadd.f32 0.0, %v2160
        %v2162 = vpop.f32.mrb[0].mxu0
        %v2163 = vpop.f32.mrb[0].mxu0
        %v2164 = vpop.f32.mrb[0].mxu0
        %2165 = vmatprep.mubr.bf16.mxu0 0
        %2166 = vmatmul.mubr.bf16.gmra.mrb[0].mxu0 %v1345
        %v2167 = vpop.f32.mrb[0].mxu0
        %v2168 = vadd.f32 0.0, %v2167
        %v2169 = vpop.f32.mrb[0].mxu0
        %v2170 = vpop.f32.mrb[0].mxu0
        %v2171 = vpop.f32.mrb[0].mxu0
        %2172 = vmatprep.mubr.bf16.mxu0 0
        %2173 = vmatmul.mubr.bf16.gmra.mrb[0].mxu0 %v1346
        %v2174 = vpop.f32.mrb[0].mxu0
        %v2175 = vadd.f32 0.0, %v2174
        %v2176 = vpop.f32.mrb[0].mxu0
        %v2177 = vpop.f32.mrb[0].mxu0
        %v2178 = vpop.f32.mrb[0].mxu0
        %2179 = vmatprep.mubr.bf16.mxu0 0
        %2180 = vmatmul.mubr.bf16.gmra.mrb[0].mxu0 %v1347
        %v2181 = vpop.f32.mrb[0].mxu0
        %v2182 = vadd.f32 0.0, %v2181
        %v2183 = vpop.f32.mrb[0].mxu0
        %v2184 = vpop.f32.mrb[0].mxu0
        %v2185 = vpop.f32.mrb[0].mxu0
        %2186 = vdwg.mxu0
        %v2203 = vunpack.c.l.b16 %v2017
        %v2204 = vunpack.c.l.b16 %v2018
        %v2205 = vunpack.c.l.b16 %v2019
        %v2206 = vunpack.c.l.b16 %v2020
        %v2207 = vunpack.c.l.b16 %v2021
        %v2208 = vunpack.c.l.b16 %v2022
        %v2209 = vunpack.c.l.b16 %v2023
        %v2210 = vunpack.c.l.b16 %v2024
        %v2211 = vunpack.c.l.b16 %v2025
        %v2212 = vunpack.c.l.b16 %v2026
        %v2213 = vunpack.c.l.b16 %v2027
        %v2214 = vunpack.c.l.b16 %v2028
        %v2215 = vunpack.c.l.b16 %v2029
        %v2216 = vunpack.c.l.b16 %v2030
        %v2217 = vunpack.c.l.b16 %v2031
        %v2218 = vunpack.c.l.b16 %v2032
        %v2219 = vpack.c.b16 %v2204, %v2203
        %v2220 = vpack.c.b16 %v2206, %v2205
        %v2221 = vpack.c.b16 %v2208, %v2207
        %v2222 = vpack.c.b16 %v2210, %v2209
        %v2223 = vpack.c.b16 %v2212, %v2211
        %v2224 = vpack.c.b16 %v2214, %v2213
        %v2225 = vpack.c.b16 %v2216, %v2215
        %v2226 = vpack.c.b16 %v2218, %v2217
        %2235 = vmatprep.subr.bf16.mxu0 0
        %2236 = vmatpush1.bf16.msra.mxu0 %v2219
        %2237 = vmatprep.subr.bf16.mxu0 0
        %2238 = vmatpush1.bf16.msra.mxu0 %v2220
        %2239 = vmatprep.subr.bf16.mxu0 0
        %2240 = vmatpush1.bf16.msra.mxu0 %v2221
        %2241 = vmatprep.subr.bf16.mxu0 0
        %2242 = vmatpush1.bf16.msra.mxu0 %v2222
        %2243 = vmatprep.subr.bf16.mxu0 0
        %2244 = vmatpush1.bf16.msra.mxu0 %v2223
        %2245 = vmatprep.subr.bf16.mxu0 0
        %2246 = vmatpush1.bf16.msra.mxu0 %v2224
        %2247 = vmatprep.subr.bf16.mxu0 0
        %2248 = vmatpush1.bf16.msra.mxu0 %v2225
        %2249 = vmatprep.subr.bf16.mxu0 0
        %2250 = vmatpush1.bf16.msra.mxu0 %v2226
        %2251 = vmatprep.subr.bf16.mxu0 0
        %2252 = vmatpush1.bf16.msra.mxu0 0
        %2253 = vmatprep.subr.bf16.mxu0 0
        %2254 = vmatpush1.bf16.msra.mxu0 0
        %2255 = vmatprep.subr.bf16.mxu0 0
        %2256 = vmatpush1.bf16.msra.mxu0 0
        %2257 = vmatprep.subr.bf16.mxu0 0
        %2258 = vmatpush1.bf16.msra.mxu0 0
        %2259 = vmatprep.subr.bf16.mxu0 0
        %2260 = vmatpush1.bf16.msra.mxu0 0
        %2261 = vmatprep.subr.bf16.mxu0 0
        %2262 = vmatpush1.bf16.msra.mxu0 0
        %2263 = vmatprep.subr.bf16.mxu0 0
        %2264 = vmatpush1.bf16.msra.mxu0 0
        %2265 = vmatprep.subr.bf16.mxu0 0
        %2266 = vmatpush1.bf16.msra.mxu0 0
        %2267 = vmatprep.mubr.bf16.mxu0 0
        %2268 = vmatmul.mubr.bf16.gmra.mrb[0].mxu0 %v987
        %v2269 = vpop.f32.mrb[0].mxu0
        %v2270 = vadd.f32 %v2133, %v2269
        %v2271 = vpop.f32.mrb[0].mxu0
        %v2272 = vpop.f32.mrb[0].mxu0
        %v2273 = vpop.f32.mrb[0].mxu0
        %2274 = vmatprep.mubr.bf16.mxu0 0
        %2275 = vmatmul.mubr.bf16.gmra.mrb[0].mxu0 %v988
        %v2276 = vpop.f32.mrb[0].mxu0
        %v2277 = vadd.f32 %v2140, %v2276
        %v2278 = vpop.f32.mrb[0].mxu0
        %v2279 = vpop.f32.mrb[0].mxu0
        %v2280 = vpop.f32.mrb[0].mxu0
        %2281 = vmatprep.mubr.bf16.mxu0 0
        %2282 = vmatmul.mubr.bf16.gmra.mrb[0].mxu0 %v989
        %v2283 = vpop.f32.mrb[0].mxu0
        %v2284 = vadd.f32 %v2147, %v2283
        %v2285 = vpop.f32.mrb[0].mxu0
        %v2286 = vpop.f32.mrb[0].mxu0
        %v2287 = vpop.f32.mrb[0].mxu0
        %2288 = vmatprep.mubr.bf16.mxu0 0
        %2289 = vmatmul.mubr.bf16.gmra.mrb[0].mxu0 %v990
        %v2290 = vpop.f32.mrb[0].mxu0
        %v2291 = vadd.f32 %v2154, %v2290
        %v2292 = vpop.f32.mrb[0].mxu0
        %v2293 = vpop.f32.mrb[0].mxu0
        %v2294 = vpop.f32.mrb[0].mxu0
        %2295 = vmatprep.mubr.bf16.mxu0 0
        %2296 = vmatmul.mubr.bf16.gmra.mrb[0].mxu0 %v991
        %v2297 = vpop.f32.mrb[0].mxu0
        %v2298 = vadd.f32 %v2161, %v2297
        %v2299 = vpop.f32.mrb[0].mxu0
        %v2300 = vpop.f32.mrb[0].mxu0
        %v2301 = vpop.f32.mrb[0].mxu0
        %2302 = vmatprep.mubr.bf16.mxu0 0
        %2303 = vmatmul.mubr.bf16.gmra.mrb[0].mxu0 %v992
        %v2304 = vpop.f32.mrb[0].mxu0
        %v2305 = vadd.f32 %v2168, %v2304
        %v2306 = vpop.f32.mrb[0].mxu0
        %v2307 = vpop.f32.mrb[0].mxu0
        %v2308 = vpop.f32.mrb[0].mxu0
        %2309 = vmatprep.mubr.bf16.mxu0 0
        %2310 = vmatmul.mubr.bf16.gmra.mrb[0].mxu0 %v993
        %v2311 = vpop.f32.mrb[0].mxu0
        %v2312 = vadd.f32 %v2175, %v2311
        %v2313 = vpop.f32.mrb[0].mxu0
        %v2314 = vpop.f32.mrb[0].mxu0
        %v2315 = vpop.f32.mrb[0].mxu0
        %2316 = vmatprep.mubr.bf16.mxu0 0
        %2317 = vmatmul.mubr.bf16.gmra.mrb[0].mxu0 %v994
        %v2318 = vpop.f32.mrb[0].mxu0
        %v2319 = vadd.f32 %v2182, %v2318
        %v2320 = vpop.f32.mrb[0].mxu0
        %v2321 = vpop.f32.mrb[0].mxu0
        %v2322 = vpop.f32.mrb[0].mxu0
        %2323 = vdwg.mxu0
        %s2324 = scalar_lea.vmem %s4, 128
        %v2325 = vld [vmem:[%s2324] sm:$0xf]
        %v2326 = vld [vmem:[%s2324 + $0x4] sm:$0xf]
        %v2327 = vld [vmem:[%s2324 + $0x8] sm:$0xf]
        %v2328 = vld [vmem:[%s2324 + $0xc] sm:$0xf]
        %v2329 = vld [vmem:[%s2324 + $0x10] sm:$0xf]
        %v2330 = vld [vmem:[%s2324 + $0x14] sm:$0xf]
        %v2331 = vld [vmem:[%s2324 + $0x18] sm:$0xf]
        %v2332 = vld [vmem:[%s2324 + $0x1c] sm:$0xf]
        %v2333 = vld [vmem:[%s2324 + $0x20] sm:$0xf]
        %v2334 = vld [vmem:[%s2324 + $0x24] sm:$0xf]
        %v2335 = vld [vmem:[%s2324 + $0x28] sm:$0xf]
        %v2336 = vld [vmem:[%s2324 + $0x2c] sm:$0xf]
        %v2337 = vld [vmem:[%s2324 + $0x30] sm:$0xf]
        %v2338 = vld [vmem:[%s2324 + $0x34] sm:$0xf]
        %v2339 = vld [vmem:[%s2324 + $0x38] sm:$0xf]
        %v2340 = vld [vmem:[%s2324 + $0x3c] sm:$0xf]
        %v2357 = vunpack.c.l.b16 %v2325
        %v2358 = vunpack.c.l.b16 %v2326
        %v2359 = vunpack.c.l.b16 %v2327
        %v2360 = vunpack.c.l.b16 %v2328
        %v2361 = vunpack.c.l.b16 %v2329
        %v2362 = vunpack.c.l.b16 %v2330
        %v2363 = vunpack.c.l.b16 %v2331
        %v2364 = vunpack.c.l.b16 %v2332
        %v2365 = vunpack.c.l.b16 %v2333
        %v2366 = vunpack.c.l.b16 %v2334
        %v2367 = vunpack.c.l.b16 %v2335
        %v2368 = vunpack.c.l.b16 %v2336
        %v2369 = vunpack.c.l.b16 %v2337
        %v2370 = vunpack.c.l.b16 %v2338
        %v2371 = vunpack.c.l.b16 %v2339
        %v2372 = vunpack.c.l.b16 %v2340
        %v2373 = vpack.c.b16 %v2358, %v2357
        %v2374 = vpack.c.b16 %v2360, %v2359
        %v2375 = vpack.c.b16 %v2362, %v2361
        %v2376 = vpack.c.b16 %v2364, %v2363
        %v2377 = vpack.c.b16 %v2366, %v2365
        %v2378 = vpack.c.b16 %v2368, %v2367
        %v2379 = vpack.c.b16 %v2370, %v2369
        %v2380 = vpack.c.b16 %v2372, %v2371
        %2389 = vmatprep.subr.bf16.mxu0 0
        %2390 = vmatpush1.bf16.msra.mxu0 %v2373
        %2391 = vmatprep.subr.bf16.mxu0 0
        %2392 = vmatpush1.bf16.msra.mxu0 %v2374
        %2393 = vmatprep.subr.bf16.mxu0 0
        %2394 = vmatpush1.bf16.msra.mxu0 %v2375
        %2395 = vmatprep.subr.bf16.mxu0 0
        %2396 = vmatpush1.bf16.msra.mxu0 %v2376
        %2397 = vmatprep.subr.bf16.mxu0 0
        %2398 = vmatpush1.bf16.msra.mxu0 %v2377
        %2399 = vmatprep.subr.bf16.mxu0 0
        %2400 = vmatpush1.bf16.msra.mxu0 %v2378
        %2401 = vmatprep.subr.bf16.mxu0 0
        %2402 = vmatpush1.bf16.msra.mxu0 %v2379
        %2403 = vmatprep.subr.bf16.mxu0 0
        %2404 = vmatpush1.bf16.msra.mxu0 %v2380
        %2405 = vmatprep.subr.bf16.mxu0 0
        %2406 = vmatpush1.bf16.msra.mxu0 0
        %2407 = vmatprep.subr.bf16.mxu0 0
        %2408 = vmatpush1.bf16.msra.mxu0 0
        %2409 = vmatprep.subr.bf16.mxu0 0
        %2410 = vmatpush1.bf16.msra.mxu0 0
        %2411 = vmatprep.subr.bf16.mxu0 0
        %2412 = vmatpush1.bf16.msra.mxu0 0
        %2413 = vmatprep.subr.bf16.mxu0 0
        %2414 = vmatpush1.bf16.msra.mxu0 0
        %2415 = vmatprep.subr.bf16.mxu0 0
        %2416 = vmatpush1.bf16.msra.mxu0 0
        %2417 = vmatprep.subr.bf16.mxu0 0
        %2418 = vmatpush1.bf16.msra.mxu0 0
        %2419 = vmatprep.subr.bf16.mxu0 0
        %2420 = vmatpush1.bf16.msra.mxu0 0
        %2421 = vmatprep.mubr.bf16.mxu0 0
        %2422 = vmatmul.mubr.bf16.gmra.mrb[0].mxu0 %v987
        %v2423 = vpop.f32.mrb[0].mxu0
        %v2424 = vadd.f32 0.0, %v2423
        %v2425 = vpop.f32.mrb[0].mxu0
        %v2426 = vpop.f32.mrb[0].mxu0
        %v2427 = vadd.f32 0.0, %v2426
        %v2428 = vpop.f32.mrb[0].mxu0
        %2429 = vmatprep.mubr.bf16.mxu0 0
        %2430 = vmatmul.mubr.bf16.gmra.mrb[0].mxu0 %v988
        %v2431 = vpop.f32.mrb[0].mxu0
        %v2432 = vadd.f32 0.0, %v2431
        %v2433 = vpop.f32.mrb[0].mxu0
        %v2434 = vpop.f32.mrb[0].mxu0
        %v2435 = vadd.f32 0.0, %v2434
        %v2436 = vpop.f32.mrb[0].mxu0
        %2437 = vmatprep.mubr.bf16.mxu0 0
        %2438 = vmatmul.mubr.bf16.gmra.mrb[0].mxu0 %v989
        %v2439 = vpop.f32.mrb[0].mxu0
        %v2440 = vadd.f32 0.0, %v2439
        %v2441 = vpop.f32.mrb[0].mxu0
        %v2442 = vpop.f32.mrb[0].mxu0
        %v2443 = vadd.f32 0.0, %v2442
        %v2444 = vpop.f32.mrb[0].mxu0
        %2445 = vmatprep.mubr.bf16.mxu0 0
        %2446 = vmatmul.mubr.bf16.gmra.mrb[0].mxu0 %v990
        %v2447 = vpop.f32.mrb[0].mxu0
        %v2448 = vadd.f32 0.0, %v2447
        %v2449 = vpop.f32.mrb[0].mxu0
        %v2450 = vpop.f32.mrb[0].mxu0
        %v2451 = vadd.f32 0.0, %v2450
        %v2452 = vpop.f32.mrb[0].mxu0
        %2453 = vmatprep.mubr.bf16.mxu0 0
        %2454 = vmatmul.mubr.bf16.gmra.mrb[0].mxu0 %v991
        %v2455 = vpop.f32.mrb[0].mxu0
        %v2456 = vadd.f32 0.0, %v2455
        %v2457 = vpop.f32.mrb[0].mxu0
        %v2458 = vpop.f32.mrb[0].mxu0
        %v2459 = vadd.f32 0.0, %v2458
        %v2460 = vpop.f32.mrb[0].mxu0
        %2461 = vmatprep.mubr.bf16.mxu0 0
        %2462 = vmatmul.mubr.bf16.gmra.mrb[0].mxu0 %v992
        %v2463 = vpop.f32.mrb[0].mxu0
        %v2464 = vadd.f32 0.0, %v2463
        %v2465 = vpop.f32.mrb[0].mxu0
        %v2466 = vpop.f32.mrb[0].mxu0
        %v2467 = vadd.f32 0.0, %v2466
        %v2468 = vpop.f32.mrb[0].mxu0
        %2469 = vmatprep.mubr.bf16.mxu0 0
        %2470 = vmatmul.mubr.bf16.gmra.mrb[0].mxu0 %v993
        %v2471 = vpop.f32.mrb[0].mxu0
        %v2472 = vadd.f32 0.0, %v2471
        %v2473 = vpop.f32.mrb[0].mxu0
        %v2474 = vpop.f32.mrb[0].mxu0
        %v2475 = vadd.f32 0.0, %v2474
        %v2476 = vpop.f32.mrb[0].mxu0
        %2477 = vmatprep.mubr.bf16.mxu0 0
        %2478 = vmatmul.mubr.bf16.gmra.mrb[0].mxu0 %v994
        %v2479 = vpop.f32.mrb[0].mxu0
        %v2480 = vadd.f32 0.0, %v2479
        %v2481 = vpop.f32.mrb[0].mxu0
        %v2482 = vpop.f32.mrb[0].mxu0
        %v2483 = vadd.f32 0.0, %v2482
        %v2484 = vpop.f32.mrb[0].mxu0
        %2485 = vdwg.mxu0
        %vm2502 = vcmask 1046528
        %v2503 = vrot.slane %v2424, 1
        %v2504 = vrot.slane %v2427, 1
        %v2505 = vsel %vm2502, %v2503, %v2504
        %v2506 = vrot.slane %v2432, 1
        %v2507 = vrot.slane %v2435, 1
        %v2508 = vsel %vm2502, %v2506, %v2507
        %v2509 = vrot.slane %v2440, 1
        %v2510 = vrot.slane %v2443, 1
        %v2511 = vsel %vm2502, %v2509, %v2510
        %v2512 = vrot.slane %v2448, 1
        %v2513 = vrot.slane %v2451, 1
        %v2514 = vsel %vm2502, %v2512, %v2513
        %v2515 = vrot.slane %v2456, 1
        %v2516 = vrot.slane %v2459, 1
        %v2517 = vsel %vm2502, %v2515, %v2516
        %v2518 = vrot.slane %v2464, 1
        %v2519 = vrot.slane %v2467, 1
        %v2520 = vsel %vm2502, %v2518, %v2519
        %v2521 = vrot.slane %v2472, 1
        %v2522 = vrot.slane %v2475, 1
        %v2523 = vsel %vm2502, %v2521, %v2522
        %v2524 = vrot.slane %v2480, 1
        %v2525 = vrot.slane %v2483, 1
        %v2526 = vsel %vm2502, %v2524, %v2525
        %v2535 = vadd.f32 %v2270, %v2505
        %v2536 = vadd.f32 %v2277, %v2508
        %v2537 = vadd.f32 %v2284, %v2511
        %v2538 = vadd.f32 %v2291, %v2514
        %v2539 = vadd.f32 %v2298, %v2517
        %v2540 = vadd.f32 %v2305, %v2520
        %v2541 = vadd.f32 %v2312, %v2523
        %v2542 = vadd.f32 %v2319, %v2526
        %s2543 = scalar_lea.vmem %s4, 192
        %v2544 = vld [vmem:[%s2543] sm:$0xf]
        %v2545 = vld [vmem:[%s2543 + $0x4] sm:$0xf]
        %v2546 = vld [vmem:[%s2543 + $0x8] sm:$0xf]
        %v2547 = vld [vmem:[%s2543 + $0xc] sm:$0xf]
        %v2548 = vld [vmem:[%s2543 + $0x10] sm:$0xf]
        %v2549 = vld [vmem:[%s2543 + $0x14] sm:$0xf]
        %v2550 = vld [vmem:[%s2543 + $0x18] sm:$0xf]
        %v2551 = vld [vmem:[%s2543 + $0x1c] sm:$0xf]
        %v2552 = vld [vmem:[%s2543 + $0x20] sm:$0xf]
        %v2553 = vld [vmem:[%s2543 + $0x24] sm:$0xf]
        %v2554 = vld [vmem:[%s2543 + $0x28] sm:$0xf]
        %v2555 = vld [vmem:[%s2543 + $0x2c] sm:$0xf]
        %v2556 = vld [vmem:[%s2543 + $0x30] sm:$0xf]
        %v2557 = vld [vmem:[%s2543 + $0x34] sm:$0xf]
        %v2558 = vld [vmem:[%s2543 + $0x38] sm:$0xf]
        %v2559 = vld [vmem:[%s2543 + $0x3c] sm:$0xf]
        %v2576 = vunpack.c.l.b16 %v2544
        %v2577 = vunpack.c.l.b16 %v2545
        %v2578 = vunpack.c.l.b16 %v2546
        %v2579 = vunpack.c.l.b16 %v2547
        %v2580 = vunpack.c.l.b16 %v2548
        %v2581 = vunpack.c.l.b16 %v2549
        %v2582 = vunpack.c.l.b16 %v2550
        %v2583 = vunpack.c.l.b16 %v2551
        %v2584 = vunpack.c.l.b16 %v2552
        %v2585 = vunpack.c.l.b16 %v2553
        %v2586 = vunpack.c.l.b16 %v2554
        %v2587 = vunpack.c.l.b16 %v2555
        %v2588 = vunpack.c.l.b16 %v2556
        %v2589 = vunpack.c.l.b16 %v2557
        %v2590 = vunpack.c.l.b16 %v2558
        %v2591 = vunpack.c.l.b16 %v2559
        %v2592 = vpack.c.b16 %v2577, %v2576
        %v2593 = vpack.c.b16 %v2579, %v2578
        %v2594 = vpack.c.b16 %v2581, %v2580
        %v2595 = vpack.c.b16 %v2583, %v2582
        %v2596 = vpack.c.b16 %v2585, %v2584
        %v2597 = vpack.c.b16 %v2587, %v2586
        %v2598 = vpack.c.b16 %v2589, %v2588
        %v2599 = vpack.c.b16 %v2591, %v2590
        %2608 = vmatprep.subr.bf16.mxu0 0
        %2609 = vmatpush1.bf16.msra.mxu0 %v2592
        %2610 = vmatprep.subr.bf16.mxu0 0
        %2611 = vmatpush1.bf16.msra.mxu0 %v2593
        %2612 = vmatprep.subr.bf16.mxu0 0
        %2613 = vmatpush1.bf16.msra.mxu0 %v2594
        %2614 = vmatprep.subr.bf16.mxu0 0
        %2615 = vmatpush1.bf16.msra.mxu0 %v2595
        %2616 = vmatprep.subr.bf16.mxu0 0
        %2617 = vmatpush1.bf16.msra.mxu0 %v2596
        %2618 = vmatprep.subr.bf16.mxu0 0
        %2619 = vmatpush1.bf16.msra.mxu0 %v2597
        %2620 = vmatprep.subr.bf16.mxu0 0
        %2621 = vmatpush1.bf16.msra.mxu0 %v2598
        %2622 = vmatprep.subr.bf16.mxu0 0
        %2623 = vmatpush1.bf16.msra.mxu0 %v2599
        %2624 = vmatprep.subr.bf16.mxu0 0
        %2625 = vmatpush1.bf16.msra.mxu0 0
        %2626 = vmatprep.subr.bf16.mxu0 0
        %2627 = vmatpush1.bf16.msra.mxu0 0
        %2628 = vmatprep.subr.bf16.mxu0 0
        %2629 = vmatpush1.bf16.msra.mxu0 0
        %2630 = vmatprep.subr.bf16.mxu0 0
        %2631 = vmatpush1.bf16.msra.mxu0 0
        %2632 = vmatprep.subr.bf16.mxu0 0
        %2633 = vmatpush1.bf16.msra.mxu0 0
        %2634 = vmatprep.subr.bf16.mxu0 0
        %2635 = vmatpush1.bf16.msra.mxu0 0
        %2636 = vmatprep.subr.bf16.mxu0 0
        %2637 = vmatpush1.bf16.msra.mxu0 0
        %2638 = vmatprep.subr.bf16.mxu0 0
        %2639 = vmatpush1.bf16.msra.mxu0 0
        %2640 = vmatprep.mubr.bf16.mxu0 0
        %2641 = vmatmul.mubr.bf16.gmra.mrb[0].mxu0 %v1675
        %v2642 = vpop.f32.mrb[0].mxu0
        %v2643 = vadd.f32 0.0, %v2642
        %v2644 = vpop.f32.mrb[0].mxu0
        %v2645 = vpop.f32.mrb[0].mxu0
        %v2646 = vpop.f32.mrb[0].mxu0
        %2647 = vmatprep.mubr.bf16.mxu0 0
        %2648 = vmatmul.mubr.bf16.gmra.mrb[0].mxu0 %v1676
        %v2649 = vpop.f32.mrb[0].mxu0
        %v2650 = vadd.f32 0.0, %v2649
        %v2651 = vpop.f32.mrb[0].mxu0
        %v2652 = vpop.f32.mrb[0].mxu0
        %v2653 = vpop.f32.mrb[0].mxu0
        %2654 = vmatprep.mubr.bf16.mxu0 0
        %2655 = vmatmul.mubr.bf16.gmra.mrb[0].mxu0 %v1677
        %v2656 = vpop.f32.mrb[0].mxu0
        %v2657 = vadd.f32 0.0, %v2656
        %v2658 = vpop.f32.mrb[0].mxu0
        %v2659 = vpop.f32.mrb[0].mxu0
        %v2660 = vpop.f32.mrb[0].mxu0
        %2661 = vmatprep.mubr.bf16.mxu0 0
        %2662 = vmatmul.mubr.bf16.gmra.mrb[0].mxu0 %v1678
        %v2663 = vpop.f32.mrb[0].mxu0
        %v2664 = vadd.f32 0.0, %v2663
        %v2665 = vpop.f32.mrb[0].mxu0
        %v2666 = vpop.f32.mrb[0].mxu0
        %v2667 = vpop.f32.mrb[0].mxu0
        %2668 = vmatprep.mubr.bf16.mxu0 0
        %2669 = vmatmul.mubr.bf16.gmra.mrb[0].mxu0 %v1679
        %v2670 = vpop.f32.mrb[0].mxu0
        %v2671 = vadd.f32 0.0, %v2670
        %v2672 = vpop.f32.mrb[0].mxu0
        %v2673 = vpop.f32.mrb[0].mxu0
        %v2674 = vpop.f32.mrb[0].mxu0
        %2675 = vmatprep.mubr.bf16.mxu0 0
        %2676 = vmatmul.mubr.bf16.gmra.mrb[0].mxu0 %v1680
        %v2677 = vpop.f32.mrb[0].mxu0
        %v2678 = vadd.f32 0.0, %v2677
        %v2679 = vpop.f32.mrb[0].mxu0
        %v2680 = vpop.f32.mrb[0].mxu0
        %v2681 = vpop.f32.mrb[0].mxu0
        %2682 = vmatprep.mubr.bf16.mxu0 0
        %2683 = vmatmul.mubr.bf16.gmra.mrb[0].mxu0 %v1681
        %v2684 = vpop.f32.mrb[0].mxu0
        %v2685 = vadd.f32 0.0, %v2684
        %v2686 = vpop.f32.mrb[0].mxu0
        %v2687 = vpop.f32.mrb[0].mxu0
        %v2688 = vpop.f32.mrb[0].mxu0
        %2689 = vmatprep.mubr.bf16.mxu0 0
        %2690 = vmatmul.mubr.bf16.gmra.mrb[0].mxu0 %v1682
        %v2691 = vpop.f32.mrb[0].mxu0
        %v2692 = vadd.f32 0.0, %v2691
        %v2693 = vpop.f32.mrb[0].mxu0
        %v2694 = vpop.f32.mrb[0].mxu0
        %v2695 = vpop.f32.mrb[0].mxu0
        %2696 = vdwg.mxu0
        %v2697 = vadd.f32 %v2535, %v2643
        %v2698 = vadd.f32 %v2536, %v2650
        %v2699 = vadd.f32 %v2537, %v2657
        %v2700 = vadd.f32 %v2538, %v2664
        %v2701 = vadd.f32 %v2539, %v2671
        %v2702 = vadd.f32 %v2540, %v2678
        %v2703 = vadd.f32 %v2541, %v2685
        %v2704 = vadd.f32 %v2542, %v2692
        %s2705 = scalar_lea.vmem %s4, 256
        %v2706 = vld [vmem:[%s2705] sm:$0xf]
        %v2707 = vld [vmem:[%s2705 + $0x4] sm:$0xf]
        %v2708 = vld [vmem:[%s2705 + $0x8] sm:$0xf]
        %v2709 = vld [vmem:[%s2705 + $0xc] sm:$0xf]
        %v2710 = vld [vmem:[%s2705 + $0x10] sm:$0xf]
        %v2711 = vld [vmem:[%s2705 + $0x14] sm:$0xf]
        %v2712 = vld [vmem:[%s2705 + $0x18] sm:$0xf]
        %v2713 = vld [vmem:[%s2705 + $0x1c] sm:$0xf]
        %v2714 = vld [vmem:[%s2705 + $0x20] sm:$0xf]
        %v2715 = vld [vmem:[%s2705 + $0x24] sm:$0xf]
        %v2716 = vld [vmem:[%s2705 + $0x28] sm:$0xf]
        %v2717 = vld [vmem:[%s2705 + $0x2c] sm:$0xf]
        %v2718 = vld [vmem:[%s2705 + $0x30] sm:$0xf]
        %v2719 = vld [vmem:[%s2705 + $0x34] sm:$0xf]
        %v2720 = vld [vmem:[%s2705 + $0x38] sm:$0xf]
        %v2721 = vld [vmem:[%s2705 + $0x3c] sm:$0xf]
        %v2738 = vunpack.c.l.b16 %v2706
        %v2739 = vunpack.c.l.b16 %v2707
        %v2740 = vunpack.c.l.b16 %v2708
        %v2741 = vunpack.c.l.b16 %v2709
        %v2742 = vunpack.c.l.b16 %v2710
        %v2743 = vunpack.c.l.b16 %v2711
        %v2744 = vunpack.c.l.b16 %v2712
        %v2745 = vunpack.c.l.b16 %v2713
        %v2746 = vunpack.c.l.b16 %v2714
        %v2747 = vunpack.c.l.b16 %v2715
        %v2748 = vunpack.c.l.b16 %v2716
        %v2749 = vunpack.c.l.b16 %v2717
        %v2750 = vunpack.c.l.b16 %v2718
        %v2751 = vunpack.c.l.b16 %v2719
        %v2752 = vunpack.c.l.b16 %v2720
        %v2753 = vunpack.c.l.b16 %v2721
        %v2754 = vpack.c.b16 %v2739, %v2738
        %v2755 = vpack.c.b16 %v2741, %v2740
        %v2756 = vpack.c.b16 %v2743, %v2742
        %v2757 = vpack.c.b16 %v2745, %v2744
        %v2758 = vpack.c.b16 %v2747, %v2746
        %v2759 = vpack.c.b16 %v2749, %v2748
        %v2760 = vpack.c.b16 %v2751, %v2750
        %v2761 = vpack.c.b16 %v2753, %v2752
        %2770 = vmatprep.subr.bf16.mxu0 0
        %2771 = vmatpush1.bf16.msra.mxu0 %v2754
        %2772 = vmatprep.subr.bf16.mxu0 0
        %2773 = vmatpush1.bf16.msra.mxu0 %v2755
        %2774 = vmatprep.subr.bf16.mxu0 0
        %2775 = vmatpush1.bf16.msra.mxu0 %v2756
        %2776 = vmatprep.subr.bf16.mxu0 0
        %2777 = vmatpush1.bf16.msra.mxu0 %v2757
        %2778 = vmatprep.subr.bf16.mxu0 0
        %2779 = vmatpush1.bf16.msra.mxu0 %v2758
        %2780 = vmatprep.subr.bf16.mxu0 0
        %2781 = vmatpush1.bf16.msra.mxu0 %v2759
        %2782 = vmatprep.subr.bf16.mxu0 0
        %2783 = vmatpush1.bf16.msra.mxu0 %v2760
        %2784 = vmatprep.subr.bf16.mxu0 0
        %2785 = vmatpush1.bf16.msra.mxu0 %v2761
        %2786 = vmatprep.subr.bf16.mxu0 0
        %2787 = vmatpush1.bf16.msra.mxu0 0
        %2788 = vmatprep.subr.bf16.mxu0 0
        %2789 = vmatpush1.bf16.msra.mxu0 0
        %2790 = vmatprep.subr.bf16.mxu0 0
        %2791 = vmatpush1.bf16.msra.mxu0 0
        %2792 = vmatprep.subr.bf16.mxu0 0
        %2793 = vmatpush1.bf16.msra.mxu0 0
        %2794 = vmatprep.subr.bf16.mxu0 0
        %2795 = vmatpush1.bf16.msra.mxu0 0
        %2796 = vmatprep.subr.bf16.mxu0 0
        %2797 = vmatpush1.bf16.msra.mxu0 0
        %2798 = vmatprep.subr.bf16.mxu0 0
        %2799 = vmatpush1.bf16.msra.mxu0 0
        %2800 = vmatprep.subr.bf16.mxu0 0
        %2801 = vmatpush1.bf16.msra.mxu0 0
        %2802 = vmatprep.mubr.bf16.mxu0 0
        %2803 = vmatmul.mubr.bf16.gmra.mrb[0].mxu0 %v2009
        %v2804 = vpop.f32.mrb[0].mxu0
        %v2805 = vadd.f32 0.0, %v2804
        %v2806 = vpop.f32.mrb[0].mxu0
        %v2807 = vpop.f32.mrb[0].mxu0
        %v2808 = vpop.f32.mrb[0].mxu0
        %2809 = vmatprep.mubr.bf16.mxu0 0
        %2810 = vmatmul.mubr.bf16.gmra.mrb[0].mxu0 %v2010
        %v2811 = vpop.f32.mrb[0].mxu0
        %v2812 = vadd.f32 0.0, %v2811
        %v2813 = vpop.f32.mrb[0].mxu0
        %v2814 = vpop.f32.mrb[0].mxu0
        %v2815 = vpop.f32.mrb[0].mxu0
        %2816 = vmatprep.mubr.bf16.mxu0 0
        %2817 = vmatmul.mubr.bf16.gmra.mrb[0].mxu0 %v2011
        %v2818 = vpop.f32.mrb[0].mxu0
        %v2819 = vadd.f32 0.0, %v2818
        %v2820 = vpop.f32.mrb[0].mxu0
        %v2821 = vpop.f32.mrb[0].mxu0
        %v2822 = vpop.f32.mrb[0].mxu0
        %2823 = vmatprep.mubr.bf16.mxu0 0
        %2824 = vmatmul.mubr.bf16.gmra.mrb[0].mxu0 %v2012
        %v2825 = vpop.f32.mrb[0].mxu0
        %v2826 = vadd.f32 0.0, %v2825
        %v2827 = vpop.f32.mrb[0].mxu0
        %v2828 = vpop.f32.mrb[0].mxu0
        %v2829 = vpop.f32.mrb[0].mxu0
        %2830 = vmatprep.mubr.bf16.mxu0 0
        %2831 = vmatmul.mubr.bf16.gmra.mrb[0].mxu0 %v2013
        %v2832 = vpop.f32.mrb[0].mxu0
        %v2833 = vadd.f32 0.0, %v2832
        %v2834 = vpop.f32.mrb[0].mxu0
        %v2835 = vpop.f32.mrb[0].mxu0
        %v2836 = vpop.f32.mrb[0].mxu0
        %2837 = vmatprep.mubr.bf16.mxu0 0
        %2838 = vmatmul.mubr.bf16.gmra.mrb[0].mxu0 %v2014
        %v2839 = vpop.f32.mrb[0].mxu0
        %v2840 = vadd.f32 0.0, %v2839
        %v2841 = vpop.f32.mrb[0].mxu0
        %v2842 = vpop.f32.mrb[0].mxu0
        %v2843 = vpop.f32.mrb[0].mxu0
        %2844 = vmatprep.mubr.bf16.mxu0 0
        %2845 = vmatmul.mubr.bf16.gmra.mrb[0].mxu0 %v2015
        %v2846 = vpop.f32.mrb[0].mxu0
        %v2847 = vadd.f32 0.0, %v2846
        %v2848 = vpop.f32.mrb[0].mxu0
        %v2849 = vpop.f32.mrb[0].mxu0
        %v2850 = vpop.f32.mrb[0].mxu0
        %2851 = vmatprep.mubr.bf16.mxu0 0
        %2852 = vmatmul.mubr.bf16.gmra.mrb[0].mxu0 %v2016
        %v2853 = vpop.f32.mrb[0].mxu0
        %v2854 = vadd.f32 0.0, %v2853
        %v2855 = vpop.f32.mrb[0].mxu0
        %v2856 = vpop.f32.mrb[0].mxu0
        %v2857 = vpop.f32.mrb[0].mxu0
        %2858 = vdwg.mxu0
        %v2859 = vadd.f32 %v2697, %v2805
        %v2860 = vadd.f32 %v2698, %v2812
        %v2861 = vadd.f32 %v2699, %v2819
        %v2862 = vadd.f32 %v2700, %v2826
        %v2863 = vadd.f32 %v2701, %v2833
        %v2864 = vadd.f32 %v2702, %v2840
        %v2865 = vadd.f32 %v2703, %v2847
        %v2866 = vadd.f32 %v2704, %v2854
        %s2867 = scalar_lea.vmem %s4, 320
        %v2868 = vld [vmem:[%s2867] sm:$0xf]
        %v2869 = vld [vmem:[%s2867 + $0x4] sm:$0xf]
        %v2870 = vld [vmem:[%s2867 + $0x8] sm:$0xf]
        %v2871 = vld [vmem:[%s2867 + $0xc] sm:$0xf]
        %v2872 = vld [vmem:[%s2867 + $0x10] sm:$0xf]
        %v2873 = vld [vmem:[%s2867 + $0x14] sm:$0xf]
        %v2874 = vld [vmem:[%s2867 + $0x18] sm:$0xf]
        %v2875 = vld [vmem:[%s2867 + $0x1c] sm:$0xf]
        %v2876 = vld [vmem:[%s2867 + $0x20] sm:$0xf]
        %v2877 = vld [vmem:[%s2867 + $0x24] sm:$0xf]
        %v2878 = vld [vmem:[%s2867 + $0x28] sm:$0xf]
        %v2879 = vld [vmem:[%s2867 + $0x2c] sm:$0xf]
        %v2880 = vld [vmem:[%s2867 + $0x30] sm:$0xf]
        %v2881 = vld [vmem:[%s2867 + $0x34] sm:$0xf]
        %v2882 = vld [vmem:[%s2867 + $0x38] sm:$0xf]
        %v2883 = vld [vmem:[%s2867 + $0x3c] sm:$0xf]
        %v2900 = vunpack.c.l.b16 %v2868
        %v2901 = vunpack.c.l.b16 %v2869
        %v2902 = vunpack.c.l.b16 %v2870
        %v2903 = vunpack.c.l.b16 %v2871
        %v2904 = vunpack.c.l.b16 %v2872
        %v2905 = vunpack.c.l.b16 %v2873
        %v2906 = vunpack.c.l.b16 %v2874
        %v2907 = vunpack.c.l.b16 %v2875
        %v2908 = vunpack.c.l.b16 %v2876
        %v2909 = vunpack.c.l.b16 %v2877
        %v2910 = vunpack.c.l.b16 %v2878
        %v2911 = vunpack.c.l.b16 %v2879
        %v2912 = vunpack.c.l.b16 %v2880
        %v2913 = vunpack.c.l.b16 %v2881
        %v2914 = vunpack.c.l.b16 %v2882
        %v2915 = vunpack.c.l.b16 %v2883
        %v2916 = vpack.c.b16 %v2901, %v2900
        %v2917 = vpack.c.b16 %v2903, %v2902
        %v2918 = vpack.c.b16 %v2905, %v2904
        %v2919 = vpack.c.b16 %v2907, %v2906
        %v2920 = vpack.c.b16 %v2909, %v2908
        %v2921 = vpack.c.b16 %v2911, %v2910
        %v2922 = vpack.c.b16 %v2913, %v2912
        %v2923 = vpack.c.b16 %v2915, %v2914
        %2932 = vmatprep.subr.bf16.mxu0 0
        %2933 = vmatpush1.bf16.msra.mxu0 %v2916
        %2934 = vmatprep.subr.bf16.mxu0 0
        %2935 = vmatpush1.bf16.msra.mxu0 %v2917
        %2936 = vmatprep.subr.bf16.mxu0 0
        %2937 = vmatpush1.bf16.msra.mxu0 %v2918
        %2938 = vmatprep.subr.bf16.mxu0 0
        %2939 = vmatpush1.bf16.msra.mxu0 %v2919
        %2940 = vmatprep.subr.bf16.mxu0 0
        %2941 = vmatpush1.bf16.msra.mxu0 %v2920
        %2942 = vmatprep.subr.bf16.mxu0 0
        %2943 = vmatpush1.bf16.msra.mxu0 %v2921
        %2944 = vmatprep.subr.bf16.mxu0 0
        %2945 = vmatpush1.bf16.msra.mxu0 %v2922
        %2946 = vmatprep.subr.bf16.mxu0 0
        %2947 = vmatpush1.bf16.msra.mxu0 %v2923
        %2948 = vmatprep.subr.bf16.mxu0 0
        %2949 = vmatpush1.bf16.msra.mxu0 0
        %2950 = vmatprep.subr.bf16.mxu0 0
        %2951 = vmatpush1.bf16.msra.mxu0 0
        %2952 = vmatprep.subr.bf16.mxu0 0
        %2953 = vmatpush1.bf16.msra.mxu0 0
        %2954 = vmatprep.subr.bf16.mxu0 0
        %2955 = vmatpush1.bf16.msra.mxu0 0
        %2956 = vmatprep.subr.bf16.mxu0 0
        %2957 = vmatpush1.bf16.msra.mxu0 0
        %2958 = vmatprep.subr.bf16.mxu0 0
        %2959 = vmatpush1.bf16.msra.mxu0 0
        %2960 = vmatprep.subr.bf16.mxu0 0
        %2961 = vmatpush1.bf16.msra.mxu0 0
        %2962 = vmatprep.subr.bf16.mxu0 0
        %2963 = vmatpush1.bf16.msra.mxu0 0
        %2964 = vmatprep.mubr.bf16.mxu0 0
        %2965 = vmatmul.mubr.bf16.gmra.mrb[0].mxu0 %v1675
        %v2966 = vpop.f32.mrb[0].mxu0
        %v2967 = vadd.f32 0.0, %v2966
        %v2968 = vpop.f32.mrb[0].mxu0
        %v2969 = vpop.f32.mrb[0].mxu0
        %v2970 = vadd.f32 0.0, %v2969
        %v2971 = vpop.f32.mrb[0].mxu0
        %2972 = vmatprep.mubr.bf16.mxu0 0
        %2973 = vmatmul.mubr.bf16.gmra.mrb[0].mxu0 %v1676
        %v2974 = vpop.f32.mrb[0].mxu0
        %v2975 = vadd.f32 0.0, %v2974
        %v2976 = vpop.f32.mrb[0].mxu0
        %v2977 = vpop.f32.mrb[0].mxu0
        %v2978 = vadd.f32 0.0, %v2977
        %v2979 = vpop.f32.mrb[0].mxu0
        %2980 = vmatprep.mubr.bf16.mxu0 0
        %2981 = vmatmul.mubr.bf16.gmra.mrb[0].mxu0 %v1677
        %v2982 = vpop.f32.mrb[0].mxu0
        %v2983 = vadd.f32 0.0, %v2982
        %v2984 = vpop.f32.mrb[0].mxu0
        %v2985 = vpop.f32.mrb[0].mxu0
        %v2986 = vadd.f32 0.0, %v2985
        %v2987 = vpop.f32.mrb[0].mxu0
        %2988 = vmatprep.mubr.bf16.mxu0 0
        %2989 = vmatmul.mubr.bf16.gmra.mrb[0].mxu0 %v1678
        %v2990 = vpop.f32.mrb[0].mxu0
        %v2991 = vadd.f32 0.0, %v2990
        %v2992 = vpop.f32.mrb[0].mxu0
        %v2993 = vpop.f32.mrb[0].mxu0
        %v2994 = vadd.f32 0.0, %v2993
        %v2995 = vpop.f32.mrb[0].mxu0
        %2996 = vmatprep.mubr.bf16.mxu0 0
        %2997 = vmatmul.mubr.bf16.gmra.mrb[0].mxu0 %v1679
        %v2998 = vpop.f32.mrb[0].mxu0
        %v2999 = vadd.f32 0.0, %v2998
        %v3000 = vpop.f32.mrb[0].mxu0
        %v3001 = vpop.f32.mrb[0].mxu0
        %v3002 = vadd.f32 0.0, %v3001
        %v3003 = vpop.f32.mrb[0].mxu0
        %3004 = vmatprep.mubr.bf16.mxu0 0
        %3005 = vmatmul.mubr.bf16.gmra.mrb[0].mxu0 %v1680
        %v3006 = vpop.f32.mrb[0].mxu0
        %v3007 = vadd.f32 0.0, %v3006
        %v3008 = vpop.f32.mrb[0].mxu0
        %v3009 = vpop.f32.mrb[0].mxu0
        %v3010 = vadd.f32 0.0, %v3009
        %v3011 = vpop.f32.mrb[0].mxu0
        %3012 = vmatprep.mubr.bf16.mxu0 0
        %3013 = vmatmul.mubr.bf16.gmra.mrb[0].mxu0 %v1681
        %v3014 = vpop.f32.mrb[0].mxu0
        %v3015 = vadd.f32 0.0, %v3014
        %v3016 = vpop.f32.mrb[0].mxu0
        %v3017 = vpop.f32.mrb[0].mxu0
        %v3018 = vadd.f32 0.0, %v3017
        %v3019 = vpop.f32.mrb[0].mxu0
        %3020 = vmatprep.mubr.bf16.mxu0 0
        %3021 = vmatmul.mubr.bf16.gmra.mrb[0].mxu0 %v1682
        %v3022 = vpop.f32.mrb[0].mxu0
        %v3023 = vadd.f32 0.0, %v3022
        %v3024 = vpop.f32.mrb[0].mxu0
        %v3025 = vpop.f32.mrb[0].mxu0
        %v3026 = vadd.f32 0.0, %v3025
        %v3027 = vpop.f32.mrb[0].mxu0
        %3028 = vdwg.mxu0
        %v3045 = vrot.slane %v2967, 1
        %v3046 = vrot.slane %v2970, 1
        %v3047 = vsel %vm2502, %v3045, %v3046
        %v3048 = vrot.slane %v2975, 1
        %v3049 = vrot.slane %v2978, 1
        %v3050 = vsel %vm2502, %v3048, %v3049
        %v3051 = vrot.slane %v2983, 1
        %v3052 = vrot.slane %v2986, 1
        %v3053 = vsel %vm2502, %v3051, %v3052
        %v3054 = vrot.slane %v2991, 1
        %v3055 = vrot.slane %v2994, 1
        %v3056 = vsel %vm2502, %v3054, %v3055
        %v3057 = vrot.slane %v2999, 1
        %v3058 = vrot.slane %v3002, 1
        %v3059 = vsel %vm2502, %v3057, %v3058
        %v3060 = vrot.slane %v3007, 1
        %v3061 = vrot.slane %v3010, 1
        %v3062 = vsel %vm2502, %v3060, %v3061
        %v3063 = vrot.slane %v3015, 1
        %v3064 = vrot.slane %v3018, 1
        %v3065 = vsel %vm2502, %v3063, %v3064
        %v3066 = vrot.slane %v3023, 1
        %v3067 = vrot.slane %v3026, 1
        %v3068 = vsel %vm2502, %v3066, %v3067
        %v3077 = vadd.f32 %v2859, %v3047
        %v3078 = vadd.f32 %v2860, %v3050
        %v3079 = vadd.f32 %v2861, %v3053
        %v3080 = vadd.f32 %v2862, %v3056
        %v3081 = vadd.f32 %v2863, %v3059
        %v3082 = vadd.f32 %v2864, %v3062
        %v3083 = vadd.f32 %v2865, %v3065
        %v3084 = vadd.f32 %v2866, %v3068
        %s3085 = scalar_lea.vmem %s4, 384
        %v3086 = vld [vmem:[%s3085] sm:$0xf]
        %v3087 = vld [vmem:[%s3085 + $0x4] sm:$0xf]
        %v3088 = vld [vmem:[%s3085 + $0x8] sm:$0xf]
        %v3089 = vld [vmem:[%s3085 + $0xc] sm:$0xf]
        %v3090 = vld [vmem:[%s3085 + $0x10] sm:$0xf]
        %v3091 = vld [vmem:[%s3085 + $0x14] sm:$0xf]
        %v3092 = vld [vmem:[%s3085 + $0x18] sm:$0xf]
        %v3093 = vld [vmem:[%s3085 + $0x1c] sm:$0xf]
        %v3094 = vld [vmem:[%s3085 + $0x20] sm:$0xf]
        %v3095 = vld [vmem:[%s3085 + $0x24] sm:$0xf]
        %v3096 = vld [vmem:[%s3085 + $0x28] sm:$0xf]
        %v3097 = vld [vmem:[%s3085 + $0x2c] sm:$0xf]
        %v3098 = vld [vmem:[%s3085 + $0x30] sm:$0xf]
        %v3099 = vld [vmem:[%s3085 + $0x34] sm:$0xf]
        %v3100 = vld [vmem:[%s3085 + $0x38] sm:$0xf]
        %v3101 = vld [vmem:[%s3085 + $0x3c] sm:$0xf]
        %v3118 = vunpack.c.l.b16 %v3086
        %v3119 = vunpack.c.l.b16 %v3087
        %v3120 = vunpack.c.l.b16 %v3088
        %v3121 = vunpack.c.l.b16 %v3089
        %v3122 = vunpack.c.l.b16 %v3090
        %v3123 = vunpack.c.l.b16 %v3091
        %v3124 = vunpack.c.l.b16 %v3092
        %v3125 = vunpack.c.l.b16 %v3093
        %v3126 = vunpack.c.l.b16 %v3094
        %v3127 = vunpack.c.l.b16 %v3095
        %v3128 = vunpack.c.l.b16 %v3096
        %v3129 = vunpack.c.l.b16 %v3097
        %v3130 = vunpack.c.l.b16 %v3098
        %v3131 = vunpack.c.l.b16 %v3099
        %v3132 = vunpack.c.l.b16 %v3100
        %v3133 = vunpack.c.l.b16 %v3101
        %v3134 = vpack.c.b16 %v3119, %v3118
        %v3135 = vpack.c.b16 %v3121, %v3120
        %v3136 = vpack.c.b16 %v3123, %v3122
        %v3137 = vpack.c.b16 %v3125, %v3124
        %v3138 = vpack.c.b16 %v3127, %v3126
        %v3139 = vpack.c.b16 %v3129, %v3128
        %v3140 = vpack.c.b16 %v3131, %v3130
        %v3141 = vpack.c.b16 %v3133, %v3132
        %3150 = vmatprep.subr.bf16.mxu0 0
        %3151 = vmatpush1.bf16.msra.mxu0 %v3134
        %3152 = vmatprep.subr.bf16.mxu0 0
        %3153 = vmatpush1.bf16.msra.mxu0 %v3135
        %3154 = vmatprep.subr.bf16.mxu0 0
        %3155 = vmatpush1.bf16.msra.mxu0 %v3136
        %3156 = vmatprep.subr.bf16.mxu0 0
        %3157 = vmatpush1.bf16.msra.mxu0 %v3137
        %3158 = vmatprep.subr.bf16.mxu0 0
        %3159 = vmatpush1.bf16.msra.mxu0 %v3138
        %3160 = vmatprep.subr.bf16.mxu0 0
        %3161 = vmatpush1.bf16.msra.mxu0 %v3139
        %3162 = vmatprep.subr.bf16.mxu0 0
        %3163 = vmatpush1.bf16.msra.mxu0 %v3140
        %3164 = vmatprep.subr.bf16.mxu0 0
        %3165 = vmatpush1.bf16.msra.mxu0 %v3141
        %3166 = vmatprep.subr.bf16.mxu0 0
        %3167 = vmatpush1.bf16.msra.mxu0 0
        %3168 = vmatprep.subr.bf16.mxu0 0
        %3169 = vmatpush1.bf16.msra.mxu0 0
        %3170 = vmatprep.subr.bf16.mxu0 0
        %3171 = vmatpush1.bf16.msra.mxu0 0
        %3172 = vmatprep.subr.bf16.mxu0 0
        %3173 = vmatpush1.bf16.msra.mxu0 0
        %3174 = vmatprep.subr.bf16.mxu0 0
        %3175 = vmatpush1.bf16.msra.mxu0 0
        %3176 = vmatprep.subr.bf16.mxu0 0
        %3177 = vmatpush1.bf16.msra.mxu0 0
        %3178 = vmatprep.subr.bf16.mxu0 0
        %3179 = vmatpush1.bf16.msra.mxu0 0
        %3180 = vmatprep.subr.bf16.mxu0 0
        %3181 = vmatpush1.bf16.msra.mxu0 0
        %3182 = vmatprep.mubr.bf16.mxu0 0
        %3183 = vmatmul.mubr.bf16.gmra.mrb[0].mxu0 %v988
        %v3184 = vpop.f32.mrb[0].mxu0
        %v3185 = vadd.f32 0.0, %v3184
        %v3186 = vpop.f32.mrb[0].mxu0
        %v3187 = vpop.f32.mrb[0].mxu0
        %v3188 = vpop.f32.mrb[0].mxu0
        %3189 = vmatprep.mubr.bf16.mxu0 0
        %3190 = vmatmul.mubr.bf16.gmra.mrb[0].mxu0 %v989
        %v3191 = vpop.f32.mrb[0].mxu0
        %v3192 = vadd.f32 0.0, %v3191
        %v3193 = vpop.f32.mrb[0].mxu0
        %v3194 = vpop.f32.mrb[0].mxu0
        %v3195 = vpop.f32.mrb[0].mxu0
        %3196 = vmatprep.mubr.bf16.mxu0 0
        %3197 = vmatmul.mubr.bf16.gmra.mrb[0].mxu0 %v990
        %v3198 = vpop.f32.mrb[0].mxu0
        %v3199 = vadd.f32 0.0, %v3198
        %v3200 = vpop.f32.mrb[0].mxu0
        %v3201 = vpop.f32.mrb[0].mxu0
        %v3202 = vpop.f32.mrb[0].mxu0
        %3203 = vmatprep.mubr.bf16.mxu0 0
        %3204 = vmatmul.mubr.bf16.gmra.mrb[0].mxu0 %v991
        %v3205 = vpop.f32.mrb[0].mxu0
        %v3206 = vadd.f32 0.0, %v3205
        %v3207 = vpop.f32.mrb[0].mxu0
        %v3208 = vpop.f32.mrb[0].mxu0
        %v3209 = vpop.f32.mrb[0].mxu0
        %3210 = vmatprep.mubr.bf16.mxu0 0
        %3211 = vmatmul.mubr.bf16.gmra.mrb[0].mxu0 %v992
        %v3212 = vpop.f32.mrb[0].mxu0
        %v3213 = vadd.f32 0.0, %v3212
        %v3214 = vpop.f32.mrb[0].mxu0
        %v3215 = vpop.f32.mrb[0].mxu0
        %v3216 = vpop.f32.mrb[0].mxu0
        %3217 = vmatprep.mubr.bf16.mxu0 0
        %3218 = vmatmul.mubr.bf16.gmra.mrb[0].mxu0 %v993
        %v3219 = vpop.f32.mrb[0].mxu0
        %v3220 = vadd.f32 0.0, %v3219
        %v3221 = vpop.f32.mrb[0].mxu0
        %v3222 = vpop.f32.mrb[0].mxu0
        %v3223 = vpop.f32.mrb[0].mxu0
        %3224 = vmatprep.mubr.bf16.mxu0 0
        %3225 = vmatmul.mubr.bf16.gmra.mrb[0].mxu0 %v994
        %v3226 = vpop.f32.mrb[0].mxu0
        %v3227 = vadd.f32 0.0, %v3226
        %v3228 = vpop.f32.mrb[0].mxu0
        %v3229 = vpop.f32.mrb[0].mxu0
        %v3230 = vpop.f32.mrb[0].mxu0
        %3231 = vmatprep.mubr.bf16.mxu0 0
        %3232 = vmatmul.mubr.bf16.gmra.mrb[0].mxu0 %v995
        %v3233 = vpop.f32.mrb[0].mxu0
        %v3234 = vadd.f32 0.0, %v3233
        %v3235 = vpop.f32.mrb[0].mxu0
        %v3236 = vpop.f32.mrb[0].mxu0
        %v3237 = vpop.f32.mrb[0].mxu0
        %3238 = vdwg.mxu0
        %v3239 = vadd.f32 %v3077, %v3185
        %v3240 = vadd.f32 %v3078, %v3192
        %v3241 = vadd.f32 %v3079, %v3199
        %v3242 = vadd.f32 %v3080, %v3206
        %v3243 = vadd.f32 %v3081, %v3213
        %v3244 = vadd.f32 %v3082, %v3220
        %v3245 = vadd.f32 %v3083, %v3227
        %v3246 = vadd.f32 %v3084, %v3234
        %s3247 = scalar_lea.vmem %s4, 448
        %v3248 = vld [vmem:[%s3247] sm:$0xf]
        %v3249 = vld [vmem:[%s3247 + $0x4] sm:$0xf]
        %v3250 = vld [vmem:[%s3247 + $0x8] sm:$0xf]
        %v3251 = vld [vmem:[%s3247 + $0xc] sm:$0xf]
        %v3252 = vld [vmem:[%s3247 + $0x10] sm:$0xf]
        %v3253 = vld [vmem:[%s3247 + $0x14] sm:$0xf]
        %v3254 = vld [vmem:[%s3247 + $0x18] sm:$0xf]
        %v3255 = vld [vmem:[%s3247 + $0x1c] sm:$0xf]
        %v3256 = vld [vmem:[%s3247 + $0x20] sm:$0xf]
        %v3257 = vld [vmem:[%s3247 + $0x24] sm:$0xf]
        %v3258 = vld [vmem:[%s3247 + $0x28] sm:$0xf]
        %v3259 = vld [vmem:[%s3247 + $0x2c] sm:$0xf]
        %v3260 = vld [vmem:[%s3247 + $0x30] sm:$0xf]
        %v3261 = vld [vmem:[%s3247 + $0x34] sm:$0xf]
        %v3262 = vld [vmem:[%s3247 + $0x38] sm:$0xf]
        %v3263 = vld [vmem:[%s3247 + $0x3c] sm:$0xf]
        %v3280 = vunpack.c.l.b16 %v3248
        %v3281 = vunpack.c.l.b16 %v3249
        %v3282 = vunpack.c.l.b16 %v3250
        %v3283 = vunpack.c.l.b16 %v3251
        %v3284 = vunpack.c.l.b16 %v3252
        %v3285 = vunpack.c.l.b16 %v3253
        %v3286 = vunpack.c.l.b16 %v3254
        %v3287 = vunpack.c.l.b16 %v3255
        %v3288 = vunpack.c.l.b16 %v3256
        %v3289 = vunpack.c.l.b16 %v3257
        %v3290 = vunpack.c.l.b16 %v3258
        %v3291 = vunpack.c.l.b16 %v3259
        %v3292 = vunpack.c.l.b16 %v3260
        %v3293 = vunpack.c.l.b16 %v3261
        %v3294 = vunpack.c.l.b16 %v3262
        %v3295 = vunpack.c.l.b16 %v3263
        %v3296 = vpack.c.b16 %v3281, %v3280
        %v3297 = vpack.c.b16 %v3283, %v3282
        %v3298 = vpack.c.b16 %v3285, %v3284
        %v3299 = vpack.c.b16 %v3287, %v3286
        %v3300 = vpack.c.b16 %v3289, %v3288
        %v3301 = vpack.c.b16 %v3291, %v3290
        %v3302 = vpack.c.b16 %v3293, %v3292
        %v3303 = vpack.c.b16 %v3295, %v3294
        %3312 = vmatprep.subr.bf16.mxu0 0
        %3313 = vmatpush1.bf16.msra.mxu0 %v3296
        %3314 = vmatprep.subr.bf16.mxu0 0
        %3315 = vmatpush1.bf16.msra.mxu0 %v3297
        %3316 = vmatprep.subr.bf16.mxu0 0
        %3317 = vmatpush1.bf16.msra.mxu0 %v3298
        %3318 = vmatprep.subr.bf16.mxu0 0
        %3319 = vmatpush1.bf16.msra.mxu0 %v3299
        %3320 = vmatprep.subr.bf16.mxu0 0
        %3321 = vmatpush1.bf16.msra.mxu0 %v3300
        %3322 = vmatprep.subr.bf16.mxu0 0
        %3323 = vmatpush1.bf16.msra.mxu0 %v3301
        %3324 = vmatprep.subr.bf16.mxu0 0
        %3325 = vmatpush1.bf16.msra.mxu0 %v3302
        %3326 = vmatprep.subr.bf16.mxu0 0
        %3327 = vmatpush1.bf16.msra.mxu0 %v3303
        %3328 = vmatprep.subr.bf16.mxu0 0
        %3329 = vmatpush1.bf16.msra.mxu0 0
        %3330 = vmatprep.subr.bf16.mxu0 0
        %3331 = vmatpush1.bf16.msra.mxu0 0
        %3332 = vmatprep.subr.bf16.mxu0 0
        %3333 = vmatpush1.bf16.msra.mxu0 0
        %3334 = vmatprep.subr.bf16.mxu0 0
        %3335 = vmatpush1.bf16.msra.mxu0 0
        %3336 = vmatprep.subr.bf16.mxu0 0
        %3337 = vmatpush1.bf16.msra.mxu0 0
        %3338 = vmatprep.subr.bf16.mxu0 0
        %3339 = vmatpush1.bf16.msra.mxu0 0
        %3340 = vmatprep.subr.bf16.mxu0 0
        %3341 = vmatpush1.bf16.msra.mxu0 0
        %3342 = vmatprep.subr.bf16.mxu0 0
        %3343 = vmatpush1.bf16.msra.mxu0 0
        %3344 = vmatprep.mubr.bf16.mxu0 0
        %3345 = vmatmul.mubr.bf16.gmra.mrb[0].mxu0 %v1341
        %v3346 = vpop.f32.mrb[0].mxu0
        %v3347 = vadd.f32 0.0, %v3346
        %v3348 = vpop.f32.mrb[0].mxu0
        %v3349 = vpop.f32.mrb[0].mxu0
        %v3350 = vpop.f32.mrb[0].mxu0
        %3351 = vmatprep.mubr.bf16.mxu0 0
        %3352 = vmatmul.mubr.bf16.gmra.mrb[0].mxu0 %v1342
        %v3353 = vpop.f32.mrb[0].mxu0
        %v3354 = vadd.f32 0.0, %v3353
        %v3355 = vpop.f32.mrb[0].mxu0
        %v3356 = vpop.f32.mrb[0].mxu0
        %v3357 = vpop.f32.mrb[0].mxu0
        %3358 = vmatprep.mubr.bf16.mxu0 0
        %3359 = vmatmul.mubr.bf16.gmra.mrb[0].mxu0 %v1343
        %v3360 = vpop.f32.mrb[0].mxu0
        %v3361 = vadd.f32 0.0, %v3360
        %v3362 = vpop.f32.mrb[0].mxu0
        %v3363 = vpop.f32.mrb[0].mxu0
        %v3364 = vpop.f32.mrb[0].mxu0
        %3365 = vmatprep.mubr.bf16.mxu0 0
        %3366 = vmatmul.mubr.bf16.gmra.mrb[0].mxu0 %v1344
        %v3367 = vpop.f32.mrb[0].mxu0
        %v3368 = vadd.f32 0.0, %v3367
        %v3369 = vpop.f32.mrb[0].mxu0
        %v3370 = vpop.f32.mrb[0].mxu0
        %v3371 = vpop.f32.mrb[0].mxu0
        %3372 = vmatprep.mubr.bf16.mxu0 0
        %3373 = vmatmul.mubr.bf16.gmra.mrb[0].mxu0 %v1345
        %v3374 = vpop.f32.mrb[0].mxu0
        %v3375 = vadd.f32 0.0, %v3374
        %v3376 = vpop.f32.mrb[0].mxu0
        %v3377 = vpop.f32.mrb[0].mxu0
        %v3378 = vpop.f32.mrb[0].mxu0
        %3379 = vmatprep.mubr.bf16.mxu0 0
        %3380 = vmatmul.mubr.bf16.gmra.mrb[0].mxu0 %v1346
        %v3381 = vpop.f32.mrb[0].mxu0
        %v3382 = vadd.f32 0.0, %v3381
        %v3383 = vpop.f32.mrb[0].mxu0
        %v3384 = vpop.f32.mrb[0].mxu0
        %v3385 = vpop.f32.mrb[0].mxu0
        %3386 = vmatprep.mubr.bf16.mxu0 0
        %3387 = vmatmul.mubr.bf16.gmra.mrb[0].mxu0 %v1347
        %v3388 = vpop.f32.mrb[0].mxu0
        %v3389 = vadd.f32 0.0, %v3388
        %v3390 = vpop.f32.mrb[0].mxu0
        %v3391 = vpop.f32.mrb[0].mxu0
        %v3392 = vpop.f32.mrb[0].mxu0
        %3393 = vmatprep.mubr.bf16.mxu0 0
        %3394 = vmatmul.mubr.bf16.gmra.mrb[0].mxu0 %v1348
        %v3395 = vpop.f32.mrb[0].mxu0
        %v3396 = vadd.f32 0.0, %v3395
        %v3397 = vpop.f32.mrb[0].mxu0
        %v3398 = vpop.f32.mrb[0].mxu0
        %v3399 = vpop.f32.mrb[0].mxu0
        %3400 = vdwg.mxu0
        %v3401 = vadd.f32 %v3239, %v3347
        %v3402 = vadd.f32 %v3240, %v3354
        %v3403 = vadd.f32 %v3241, %v3361
        %v3404 = vadd.f32 %v3242, %v3368
        %v3405 = vadd.f32 %v3243, %v3375
        %v3406 = vadd.f32 %v3244, %v3382
        %v3407 = vadd.f32 %v3245, %v3389
        %v3408 = vadd.f32 %v3246, %v3396
        %s3409 = scalar_lea.vmem %s4, 512
        %v3410 = vld [vmem:[%s3409] sm:$0xf]
        %v3411 = vld [vmem:[%s3409 + $0x4] sm:$0xf]
        %v3412 = vld [vmem:[%s3409 + $0x8] sm:$0xf]
        %v3413 = vld [vmem:[%s3409 + $0xc] sm:$0xf]
        %v3414 = vld [vmem:[%s3409 + $0x10] sm:$0xf]
        %v3415 = vld [vmem:[%s3409 + $0x14] sm:$0xf]
        %v3416 = vld [vmem:[%s3409 + $0x18] sm:$0xf]
        %v3417 = vld [vmem:[%s3409 + $0x1c] sm:$0xf]
        %v3418 = vld [vmem:[%s3409 + $0x20] sm:$0xf]
        %v3419 = vld [vmem:[%s3409 + $0x24] sm:$0xf]
        %v3420 = vld [vmem:[%s3409 + $0x28] sm:$0xf]
        %v3421 = vld [vmem:[%s3409 + $0x2c] sm:$0xf]
        %v3422 = vld [vmem:[%s3409 + $0x30] sm:$0xf]
        %v3423 = vld [vmem:[%s3409 + $0x34] sm:$0xf]
        %v3424 = vld [vmem:[%s3409 + $0x38] sm:$0xf]
        %v3425 = vld [vmem:[%s3409 + $0x3c] sm:$0xf]
        %v3442 = vunpack.c.l.b16 %v3410
        %v3443 = vunpack.c.l.b16 %v3411
        %v3444 = vunpack.c.l.b16 %v3412
        %v3445 = vunpack.c.l.b16 %v3413
        %v3446 = vunpack.c.l.b16 %v3414
        %v3447 = vunpack.c.l.b16 %v3415
        %v3448 = vunpack.c.l.b16 %v3416
        %v3449 = vunpack.c.l.b16 %v3417
        %v3450 = vunpack.c.l.b16 %v3418
        %v3451 = vunpack.c.l.b16 %v3419
        %v3452 = vunpack.c.l.b16 %v3420
        %v3453 = vunpack.c.l.b16 %v3421
        %v3454 = vunpack.c.l.b16 %v3422
        %v3455 = vunpack.c.l.b16 %v3423
        %v3456 = vunpack.c.l.b16 %v3424
        %v3457 = vunpack.c.l.b16 %v3425
        %v3458 = vpack.c.b16 %v3443, %v3442
        %v3459 = vpack.c.b16 %v3445, %v3444
        %v3460 = vpack.c.b16 %v3447, %v3446
        %v3461 = vpack.c.b16 %v3449, %v3448
        %v3462 = vpack.c.b16 %v3451, %v3450
        %v3463 = vpack.c.b16 %v3453, %v3452
        %v3464 = vpack.c.b16 %v3455, %v3454
        %v3465 = vpack.c.b16 %v3457, %v3456
        %3474 = vmatprep.subr.bf16.mxu0 0
        %3475 = vmatpush1.bf16.msra.mxu0 %v3458
        %3476 = vmatprep.subr.bf16.mxu0 0
        %3477 = vmatpush1.bf16.msra.mxu0 %v3459
        %3478 = vmatprep.subr.bf16.mxu0 0
        %3479 = vmatpush1.bf16.msra.mxu0 %v3460
        %3480 = vmatprep.subr.bf16.mxu0 0
        %3481 = vmatpush1.bf16.msra.mxu0 %v3461
        %3482 = vmatprep.subr.bf16.mxu0 0
        %3483 = vmatpush1.bf16.msra.mxu0 %v3462
        %3484 = vmatprep.subr.bf16.mxu0 0
        %3485 = vmatpush1.bf16.msra.mxu0 %v3463
        %3486 = vmatprep.subr.bf16.mxu0 0
        %3487 = vmatpush1.bf16.msra.mxu0 %v3464
        %3488 = vmatprep.subr.bf16.mxu0 0
        %3489 = vmatpush1.bf16.msra.mxu0 %v3465
        %3490 = vmatprep.subr.bf16.mxu0 0
        %3491 = vmatpush1.bf16.msra.mxu0 0
        %3492 = vmatprep.subr.bf16.mxu0 0
        %3493 = vmatpush1.bf16.msra.mxu0 0
        %3494 = vmatprep.subr.bf16.mxu0 0
        %3495 = vmatpush1.bf16.msra.mxu0 0
        %3496 = vmatprep.subr.bf16.mxu0 0
        %3497 = vmatpush1.bf16.msra.mxu0 0
        %3498 = vmatprep.subr.bf16.mxu0 0
        %3499 = vmatpush1.bf16.msra.mxu0 0
        %3500 = vmatprep.subr.bf16.mxu0 0
        %3501 = vmatpush1.bf16.msra.mxu0 0
        %3502 = vmatprep.subr.bf16.mxu0 0
        %3503 = vmatpush1.bf16.msra.mxu0 0
        %3504 = vmatprep.subr.bf16.mxu0 0
        %3505 = vmatpush1.bf16.msra.mxu0 0
        %3506 = vmatprep.mubr.bf16.mxu0 0
        %3507 = vmatmul.mubr.bf16.gmra.mrb[0].mxu0 %v988
        %v3508 = vpop.f32.mrb[0].mxu0
        %v3509 = vadd.f32 0.0, %v3508
        %v3510 = vpop.f32.mrb[0].mxu0
        %v3511 = vpop.f32.mrb[0].mxu0
        %v3512 = vadd.f32 0.0, %v3511
        %v3513 = vpop.f32.mrb[0].mxu0
        %3514 = vmatprep.mubr.bf16.mxu0 0
        %3515 = vmatmul.mubr.bf16.gmra.mrb[0].mxu0 %v989
        %v3516 = vpop.f32.mrb[0].mxu0
        %v3517 = vadd.f32 0.0, %v3516
        %v3518 = vpop.f32.mrb[0].mxu0
        %v3519 = vpop.f32.mrb[0].mxu0
        %v3520 = vadd.f32 0.0, %v3519
        %v3521 = vpop.f32.mrb[0].mxu0
        %3522 = vmatprep.mubr.bf16.mxu0 0
        %3523 = vmatmul.mubr.bf16.gmra.mrb[0].mxu0 %v990
        %v3524 = vpop.f32.mrb[0].mxu0
        %v3525 = vadd.f32 0.0, %v3524
        %v3526 = vpop.f32.mrb[0].mxu0
        %v3527 = vpop.f32.mrb[0].mxu0
        %v3528 = vadd.f32 0.0, %v3527
        %v3529 = vpop.f32.mrb[0].mxu0
        %3530 = vmatprep.mubr.bf16.mxu0 0
        %3531 = vmatmul.mubr.bf16.gmra.mrb[0].mxu0 %v991
        %v3532 = vpop.f32.mrb[0].mxu0
        %v3533 = vadd.f32 0.0, %v3532
        %v3534 = vpop.f32.mrb[0].mxu0
        %v3535 = vpop.f32.mrb[0].mxu0
        %v3536 = vadd.f32 0.0, %v3535
        %v3537 = vpop.f32.mrb[0].mxu0
        %3538 = vmatprep.mubr.bf16.mxu0 0
        %3539 = vmatmul.mubr.bf16.gmra.mrb[0].mxu0 %v992
        %v3540 = vpop.f32.mrb[0].mxu0
        %v3541 = vadd.f32 0.0, %v3540
        %v3542 = vpop.f32.mrb[0].mxu0
        %v3543 = vpop.f32.mrb[0].mxu0
        %v3544 = vadd.f32 0.0, %v3543
        %v3545 = vpop.f32.mrb[0].mxu0
        %3546 = vmatprep.mubr.bf16.mxu0 0
        %3547 = vmatmul.mubr.bf16.gmra.mrb[0].mxu0 %v993
        %v3548 = vpop.f32.mrb[0].mxu0
        %v3549 = vadd.f32 0.0, %v3548
        %v3550 = vpop.f32.mrb[0].mxu0
        %v3551 = vpop.f32.mrb[0].mxu0
        %v3552 = vadd.f32 0.0, %v3551
        %v3553 = vpop.f32.mrb[0].mxu0
        %3554 = vmatprep.mubr.bf16.mxu0 0
        %3555 = vmatmul.mubr.bf16.gmra.mrb[0].mxu0 %v994
        %v3556 = vpop.f32.mrb[0].mxu0
        %v3557 = vadd.f32 0.0, %v3556
        %v3558 = vpop.f32.mrb[0].mxu0
        %v3559 = vpop.f32.mrb[0].mxu0
        %v3560 = vadd.f32 0.0, %v3559
        %v3561 = vpop.f32.mrb[0].mxu0
        %3562 = vmatprep.mubr.bf16.mxu0 0
        %3563 = vmatmul.mubr.bf16.gmra.mrb[0].mxu0 %v995
        %v3564 = vpop.f32.mrb[0].mxu0
        %v3565 = vadd.f32 0.0, %v3564
        %v3566 = vpop.f32.mrb[0].mxu0
        %v3567 = vpop.f32.mrb[0].mxu0
        %v3568 = vadd.f32 0.0, %v3567
        %v3569 = vpop.f32.mrb[0].mxu0
        %3570 = vdwg.mxu0
        %v3587 = vrot.slane %v3509, 1
        %v3588 = vrot.slane %v3512, 1
        %v3589 = vsel %vm2502, %v3587, %v3588
        %v3590 = vrot.slane %v3517, 1
        %v3591 = vrot.slane %v3520, 1
        %v3592 = vsel %vm2502, %v3590, %v3591
        %v3593 = vrot.slane %v3525, 1
        %v3594 = vrot.slane %v3528, 1
        %v3595 = vsel %vm2502, %v3593, %v3594
        %v3596 = vrot.slane %v3533, 1
        %v3597 = vrot.slane %v3536, 1
        %v3598 = vsel %vm2502, %v3596, %v3597
        %v3599 = vrot.slane %v3541, 1
        %v3600 = vrot.slane %v3544, 1
        %v3601 = vsel %vm2502, %v3599, %v3600
        %v3602 = vrot.slane %v3549, 1
        %v3603 = vrot.slane %v3552, 1
        %v3604 = vsel %vm2502, %v3602, %v3603
        %v3605 = vrot.slane %v3557, 1
        %v3606 = vrot.slane %v3560, 1
        %v3607 = vsel %vm2502, %v3605, %v3606
        %v3608 = vrot.slane %v3565, 1
        %v3609 = vrot.slane %v3568, 1
        %v3610 = vsel %vm2502, %v3608, %v3609
        %v3619 = vadd.f32 %v3401, %v3589
        %v3620 = vadd.f32 %v3402, %v3592
        %v3621 = vadd.f32 %v3403, %v3595
        %v3622 = vadd.f32 %v3404, %v3598
        %v3623 = vadd.f32 %v3405, %v3601
        %v3624 = vadd.f32 %v3406, %v3604
        %v3625 = vadd.f32 %v3407, %v3607
        %v3626 = vadd.f32 %v3408, %v3610
        %v3627 = vld [vmem:[%s5] sm:$0x1]
        %v3629 = vlaneseq
        %v3630 = vshrl.u32 %v3629, 7
        %v3631 = vsub.s32 0, %v3630
        %v3632 = vrot.slane %v3627, %v3631
        %v3634 = vadd.f32 %v3619, %v3632
        %v3635 = vadd.f32 %v3620, %v3632
        %v3636 = vadd.f32 %v3621, %v3632
        %v3637 = vadd.f32 %v3622, %v3632
        %v3638 = vadd.f32 %v3623, %v3632
        %v3639 = vadd.f32 %v3624, %v3632
        %v3640 = vadd.f32 %v3625, %v3632
        %v3641 = vadd.f32 %v3626, %v3632
        %v3642 = vmax.f32 %v3634, 0.0
        %v3643 = vmax.f32 %v3635, 0.0
        %v3644 = vmax.f32 %v3636, 0.0
        %v3645 = vmax.f32 %v3637, 0.0
        %v3646 = vmax.f32 %v3638, 0.0
        %v3647 = vmax.f32 %v3639, 0.0
        %v3648 = vmax.f32 %v3640, 0.0
        %v3649 = vmax.f32 %v3641, 0.0
        %v3650 = vpack.c.bf16 %v3642, %v3642
        %v3651 = vpack.c.bf16 %v3643, %v3643
        %v3652 = vpack.c.bf16 %v3644, %v3644
        %v3653 = vpack.c.bf16 %v3645, %v3645
        %v3654 = vpack.c.bf16 %v3646, %v3646
        %v3655 = vpack.c.bf16 %v3647, %v3647
        %v3656 = vpack.c.bf16 %v3648, %v3648
        %v3657 = vpack.c.bf16 %v3649, %v3649
        %3658 = vst [vmem:[%s599] sm:$0xf] %v3650
        %3659 = vst [vmem:[%s599 + $0x4] sm:$0xf] %v3651
        %3660 = vst [vmem:[%s599 + $0x8] sm:$0xf] %v3652
        %3661 = vst [vmem:[%s599 + $0xc] sm:$0xf] %v3653
        %3662 = vst [vmem:[%s599 + $0x10] sm:$0xf] %v3654
        %3663 = vst [vmem:[%s599 + $0x14] sm:$0xf] %v3655
        %3664 = vst [vmem:[%s599 + $0x18] sm:$0xf] %v3656
        %3665 = vst [vmem:[%s599 + $0x1c] sm:$0xf] %v3657
        %s3666 = smul.u32 8, %s22
        %p3667 = scmp.lt.s32.totalorder %s21, 1
        %s3668 = scalar_select %p3667, %s21, 1
        %p3669 = scmp.lt.s32.totalorder %s3666, 7
        %s3670 = scalar_select %p3669, %s3666, 7
        %s3671 = smul.addr %s3668, 8
        %s3672 = sadd.s32 %s3670, %s3671
        %s3673 = smul.addr %s3672, 4
        %s3674 = scalar_lea.vmem %s6, %s3673
        // Predicated region
        $region86: #{bottleneck_forward.2} parent=80 // pred_check
          %p3675 = pneg %p180
        $region87: #{bottleneck_forward.2} parent=80 // pred_check_branch
          %3677 = sbr.rel (%p3675) target = $region89
        $region88: #{bottleneck_forward.2} parent=80 // pred_region
          %s3678 = smul.u32 8, %s22
        $region89: #{bottleneck_forward.2} parent=80 // pred_fallthru
          _
      $region81: #{bottleneck_forward.2} parent=5 // pred_fallthru
        _
      %p3679 = scmp.le.s32.totalorder 2, %s12
      // Predicated region
      $region90: #{bottleneck_forward.2} parent=5 // pred_check
        %p3680 = pneg %p3679
      $region91: #{bottleneck_forward.2} parent=5 // pred_check_branch
        %3682 = sbr.rel (%p3680) target = $region93
      $region92: #{bottleneck_forward.2} parent=5 // pred_region
        %s3683 = ssub.s32 %s12, 2
        // Predicated region
        $region94: #{bottleneck_forward.2} parent=92 // pred_check
          %p3684 = pneg %p186
        $region95: #{bottleneck_forward.2} parent=92 // pred_check_branch
          %3686 = sbr.rel (%p3684) target = $region97
        $region96: #{bottleneck_forward.2} parent=92 // pred_region
          %s3687 = smul.u32 8, %s24
          %p3688 = scmp.lt.s32.totalorder %s23, 1
          %s3689 = scalar_select %p3688, %s23, 1
          %p3690 = scmp.lt.s32.totalorder %s3687, 7
          %s3691 = scalar_select %p3690, %s3687, 7
          %s3692 = smul.addr %s3689, 8
          %s3693 = sadd.s32 %s3691, %s3692
          %s3694 = smul.addr %s3693, 4
          %s3695 = scalar_lea.vmem %s6, %s3694
        $region97: #{bottleneck_forward.2} parent=92 // pred_fallthru
          _
      $region93: #{bottleneck_forward.2} parent=5 // pred_fallthru
        _
    $region6: #{bottleneck_forward.2} parent=1 // loop_footer
      %s16 = sadd.s32 1, %s12
    $region7: #{bottleneck_forward.2} parent=1 // loop_footer_branch
      %11 = sbr.rel target = $region3
    $region8: #{bottleneck_forward.2} parent=1 // loop_exit
      _

</llo_original>
